<compile_context>
chip_gen: v6e
topology: v6e:2x2x1
jax: 0.10.0
libtpu: 0.0.40
codegen_flags: <defaults>
</compile_context>

<pallas_src>
import functools

import jax
import jax.numpy as jnp
from jax import lax
from jax.experimental import pallas as pl
from jax.experimental.pallas import tpu as pltpu


def _round_up(x, m):
    return ((x + m - 1) // m) * m


# --------------------------------------------------------------------------
# Fused convBlock kernel: conv1+ReLU -> (d-2) x (conv+ReLU) -> conv2 -> +x1
# --------------------------------------------------------------------------

def _conv_block_kernel(x_ref, w1_ref, b1_ref, wm_ref, bm_ref, w2_ref, b2_ref,
                       o_ref, hpad_ref, patch_ref, *, W, HW, PADL, n_mid, cin,
                       fnum):
    """One batch element per grid step.  All activations stay in VMEM.

    x_ref  : (1, cin, HW) f32  input image (real/imag channels)
    w*_ref : (3, cout, 3*cin_layer) bf16 weights, dy-major packing
    b*_ref : (cout, 1) f32 biases
    o_ref  : (1, cin, HW) f32  block output (lane-dense last dim)
    hpad_ref  : (fnum, PADL + HW + W + 1) bf16 padded-activation scratch
    patch_ref : (3*fnum, HW) bf16 per-dy tap-slab scratch
    """
    # Column-validity masks for the shifted taps, built & broadcast ONCE.
    col = lax.broadcasted_iota(jnp.int32, (1, HW), 1) % W
    m_left = jnp.broadcast_to(col >= 1, (fnum, HW))       # valid for dx == 0
    m_right = jnp.broadcast_to(col <= W - 2, (fnum, HW))  # valid for dx == 2

    # Zero the halo columns of the padded activation scratch (interior rows of
    # previous grid iterations are never read before being overwritten).
    hpad_ref[:, 0:PADL] = jnp.zeros((fnum, PADL), jnp.bfloat16)
    hpad_ref[:, PADL + HW:PADL + HW + W + 1] = jnp.zeros((fnum, W + 1),
                                                         jnp.bfloat16)

    x = x_ref[0]                                           # (cin, HW) f32
    hpad_ref[:cin, PADL:PADL + HW] = x.astype(jnp.bfloat16)

    def tap(c, dy, dx):
        # Static lane slice of the padded activation; boolean select kills the
        # row-wrap leakage for the horizontally-shifted taps.  Center column
        # (dx == 1) needs no masking.
        start = PADL + (dy - 1) * W + (dx - 1)
        t = hpad_ref[:c, start:start + HW]                 # bf16 (c, HW)
        if dx == 0:
            t = jnp.where(m_left[:c], t, jnp.zeros_like(t))
        elif dx == 2:
            t = jnp.where(m_right[:c], t, jnp.zeros_like(t))
        return t

    def conv3x3(c, w3, bias):
        # w3: (3, cout, 3*c) bf16 value (dy-major); bias: (cout, 1) f32 value.
        # Split into 3 accumulated dots so only a (3*c, HW) tap slab is live.
        acc = None
        for dy in range(3):
            if c == fnum:
                # aligned 32-row stores into the reused bf16 patch scratch
                for dx in range(3):
                    patch_ref[dx * c:(dx + 1) * c, :] = tap(c, dy, dx)
                p = patch_ref[...]
            else:
                # conv1: tiny Cin, value path is cheap
                p = jnp.concatenate([tap(c, dy, dx) for dx in range(3)], axis=0)
            d = jnp.dot(w3[dy], p, preferred_element_type=jnp.float32)
            acc = d if acc is None else acc + d
        return acc + bias                                  # (cout, HW) f32

    # conv1 + ReLU
    h = jnp.maximum(conv3x3(cin, w1_ref[...], b1_ref[...]), 0.0)
    hpad_ref[:, PADL:PADL + HW] = h.astype(jnp.bfloat16)
    # middle convs + ReLU
    for li in range(n_mid):
        h = jnp.maximum(conv3x3(fnum, wm_ref[li], bm_ref[li]), 0.0)
        hpad_ref[:, PADL:PADL + HW] = h.astype(jnp.bfloat16)
    # conv2 (no ReLU) + residual
    out = conv3x3(fnum, w2_ref[...], b2_ref[...])
    o_ref[0] = (out + x).astype(o_ref.dtype)


def _pack_conv(w, b):
    """(Cout,Cin,3,3)/(Cout,) -> ((3, Cout, 3*Cin) bf16 dy-major, (Cout,1) f32).

    Within each dy slab the K axis flattens as dx*Cin + ci, matching the tap
    order built in-kernel."""
    cout, cin = w.shape[0], w.shape[1]
    wm = jnp.transpose(w, (2, 0, 3, 1)).reshape(3, cout, 3 * cin)
    return wm.astype(jnp.bfloat16), b.reshape(cout, 1).astype(jnp.float32)


def conv_block_apply(x, block_params):
    """Fused convBlock forward.  x: (N, C, H, W) f32 -> (N, C, H, W) f32."""
    N, C, H, W = x.shape
    HW = H * W
    PADL = _round_up(W + 1, 128)     # lane-aligned interior writes

    w1, b1 = block_params["conv1"]
    fnum = w1.shape[0]
    assert fnum >= C
    w1p, b1p = _pack_conv(w1, b1)                         # (3, F, 3C), (F, 1)

    mids = block_params["mid"]
    n_mid = len(mids)
    assert n_mid >= 1, "convBlock expects d >= 3"
    packed = [_pack_conv(w, b) for (w, b) in mids]
    wmp = jnp.stack([p[0] for p in packed], axis=0)       # (n_mid, 3, F, 3F) bf16
    bmp = jnp.stack([p[1] for p in packed], axis=0)       # (n_mid, F, 1)     f32

    w2, b2 = block_params["conv2"]
    w2p, b2p = _pack_conv(w2, b2)                         # (3, C, 3F), (C, 1)

    xf = x.reshape(N, C, HW).astype(jnp.float32)          # pure reshape

    kernel = functools.partial(_conv_block_kernel, W=W, HW=HW, PADL=PADL,
                               n_mid=n_mid, cin=C, fnum=fnum)
    out = pl.pallas_call(
        kernel,
        out_shape=jax.ShapeDtypeStruct((N, C, HW), jnp.float32),
        grid=(N,),
        in_specs=[
            pl.BlockSpec((1, C, HW), lambda n: (n, 0, 0)),                 # x
            pl.BlockSpec((3, fnum, 3 * C), lambda n: (0, 0, 0)),           # w1
            pl.BlockSpec((fnum, 1), lambda n: (0, 0)),                     # b1
            pl.BlockSpec((n_mid, 3, fnum, 3 * fnum), lambda n: (0, 0, 0, 0)),  # wm
            pl.BlockSpec((n_mid, fnum, 1), lambda n: (0, 0, 0)),           # bm
            pl.BlockSpec((3, C, 3 * fnum), lambda n: (0, 0, 0)),           # w2
            pl.BlockSpec((C, 1), lambda n: (0, 0)),                        # b2
        ],
        out_specs=pl.BlockSpec((1, C, HW), lambda n: (n, 0, 0)),
        scratch_shapes=[
            pltpu.VMEM((fnum, PADL + HW + W + 1), jnp.bfloat16),  # padded acts
            pltpu.VMEM((3 * fnum, HW), jnp.bfloat16),             # per-dy taps
        ],
        # Default scoped-VMEM limit is ample at these shapes; do NOT request
        # 64 MiB (whole physical VMEM on v7x).  Large images need H-slab tiling.
        compiler_params=pltpu.CompilerParams(
            dimension_semantics=("parallel",),
        ),
    )(xf, w1p, b1p, wmp, bmp, w2p, b2p)
    return out.reshape(N, C, H, W)


# --------------------------------------------------------------------------
# Data-consistency layer (hard DC, orthonormal FFT); k-space combine in Pallas
# --------------------------------------------------------------------------

def _dc_combine_kernel(kx_ref, y_ref, m_ref, o_ref):
    """k_out = (1-m)*k_pred + m*y; mask broadcast over real/imag in-kernel."""
    kx = kx_ref[...]                 # (1, 2, L)
    y = y_ref[...]                   # (1, 2, L)
    m = m_ref[...]                   # (1, 1, L)
    o_ref[...] = kx + m * (y - kx)


def _pick_lane_chunk(hw, cap=8192):
    """Largest 128-multiple divisor of hw up to `cap` (or hw itself)."""
    if hw <= cap:
        return hw
    for c in range(cap - cap % 128, 0, -128):
        if hw % c == 0:
            return c
    return hw


def data_consistency(x, y, mask):
    """dataConsistencyLayer_fastmri (isFastmri=False path).

    x, y : (N, 2, H, W) real/imag image / measured k-space; mask: (N, 1, H, W).
    """
    # TODO(synk): dataConsistencyLayer_fastmri source not provided; hard data
    # consistency (lambda -> inf) with orthonormal fft2 is assumed.
    N, _, H, W = x.shape
    HW = H * W
    xc = x[:, 0] + 1j * x[:, 1]
    kx = jnp.fft.fft2(xc, norm="ortho")            # FFT has no Pallas equivalent
    kx_ri = jnp.stack([kx.real, kx.imag], axis=1).astype(jnp.float32)

    kx3 = kx_ri.reshape(N, 2, HW)
    y3 = y.reshape(N, 2, HW).astype(jnp.float32)
    m3 = mask.reshape(N, 1, HW).astype(jnp.float32)   # no (N,2,HW) broadcast

    LCH = _pick_lane_chunk(HW)
    grid = (N, HW // LCH)
    io_spec = pl.BlockSpec((1, 2, LCH), lambda n, c: (n, 0, c))
    m_spec = pl.BlockSpec((1, 1, LCH), lambda n, c: (n, 0, c))
    kdc = pl.pallas_call(
        _dc_combine_kernel,
        out_shape=jax.ShapeDtypeStruct((N, 2, HW), jnp.float32),
        grid=grid,
        in_specs=[io_spec, io_spec, m_spec],
        out_specs=io_spec,
        compiler_params=pltpu.CompilerParams(
            dimension_semantics=("parallel", "parallel")),
    )(kx3, y3, m3)

    kdc = kdc.reshape(N, 2, H, W)
    xdc = jnp.fft.ifft2(kdc[:, 0] + 1j * kdc[:, 1], norm="ortho")
    return jnp.stack([xdc.real, xdc.imag], axis=1).astype(jnp.float32)


# --------------------------------------------------------------------------
# DC_CNN forward + deterministic parameter init
# --------------------------------------------------------------------------

def dc_cnn_forward(x1, y, mask, params):
    xt = x1
    for block_params in params:      # each cascade = convBlock then DC layer
        xt = conv_block_apply(xt, block_params)
        xt = data_consistency(xt, y, mask)
    return xt


def _init_conv(key, cin, cout):
    kw, kb = jax.random.split(key)
    bound = (cin * 9) ** -0.5        # matches PyTorch Conv2d default scale
    w = jax.random.uniform(kw, (cout, cin, 3, 3), jnp.float32, -bound, bound)
    b = jax.random.uniform(kb, (cout,), jnp.float32, -bound, bound)
    return w, b


def init_dc_cnn_params(key, d=5, c=5, fNum=32, indim=2):
    params = []
    for _ in range(c):
        key, k1, k2 = jax.random.split(key, 3)
        conv1 = _init_conv(k1, indim, fNum)
        mids = []
        for _ in range(1, d - 1):    # d-2 middle convs, as in convBlock.__init__
            key, km = jax.random.split(key)
            mids.append(_init_conv(km, fNum, fNum))
        conv2 = _init_conv(k2, fNum, indim)
        params.append({"conv1": conv1, "mid": mids, "conv2": conv2})
    return params


# --------------------------------------------------------------------------

if __name__ == "__main__":
    key = jax.random.PRNGKey(0)
    kp, kxx, kyy, kmm = jax.random.split(key, 4)

    N, H, W = 2, 16, 16
    params = init_dc_cnn_params(kp, d=5, c=5, fNum=32, indim=2)

    x = jax.random.normal(kxx, (N, 2, H, W), jnp.float32)      # image (real/imag)
    y = jax.random.normal(kyy, (N, 2, H, W), jnp.float32)      # measured k-space
    mask = (jax.random.uniform(kmm, (N, 1, H, W)) > 0.5).astype(jnp.float32)

    fwd = jax.jit(dc_cnn_forward)
    out = jax.block_until_ready(fwd(x, y, mask, params))
    assert out.shape == (N, 2, H, W) and out.dtype == jnp.float32
    assert bool(jnp.all(jnp.isfinite(out)))
    print("KERNEL_OK")
</pallas_src>

<mosaic_0001>
module attributes {stable_mosaic.version = 11 : i64} {
  func.func @_conv_block_kernel(%arg0: i32, %arg1: memref<1x2x256xf32, #tpu.memory_space<vmem>>, %arg2: memref<3x32x6xbf16, #tpu.memory_space<vmem>>, %arg3: memref<32x1xf32, #tpu.memory_space<vmem>>, %arg4: memref<3x3x32x96xbf16, #tpu.memory_space<vmem>>, %arg5: memref<3x32x1xf32, #tpu.memory_space<vmem>>, %arg6: memref<3x2x96xbf16, #tpu.memory_space<vmem>>, %arg7: memref<2x1xf32, #tpu.memory_space<vmem>>, %arg8: memref<1x2x256xf32, #tpu.memory_space<vmem>>, %arg9: memref<32x401xbf16, #tpu.memory_space<vmem>>, %arg10: memref<96x256xbf16, #tpu.memory_space<vmem>>) attributes {dimension_semantics = [#tpu.dimension_semantics<parallel>], iteration_bounds = array<i64: 2>, scalar_prefetch = 0 : i64, scratch_operands = 2 : i64, tpu.core_type = #tpu.core_type<tc>, window_params = [{transform_indices = @transform_0, window_bounds = array<i64: 1, 2, 256>}, {pipeline_mode = #tpu.pipeline_mode<synchronous>, transform_indices = @transform_1, window_bounds = array<i64: 3, 32, 6>}, {pipeline_mode = #tpu.pipeline_mode<synchronous>, transform_indices = @transform_2, window_bounds = array<i64: 32, 1>}, {pipeline_mode = #tpu.pipeline_mode<synchronous>, transform_indices = @transform_3, window_bounds = array<i64: 3, 3, 32, 96>}, {pipeline_mode = #tpu.pipeline_mode<synchronous>, transform_indices = @transform_4, window_bounds = array<i64: 3, 32, 1>}, {pipeline_mode = #tpu.pipeline_mode<synchronous>, transform_indices = @transform_5, window_bounds = array<i64: 3, 2, 96>}, {pipeline_mode = #tpu.pipeline_mode<synchronous>, transform_indices = @transform_6, window_bounds = array<i64: 2, 1>}, {transform_indices = @transform_7, window_bounds = array<i64: 1, 2, 256>}]} {
    %0 = tpu.iota {dimensions = array<i32: 1>} : vector<1x256xi32>
    %c16_i32 = arith.constant 16 : i32
    %c0_i32 = arith.constant 0 : i32
    %1 = arith.cmpi eq, %c16_i32, %c0_i32 : i32
    %c1_i32 = arith.constant 1 : i32
    %2 = arith.select %1, %c1_i32, %c16_i32 : i32
    %3 = vector.broadcast %2 : i32 to vector<1x256xi32>
    %4 = arith.remsi %0, %3 : vector<1x256xi32>
    %c0_i32_0 = arith.constant 0 : i32
    %5 = vector.broadcast %c0_i32_0 : i32 to vector<1x256xi32>
    %6 = arith.cmpi ne, %4, %5 : vector<1x256xi32>
    %c0_i32_1 = arith.constant 0 : i32
    %7 = vector.broadcast %c0_i32_1 : i32 to vector<1x256xi32>
    %8 = arith.cmpi slt, %4, %7 : vector<1x256xi32>
    %c0_i32_2 = arith.constant 0 : i32
    %9 = arith.cmpi slt, %2, %c0_i32_2 : i32
    %10 = vector.broadcast %9 : i1 to vector<1x256xi1>
    %11 = vector.broadcast %10 : vector<1x256xi1> to vector<1x256xi1>
    %12 = arith.xori %8, %11 : vector<1x256xi1>
    %13 = arith.andi %12, %6 : vector<1x256xi1>
    %14 = vector.broadcast %2 : i32 to vector<1x256xi32>
    %15 = arith.addi %4, %14 : vector<1x256xi32>
    %16 = arith.select %13, %15, %4 : vector<1x256xi1>, vector<1x256xi32>
    %c1_i32_3 = arith.constant 1 : i32
    %17 = vector.broadcast %c1_i32_3 : i32 to vector<1x256xi32>
    %18 = arith.cmpi sge, %16, %17 : vector<1x256xi32>
    %19 = vector.shape_cast %18 : vector<1x256xi1> to vector<1x256xi1>
    %20 = vector.broadcast %19 : vector<1x256xi1> to vector<32x256xi1>
    %c14_i32 = arith.constant 14 : i32
    %21 = vector.broadcast %c14_i32 : i32 to vector<1x256xi32>
    %22 = arith.cmpi sle, %16, %21 : vector<1x256xi32>
    %23 = vector.shape_cast %22 : vector<1x256xi1> to vector<1x256xi1>
    %24 = vector.broadcast %23 : vector<1x256xi1> to vector<32x256xi1>
    %cst = arith.constant 0.000000e+00 : bf16
    %25 = vector.broadcast %cst : bf16 to vector<32x128xbf16>
    %c0 = arith.constant 0 : index
    %c0_4 = arith.constant 0 : index
    %26 = vector.load %arg9[%c0, %c0_4] : memref<32x401xbf16, #tpu.memory_space<vmem>>, vector<32x128xbf16>
    tpu.vector_store %arg9[%c0, %c0_4], %25 {strides = array<i32>} : memref<32x401xbf16, #tpu.memory_space<vmem>>, vector<32x128xbf16>,
    %cst_5 = arith.constant 0.000000e+00 : bf16
    %27 = vector.broadcast %cst_5 : bf16 to vector<32x17xbf16>
    %c0_6 = arith.constant 0 : index
    %c384 = arith.constant 384 : index
    %28 = vector.load %arg9[%c0_6, %c384] : memref<32x401xbf16, #tpu.memory_space<vmem>>, vector<32x17xbf16>
    tpu.vector_store %arg9[%c0_6, %c384], %27 {strides = array<i32>} : memref<32x401xbf16, #tpu.memory_space<vmem>>, vector<32x17xbf16>,
    %c0_7 = arith.constant 0 : index
    %c0_8 = arith.constant 0 : index
    %c0_9 = arith.constant 0 : index
    %29 = vector.load %arg1[%c0_7, %c0_8, %c0_9] : memref<1x2x256xf32, #tpu.memory_space<vmem>>, vector<1x2x256xf32>
    %30 = vector.shape_cast %29 : vector<1x2x256xf32> to vector<2x256xf32>
    %31 = arith.truncf %30 : vector<2x256xf32> to vector<2x256xbf16>
    %c0_10 = arith.constant 0 : index
    %c128 = arith.constant 128 : index
    %32 = vector.load %arg9[%c0_10, %c128] : memref<32x401xbf16, #tpu.memory_space<vmem>>, vector<2x256xbf16>
    tpu.vector_store %arg9[%c0_10, %c128], %31 {strides = array<i32>} : memref<32x401xbf16, #tpu.memory_space<vmem>>, vector<2x256xbf16>,
    %c0_11 = arith.constant 0 : index
    %c0_12 = arith.constant 0 : index
    %c0_13 = arith.constant 0 : index
    %33 = vector.load %arg2[%c0_11, %c0_12, %c0_13] : memref<3x32x6xbf16, #tpu.memory_space<vmem>>, vector<3x32x6xbf16>
    %c0_14 = arith.constant 0 : index
    %c0_15 = arith.constant 0 : index
    %34 = vector.load %arg3[%c0_14, %c0_15] : memref<32x1xf32, #tpu.memory_space<vmem>>, vector<32x1xf32>
    %c0_16 = arith.constant 0 : index
    %c111 = arith.constant 111 : index
    %35 = vector.load %arg9[%c0_16, %c111] : memref<32x401xbf16, #tpu.memory_space<vmem>>, vector<2x256xbf16>
    %36 = vector.extract_strided_slice %20 {offsets = [0, 0], sizes = [2, 256], strides = [1, 1]} : vector<32x256xi1> to vector<2x256xi1>
    %cst_17 = arith.constant 0.000000e+00 : bf16
    %37 = vector.broadcast %cst_17 : bf16 to vector<2x256xbf16>
    %38 = arith.select %36, %35, %37 : vector<2x256xi1>, vector<2x256xbf16>
    %c0_18 = arith.constant 0 : index
    %c112 = arith.constant 112 : index
    %39 = vector.load %arg9[%c0_18, %c112] : memref<32x401xbf16, #tpu.memory_space<vmem>>, vector<2x256xbf16>
    %c0_19 = arith.constant 0 : index
    %c113 = arith.constant 113 : index
    %40 = vector.load %arg9[%c0_19, %c113] : memref<32x401xbf16, #tpu.memory_space<vmem>>, vector<2x256xbf16>
    %41 = vector.extract_strided_slice %24 {offsets = [0, 0], sizes = [2, 256], strides = [1, 1]} : vector<32x256xi1> to vector<2x256xi1>
    %cst_20 = arith.constant 0.000000e+00 : bf16
    %42 = vector.broadcast %cst_20 : bf16 to vector<2x256xbf16>
    %43 = arith.select %41, %40, %42 : vector<2x256xi1>, vector<2x256xbf16>
    %44 = tpu.concatenate %38, %39, %43 in 0 : vector<2x256xbf16>, vector<2x256xbf16>, vector<2x256xbf16> -> vector<6x256xbf16>
    %45 = vector.extract_strided_slice %33 {offsets = [0, 0, 0], sizes = [1, 32, 6], strides = [1, 1, 1]} : vector<3x32x6xbf16> to vector<1x32x6xbf16>
    %46 = vector.shape_cast %45 : vector<1x32x6xbf16> to vector<32x6xbf16>
    %cst_21 = arith.constant dense<0.000000e+00> : vector<32x256xf32>
    %47 = tpu.matmul %46, %44, %cst_21 {dimension_numbers = #tpu.dot_dimension_numbers<[1], [0], [0], [1], [0, 0, 1, 1], [], []>} : vector<32x6xbf16>, vector<6x256xbf16>, vector<32x256xf32> -> vector<32x256xf32>
    %c0_22 = arith.constant 0 : index
    %c127 = arith.constant 127 : index
    %48 = vector.load %arg9[%c0_22, %c127] : memref<32x401xbf16, #tpu.memory_space<vmem>>, vector<2x256xbf16>
    %49 = vector.extract_strided_slice %20 {offsets = [0, 0], sizes = [2, 256], strides = [1, 1]} : vector<32x256xi1> to vector<2x256xi1>
    %cst_23 = arith.constant 0.000000e+00 : bf16
    %50 = vector.broadcast %cst_23 : bf16 to vector<2x256xbf16>
    %51 = arith.select %49, %48, %50 : vector<2x256xi1>, vector<2x256xbf16>
    %c0_24 = arith.constant 0 : index
    %c128_25 = arith.constant 128 : index
    %52 = vector.load %arg9[%c0_24, %c128_25] : memref<32x401xbf16, #tpu.memory_space<vmem>>, vector<2x256xbf16>
    %c0_26 = arith.constant 0 : index
    %c129 = arith.constant 129 : index
    %53 = vector.load %arg9[%c0_26, %c129] : memref<32x401xbf16, #tpu.memory_space<vmem>>, vector<2x256xbf16>
    %54 = vector.extract_strided_slice %24 {offsets = [0, 0], sizes = [2, 256], strides = [1, 1]} : vector<32x256xi1> to vector<2x256xi1>
    %cst_27 = arith.constant 0.000000e+00 : bf16
    %55 = vector.broadcast %cst_27 : bf16 to vector<2x256xbf16>
    %56 = arith.select %54, %53, %55 : vector<2x256xi1>, vector<2x256xbf16>
    %57 = tpu.concatenate %51, %52, %56 in 0 : vector<2x256xbf16>, vector<2x256xbf16>, vector<2x256xbf16> -> vector<6x256xbf16>
    %58 = vector.extract_strided_slice %33 {offsets = [1, 0, 0], sizes = [1, 32, 6], strides = [1, 1, 1]} : vector<3x32x6xbf16> to vector<1x32x6xbf16>
    %59 = vector.shape_cast %58 : vector<1x32x6xbf16> to vector<32x6xbf16>
    %cst_28 = arith.constant dense<0.000000e+00> : vector<32x256xf32>
    %60 = tpu.matmul %59, %57, %cst_28 {dimension_numbers = #tpu.dot_dimension_numbers<[1], [0], [0], [1], [0, 0, 1, 1], [], []>} : vector<32x6xbf16>, vector<6x256xbf16>, vector<32x256xf32> -> vector<32x256xf32>
    %61 = arith.addf %47, %60 : vector<32x256xf32>
    %c0_29 = arith.constant 0 : index
    %c143 = arith.constant 143 : index
    %62 = vector.load %arg9[%c0_29, %c143] : memref<32x401xbf16, #tpu.memory_space<vmem>>, vector<2x256xbf16>
    %63 = vector.extract_strided_slice %20 {offsets = [0, 0], sizes = [2, 256], strides = [1, 1]} : vector<32x256xi1> to vector<2x256xi1>
    %cst_30 = arith.constant 0.000000e+00 : bf16
    %64 = vector.broadcast %cst_30 : bf16 to vector<2x256xbf16>
    %65 = arith.select %63, %62, %64 : vector<2x256xi1>, vector<2x256xbf16>
    %c0_31 = arith.constant 0 : index
    %c144 = arith.constant 144 : index
    %66 = vector.load %arg9[%c0_31, %c144] : memref<32x401xbf16, #tpu.memory_space<vmem>>, vector<2x256xbf16>
    %c0_32 = arith.constant 0 : index
    %c145 = arith.constant 145 : index
    %67 = vector.load %arg9[%c0_32, %c145] : memref<32x401xbf16, #tpu.memory_space<vmem>>, vector<2x256xbf16>
    %68 = vector.extract_strided_slice %24 {offsets = [0, 0], sizes = [2, 256], strides = [1, 1]} : vector<32x256xi1> to vector<2x256xi1>
    %cst_33 = arith.constant 0.000000e+00 : bf16
    %69 = vector.broadcast %cst_33 : bf16 to vector<2x256xbf16>
    %70 = arith.select %68, %67, %69 : vector<2x256xi1>, vector<2x256xbf16>
    %71 = tpu.concatenate %65, %66, %70 in 0 : vector<2x256xbf16>, vector<2x256xbf16>, vector<2x256xbf16> -> vector<6x256xbf16>
    %72 = vector.extract_strided_slice %33 {offsets = [2, 0, 0], sizes = [1, 32, 6], strides = [1, 1, 1]} : vector<3x32x6xbf16> to vector<1x32x6xbf16>
    %73 = vector.shape_cast %72 : vector<1x32x6xbf16> to vector<32x6xbf16>
    %cst_34 = arith.constant dense<0.000000e+00> : vector<32x256xf32>
    %74 = tpu.matmul %73, %71, %cst_34 {dimension_numbers = #tpu.dot_dimension_numbers<[1], [0], [0], [1], [0, 0, 1, 1], [], []>} : vector<32x6xbf16>, vector<6x256xbf16>, vector<32x256xf32> -> vector<32x256xf32>
    %75 = arith.addf %61, %74 : vector<32x256xf32>
    %76 = vector.broadcast %34 : vector<32x1xf32> to vector<32x256xf32>
    %77 = arith.addf %75, %76 : vector<32x256xf32>
    %cst_35 = arith.constant 0.000000e+00 : f32
    %78 = vector.broadcast %cst_35 : f32 to vector<32x256xf32>
    %79 = arith.maximumf %77, %78 : vector<32x256xf32>
    %80 = arith.truncf %79 : vector<32x256xf32> to vector<32x256xbf16>
    %c0_36 = arith.constant 0 : index
    %c128_37 = arith.constant 128 : index
    %81 = vector.load %arg9[%c0_36, %c128_37] : memref<32x401xbf16, #tpu.memory_space<vmem>>, vector<32x256xbf16>
    tpu.vector_store %arg9[%c0_36, %c128_37], %80 {strides = array<i32>} : memref<32x401xbf16, #tpu.memory_space<vmem>>, vector<32x256xbf16>,
    %c0_38 = arith.constant 0 : index
    %c0_39 = arith.constant 0 : index
    %c0_40 = arith.constant 0 : index
    %c0_41 = arith.constant 0 : index
    %82 = vector.load %arg4[%c0_38, %c0_39, %c0_40, %c0_41] : memref<3x3x32x96xbf16, #tpu.memory_space<vmem>>, vector<1x3x32x96xbf16>
    %83 = vector.shape_cast %82 : vector<1x3x32x96xbf16> to vector<3x32x96xbf16>
    %c0_42 = arith.constant 0 : index
    %c0_43 = arith.constant 0 : index
    %c0_44 = arith.constant 0 : index
    %84 = vector.load %arg5[%c0_42, %c0_43, %c0_44] : memref<3x32x1xf32, #tpu.memory_space<vmem>>, vector<1x32x1xf32>
    %85 = vector.shape_cast %84 : vector<1x32x1xf32> to vector<32x1xf32>
    %c0_45 = arith.constant 0 : index
    %c111_46 = arith.constant 111 : index
    %86 = vector.load %arg9[%c0_45, %c111_46] : memref<32x401xbf16, #tpu.memory_space<vmem>>, vector<32x256xbf16>
    %cst_47 = arith.constant 0.000000e+00 : bf16
    %87 = vector.broadcast %cst_47 : bf16 to vector<32x256xbf16>
    %88 = arith.select %20, %86, %87 : vector<32x256xi1>, vector<32x256xbf16>
    %c0_48 = arith.constant 0 : index
    %c0_49 = arith.constant 0 : index
    %89 = vector.load %arg10[%c0_48, %c0_49] : memref<96x256xbf16, #tpu.memory_space<vmem>>, vector<32x256xbf16>
    tpu.vector_store %arg10[%c0_48, %c0_49], %88 {strides = array<i32>} : memref<96x256xbf16, #tpu.memory_space<vmem>>, vector<32x256xbf16>,
    %c0_50 = arith.constant 0 : index
    %c112_51 = arith.constant 112 : index
    %90 = vector.load %arg9[%c0_50, %c112_51] : memref<32x401xbf16, #tpu.memory_space<vmem>>, vector<32x256xbf16>
    %c32 = arith.constant 32 : index
    %c0_52 = arith.constant 0 : index
    %91 = vector.load %arg10[%c32, %c0_52] : memref<96x256xbf16, #tpu.memory_space<vmem>>, vector<32x256xbf16>
    tpu.vector_store %arg10[%c32, %c0_52], %90 {strides = array<i32>} : memref<96x256xbf16, #tpu.memory_space<vmem>>, vector<32x256xbf16>,
    %c0_53 = arith.constant 0 : index
    %c113_54 = arith.constant 113 : index
    %92 = vector.load %arg9[%c0_53, %c113_54] : memref<32x401xbf16, #tpu.memory_space<vmem>>, vector<32x256xbf16>
    %cst_55 = arith.constant 0.000000e+00 : bf16
    %93 = vector.broadcast %cst_55 : bf16 to vector<32x256xbf16>
    %94 = arith.select %24, %92, %93 : vector<32x256xi1>, vector<32x256xbf16>
    %c64 = arith.constant 64 : index
    %c0_56 = arith.constant 0 : index
    %95 = vector.load %arg10[%c64, %c0_56] : memref<96x256xbf16, #tpu.memory_space<vmem>>, vector<32x256xbf16>
    tpu.vector_store %arg10[%c64, %c0_56], %94 {strides = array<i32>} : memref<96x256xbf16, #tpu.memory_space<vmem>>, vector<32x256xbf16>,
    %c0_57 = arith.constant 0 : index
    %c0_58 = arith.constant 0 : index
    %96 = vector.load %arg10[%c0_57, %c0_58] : memref<96x256xbf16, #tpu.memory_space<vmem>>, vector<96x256xbf16>
    %97 = vector.extract_strided_slice %83 {offsets = [0, 0, 0], sizes = [1, 32, 96], strides = [1, 1, 1]} : vector<3x32x96xbf16> to vector<1x32x96xbf16>
    %98 = vector.shape_cast %97 : vector<1x32x96xbf16> to vector<32x96xbf16>
    %cst_59 = arith.constant dense<0.000000e+00> : vector<32x256xf32>
    %99 = tpu.matmul %98, %96, %cst_59 {dimension_numbers = #tpu.dot_dimension_numbers<[1], [0], [0], [1], [0, 0, 1, 1], [], []>} : vector<32x96xbf16>, vector<96x256xbf16>, vector<32x256xf32> -> vector<32x256xf32>
    %c0_60 = arith.constant 0 : index
    %c127_61 = arith.constant 127 : index
    %100 = vector.load %arg9[%c0_60, %c127_61] : memref<32x401xbf16, #tpu.memory_space<vmem>>, vector<32x256xbf16>
    %cst_62 = arith.constant 0.000000e+00 : bf16
    %101 = vector.broadcast %cst_62 : bf16 to vector<32x256xbf16>
    %102 = arith.select %20, %100, %101 : vector<32x256xi1>, vector<32x256xbf16>
    %c0_63 = arith.constant 0 : index
    %c0_64 = arith.constant 0 : index
    %103 = vector.load %arg10[%c0_63, %c0_64] : memref<96x256xbf16, #tpu.memory_space<vmem>>, vector<32x256xbf16>
    tpu.vector_store %arg10[%c0_63, %c0_64], %102 {strides = array<i32>} : memref<96x256xbf16, #tpu.memory_space<vmem>>, vector<32x256xbf16>,
    %c0_65 = arith.constant 0 : index
    %c128_66 = arith.constant 128 : index
    %104 = vector.load %arg9[%c0_65, %c128_66] : memref<32x401xbf16, #tpu.memory_space<vmem>>, vector<32x256xbf16>
    %c32_67 = arith.constant 32 : index
    %c0_68 = arith.constant 0 : index
    %105 = vector.load %arg10[%c32_67, %c0_68] : memref<96x256xbf16, #tpu.memory_space<vmem>>, vector<32x256xbf16>
    tpu.vector_store %arg10[%c32_67, %c0_68], %104 {strides = array<i32>} : memref<96x256xbf16, #tpu.memory_space<vmem>>, vector<32x256xbf16>,
    %c0_69 = arith.constant 0 : index
    %c129_70 = arith.constant 129 : index
    %106 = vector.load %arg9[%c0_69, %c129_70] : memref<32x401xbf16, #tpu.memory_space<vmem>>, vector<32x256xbf16>
    %cst_71 = arith.constant 0.000000e+00 : bf16
    %107 = vector.broadcast %cst_71 : bf16 to vector<32x256xbf16>
    %108 = arith.select %24, %106, %107 : vector<32x256xi1>, vector<32x256xbf16>
    %c64_72 = arith.constant 64 : index
    %c0_73 = arith.constant 0 : index
    %109 = vector.load %arg10[%c64_72, %c0_73] : memref<96x256xbf16, #tpu.memory_space<vmem>>, vector<32x256xbf16>
    tpu.vector_store %arg10[%c64_72, %c0_73], %108 {strides = array<i32>} : memref<96x256xbf16, #tpu.memory_space<vmem>>, vector<32x256xbf16>,
    %c0_74 = arith.constant 0 : index
    %c0_75 = arith.constant 0 : index
    %110 = vector.load %arg10[%c0_74, %c0_75] : memref<96x256xbf16, #tpu.memory_space<vmem>>, vector<96x256xbf16>
    %111 = vector.extract_strided_slice %83 {offsets = [1, 0, 0], sizes = [1, 32, 96], strides = [1, 1, 1]} : vector<3x32x96xbf16> to vector<1x32x96xbf16>
    %112 = vector.shape_cast %111 : vector<1x32x96xbf16> to vector<32x96xbf16>
    %cst_76 = arith.constant dense<0.000000e+00> : vector<32x256xf32>
    %113 = tpu.matmul %112, %110, %cst_76 {dimension_numbers = #tpu.dot_dimension_numbers<[1], [0], [0], [1], [0, 0, 1, 1], [], []>} : vector<32x96xbf16>, vector<96x256xbf16>, vector<32x256xf32> -> vector<32x256xf32>
    %114 = arith.addf %99, %113 : vector<32x256xf32>
    %c0_77 = arith.constant 0 : index
    %c143_78 = arith.constant 143 : index
    %115 = vector.load %arg9[%c0_77, %c143_78] : memref<32x401xbf16, #tpu.memory_space<vmem>>, vector<32x256xbf16>
    %cst_79 = arith.constant 0.000000e+00 : bf16
    %116 = vector.broadcast %cst_79 : bf16 to vector<32x256xbf16>
    %117 = arith.select %20, %115, %116 : vector<32x256xi1>, vector<32x256xbf16>
    %c0_80 = arith.constant 0 : index
    %c0_81 = arith.constant 0 : index
    %118 = vector.load %arg10[%c0_80, %c0_81] : memref<96x256xbf16, #tpu.memory_space<vmem>>, vector<32x256xbf16>
    tpu.vector_store %arg10[%c0_80, %c0_81], %117 {strides = array<i32>} : memref<96x256xbf16, #tpu.memory_space<vmem>>, vector<32x256xbf16>,
    %c0_82 = arith.constant 0 : index
    %c144_83 = arith.constant 144 : index
    %119 = vector.load %arg9[%c0_82, %c144_83] : memref<32x401xbf16, #tpu.memory_space<vmem>>, vector<32x256xbf16>
    %c32_84 = arith.constant 32 : index
    %c0_85 = arith.constant 0 : index
    %120 = vector.load %arg10[%c32_84, %c0_85] : memref<96x256xbf16, #tpu.memory_space<vmem>>, vector<32x256xbf16>
    tpu.vector_store %arg10[%c32_84, %c0_85], %119 {strides = array<i32>} : memref<96x256xbf16, #tpu.memory_space<vmem>>, vector<32x256xbf16>,
    %c0_86 = arith.constant 0 : index
    %c145_87 = arith.constant 145 : index
    %121 = vector.load %arg9[%c0_86, %c145_87] : memref<32x401xbf16, #tpu.memory_space<vmem>>, vector<32x256xbf16>
    %cst_88 = arith.constant 0.000000e+00 : bf16
    %122 = vector.broadcast %cst_88 : bf16 to vector<32x256xbf16>
    %123 = arith.select %24, %121, %122 : vector<32x256xi1>, vector<32x256xbf16>
    %c64_89 = arith.constant 64 : index
    %c0_90 = arith.constant 0 : index
    %124 = vector.load %arg10[%c64_89, %c0_90] : memref<96x256xbf16, #tpu.memory_space<vmem>>, vector<32x256xbf16>
    tpu.vector_store %arg10[%c64_89, %c0_90], %123 {strides = array<i32>} : memref<96x256xbf16, #tpu.memory_space<vmem>>, vector<32x256xbf16>,
    %c0_91 = arith.constant 0 : index
    %c0_92 = arith.constant 0 : index
    %125 = vector.load %arg10[%c0_91, %c0_92] : memref<96x256xbf16, #tpu.memory_space<vmem>>, vector<96x256xbf16>
    %126 = vector.extract_strided_slice %83 {offsets = [2, 0, 0], sizes = [1, 32, 96], strides = [1, 1, 1]} : vector<3x32x96xbf16> to vector<1x32x96xbf16>
    %127 = vector.shape_cast %126 : vector<1x32x96xbf16> to vector<32x96xbf16>
    %cst_93 = arith.constant dense<0.000000e+00> : vector<32x256xf32>
    %128 = tpu.matmul %127, %125, %cst_93 {dimension_numbers = #tpu.dot_dimension_numbers<[1], [0], [0], [1], [0, 0, 1, 1], [], []>} : vector<32x96xbf16>, vector<96x256xbf16>, vector<32x256xf32> -> vector<32x256xf32>
    %129 = arith.addf %114, %128 : vector<32x256xf32>
    %130 = vector.broadcast %85 : vector<32x1xf32> to vector<32x256xf32>
    %131 = arith.addf %129, %130 : vector<32x256xf32>
    %cst_94 = arith.constant 0.000000e+00 : f32
    %132 = vector.broadcast %cst_94 : f32 to vector<32x256xf32>
    %133 = arith.maximumf %131, %132 : vector<32x256xf32>
    %134 = arith.truncf %133 : vector<32x256xf32> to vector<32x256xbf16>
    %c0_95 = arith.constant 0 : index
    %c128_96 = arith.constant 128 : index
    %135 = vector.load %arg9[%c0_95, %c128_96] : memref<32x401xbf16, #tpu.memory_space<vmem>>, vector<32x256xbf16>
    tpu.vector_store %arg9[%c0_95, %c128_96], %134 {strides = array<i32>} : memref<32x401xbf16, #tpu.memory_space<vmem>>, vector<32x256xbf16>,
    %c1 = arith.constant 1 : index
    %c0_97 = arith.constant 0 : index
    %c0_98 = arith.constant 0 : index
    %c0_99 = arith.constant 0 : index
    %136 = vector.load %arg4[%c1, %c0_97, %c0_98, %c0_99] : memref<3x3x32x96xbf16, #tpu.memory_space<vmem>>, vector<1x3x32x96xbf16>
    %137 = vector.shape_cast %136 : vector<1x3x32x96xbf16> to vector<3x32x96xbf16>
    %c1_100 = arith.constant 1 : index
    %c0_101 = arith.constant 0 : index
    %c0_102 = arith.constant 0 : index
    %138 = vector.load %arg5[%c1_100, %c0_101, %c0_102] : memref<3x32x1xf32, #tpu.memory_space<vmem>>, vector<1x32x1xf32>
    %139 = vector.shape_cast %138 : vector<1x32x1xf32> to vector<32x1xf32>
    %c0_103 = arith.constant 0 : index
    %c111_104 = arith.constant 111 : index
    %140 = vector.load %arg9[%c0_103, %c111_104] : memref<32x401xbf16, #tpu.memory_space<vmem>>, vector<32x256xbf16>
    %cst_105 = arith.constant 0.000000e+00 : bf16
    %141 = vector.broadcast %cst_105 : bf16 to vector<32x256xbf16>
    %142 = arith.select %20, %140, %141 : vector<32x256xi1>, vector<32x256xbf16>
    %c0_106 = arith.constant 0 : index
    %c0_107 = arith.constant 0 : index
    %143 = vector.load %arg10[%c0_106, %c0_107] : memref<96x256xbf16, #tpu.memory_space<vmem>>, vector<32x256xbf16>
    tpu.vector_store %arg10[%c0_106, %c0_107], %142 {strides = array<i32>} : memref<96x256xbf16, #tpu.memory_space<vmem>>, vector<32x256xbf16>,
    %c0_108 = arith.constant 0 : index
    %c112_109 = arith.constant 112 : index
    %144 = vector.load %arg9[%c0_108, %c112_109] : memref<32x401xbf16, #tpu.memory_space<vmem>>, vector<32x256xbf16>
    %c32_110 = arith.constant 32 : index
    %c0_111 = arith.constant 0 : index
    %145 = vector.load %arg10[%c32_110, %c0_111] : memref<96x256xbf16, #tpu.memory_space<vmem>>, vector<32x256xbf16>
    tpu.vector_store %arg10[%c32_110, %c0_111], %144 {strides = array<i32>} : memref<96x256xbf16, #tpu.memory_space<vmem>>, vector<32x256xbf16>,
    %c0_112 = arith.constant 0 : index
    %c113_113 = arith.constant 113 : index
    %146 = vector.load %arg9[%c0_112, %c113_113] : memref<32x401xbf16, #tpu.memory_space<vmem>>, vector<32x256xbf16>
    %cst_114 = arith.constant 0.000000e+00 : bf16
    %147 = vector.broadcast %cst_114 : bf16 to vector<32x256xbf16>
    %148 = arith.select %24, %146, %147 : vector<32x256xi1>, vector<32x256xbf16>
    %c64_115 = arith.constant 64 : index
    %c0_116 = arith.constant 0 : index
    %149 = vector.load %arg10[%c64_115, %c0_116] : memref<96x256xbf16, #tpu.memory_space<vmem>>, vector<32x256xbf16>
    tpu.vector_store %arg10[%c64_115, %c0_116], %148 {strides = array<i32>} : memref<96x256xbf16, #tpu.memory_space<vmem>>, vector<32x256xbf16>,
    %c0_117 = arith.constant 0 : index
    %c0_118 = arith.constant 0 : index
    %150 = vector.load %arg10[%c0_117, %c0_118] : memref<96x256xbf16, #tpu.memory_space<vmem>>, vector<96x256xbf16>
    %151 = vector.extract_strided_slice %137 {offsets = [0, 0, 0], sizes = [1, 32, 96], strides = [1, 1, 1]} : vector<3x32x96xbf16> to vector<1x32x96xbf16>
    %152 = vector.shape_cast %151 : vector<1x32x96xbf16> to vector<32x96xbf16>
    %cst_119 = arith.constant dense<0.000000e+00> : vector<32x256xf32>
    %153 = tpu.matmul %152, %150, %cst_119 {dimension_numbers = #tpu.dot_dimension_numbers<[1], [0], [0], [1], [0, 0, 1, 1], [], []>} : vector<32x96xbf16>, vector<96x256xbf16>, vector<32x256xf32> -> vector<32x256xf32>
    %c0_120 = arith.constant 0 : index
    %c127_121 = arith.constant 127 : index
    %154 = vector.load %arg9[%c0_120, %c127_121] : memref<32x401xbf16, #tpu.memory_space<vmem>>, vector<32x256xbf16>
    %cst_122 = arith.constant 0.000000e+00 : bf16
    %155 = vector.broadcast %cst_122 : bf16 to vector<32x256xbf16>
    %156 = arith.select %20, %154, %155 : vector<32x256xi1>, vector<32x256xbf16>
    %c0_123 = arith.constant 0 : index
    %c0_124 = arith.constant 0 : index
    %157 = vector.load %arg10[%c0_123, %c0_124] : memref<96x256xbf16, #tpu.memory_space<vmem>>, vector<32x256xbf16>
    tpu.vector_store %arg10[%c0_123, %c0_124], %156 {strides = array<i32>} : memref<96x256xbf16, #tpu.memory_space<vmem>>, vector<32x256xbf16>,
    %c0_125 = arith.constant 0 : index
    %c128_126 = arith.constant 128 : index
    %158 = vector.load %arg9[%c0_125, %c128_126] : memref<32x401xbf16, #tpu.memory_space<vmem>>, vector<32x256xbf16>
    %c32_127 = arith.constant 32 : index
    %c0_128 = arith.constant 0 : index
    %159 = vector.load %arg10[%c32_127, %c0_128] : memref<96x256xbf16, #tpu.memory_space<vmem>>, vector<32x256xbf16>
    tpu.vector_store %arg10[%c32_127, %c0_128], %158 {strides = array<i32>} : memref<96x256xbf16, #tpu.memory_space<vmem>>, vector<32x256xbf16>,
    %c0_129 = arith.constant 0 : index
    %c129_130 = arith.constant 129 : index
    %160 = vector.load %arg9[%c0_129, %c129_130] : memref<32x401xbf16, #tpu.memory_space<vmem>>, vector<32x256xbf16>
    %cst_131 = arith.constant 0.000000e+00 : bf16
    %161 = vector.broadcast %cst_131 : bf16 to vector<32x256xbf16>
    %162 = arith.select %24, %160, %161 : vector<32x256xi1>, vector<32x256xbf16>
    %c64_132 = arith.constant 64 : index
    %c0_133 = arith.constant 0 : index
    %163 = vector.load %arg10[%c64_132, %c0_133] : memref<96x256xbf16, #tpu.memory_space<vmem>>, vector<32x256xbf16>
    tpu.vector_store %arg10[%c64_132, %c0_133], %162 {strides = array<i32>} : memref<96x256xbf16, #tpu.memory_space<vmem>>, vector<32x256xbf16>,
    %c0_134 = arith.constant 0 : index
    %c0_135 = arith.constant 0 : index
    %164 = vector.load %arg10[%c0_134, %c0_135] : memref<96x256xbf16, #tpu.memory_space<vmem>>, vector<96x256xbf16>
    %165 = vector.extract_strided_slice %137 {offsets = [1, 0, 0], sizes = [1, 32, 96], strides = [1, 1, 1]} : vector<3x32x96xbf16> to vector<1x32x96xbf16>
    %166 = vector.shape_cast %165 : vector<1x32x96xbf16> to vector<32x96xbf16>
    %cst_136 = arith.constant dense<0.000000e+00> : vector<32x256xf32>
    %167 = tpu.matmul %166, %164, %cst_136 {dimension_numbers = #tpu.dot_dimension_numbers<[1], [0], [0], [1], [0, 0, 1, 1], [], []>} : vector<32x96xbf16>, vector<96x256xbf16>, vector<32x256xf32> -> vector<32x256xf32>
    %168 = arith.addf %153, %167 : vector<32x256xf32>
    %c0_137 = arith.constant 0 : index
    %c143_138 = arith.constant 143 : index
    %169 = vector.load %arg9[%c0_137, %c143_138] : memref<32x401xbf16, #tpu.memory_space<vmem>>, vector<32x256xbf16>
    %cst_139 = arith.constant 0.000000e+00 : bf16
    %170 = vector.broadcast %cst_139 : bf16 to vector<32x256xbf16>
    %171 = arith.select %20, %169, %170 : vector<32x256xi1>, vector<32x256xbf16>
    %c0_140 = arith.constant 0 : index
    %c0_141 = arith.constant 0 : index
    %172 = vector.load %arg10[%c0_140, %c0_141] : memref<96x256xbf16, #tpu.memory_space<vmem>>, vector<32x256xbf16>
    tpu.vector_store %arg10[%c0_140, %c0_141], %171 {strides = array<i32>} : memref<96x256xbf16, #tpu.memory_space<vmem>>, vector<32x256xbf16>,
    %c0_142 = arith.constant 0 : index
    %c144_143 = arith.constant 144 : index
    %173 = vector.load %arg9[%c0_142, %c144_143] : memref<32x401xbf16, #tpu.memory_space<vmem>>, vector<32x256xbf16>
    %c32_144 = arith.constant 32 : index
    %c0_145 = arith.constant 0 : index
    %174 = vector.load %arg10[%c32_144, %c0_145] : memref<96x256xbf16, #tpu.memory_space<vmem>>, vector<32x256xbf16>
    tpu.vector_store %arg10[%c32_144, %c0_145], %173 {strides = array<i32>} : memref<96x256xbf16, #tpu.memory_space<vmem>>, vector<32x256xbf16>,
    %c0_146 = arith.constant 0 : index
    %c145_147 = arith.constant 145 : index
    %175 = vector.load %arg9[%c0_146, %c145_147] : memref<32x401xbf16, #tpu.memory_space<vmem>>, vector<32x256xbf16>
    %cst_148 = arith.constant 0.000000e+00 : bf16
    %176 = vector.broadcast %cst_148 : bf16 to vector<32x256xbf16>
    %177 = arith.select %24, %175, %176 : vector<32x256xi1>, vector<32x256xbf16>
    %c64_149 = arith.constant 64 : index
    %c0_150 = arith.constant 0 : index
    %178 = vector.load %arg10[%c64_149, %c0_150] : memref<96x256xbf16, #tpu.memory_space<vmem>>, vector<32x256xbf16>
    tpu.vector_store %arg10[%c64_149, %c0_150], %177 {strides = array<i32>} : memref<96x256xbf16, #tpu.memory_space<vmem>>, vector<32x256xbf16>,
    %c0_151 = arith.constant 0 : index
    %c0_152 = arith.constant 0 : index
    %179 = vector.load %arg10[%c0_151, %c0_152] : memref<96x256xbf16, #tpu.memory_space<vmem>>, vector<96x256xbf16>
    %180 = vector.extract_strided_slice %137 {offsets = [2, 0, 0], sizes = [1, 32, 96], strides = [1, 1, 1]} : vector<3x32x96xbf16> to vector<1x32x96xbf16>
    %181 = vector.shape_cast %180 : vector<1x32x96xbf16> to vector<32x96xbf16>
    %cst_153 = arith.constant dense<0.000000e+00> : vector<32x256xf32>
    %182 = tpu.matmul %181, %179, %cst_153 {dimension_numbers = #tpu.dot_dimension_numbers<[1], [0], [0], [1], [0, 0, 1, 1], [], []>} : vector<32x96xbf16>, vector<96x256xbf16>, vector<32x256xf32> -> vector<32x256xf32>
    %183 = arith.addf %168, %182 : vector<32x256xf32>
    %184 = vector.broadcast %139 : vector<32x1xf32> to vector<32x256xf32>
    %185 = arith.addf %183, %184 : vector<32x256xf32>
    %cst_154 = arith.constant 0.000000e+00 : f32
    %186 = vector.broadcast %cst_154 : f32 to vector<32x256xf32>
    %187 = arith.maximumf %185, %186 : vector<32x256xf32>
    %188 = arith.truncf %187 : vector<32x256xf32> to vector<32x256xbf16>
    %c0_155 = arith.constant 0 : index
    %c128_156 = arith.constant 128 : index
    %189 = vector.load %arg9[%c0_155, %c128_156] : memref<32x401xbf16, #tpu.memory_space<vmem>>, vector<32x256xbf16>
    tpu.vector_store %arg9[%c0_155, %c128_156], %188 {strides = array<i32>} : memref<32x401xbf16, #tpu.memory_space<vmem>>, vector<32x256xbf16>,
    %c2 = arith.constant 2 : index
    %c0_157 = arith.constant 0 : index
    %c0_158 = arith.constant 0 : index
    %c0_159 = arith.constant 0 : index
    %190 = vector.load %arg4[%c2, %c0_157, %c0_158, %c0_159] : memref<3x3x32x96xbf16, #tpu.memory_space<vmem>>, vector<1x3x32x96xbf16>
    %191 = vector.shape_cast %190 : vector<1x3x32x96xbf16> to vector<3x32x96xbf16>
    %c2_160 = arith.constant 2 : index
    %c0_161 = arith.constant 0 : index
    %c0_162 = arith.constant 0 : index
    %192 = vector.load %arg5[%c2_160, %c0_161, %c0_162] : memref<3x32x1xf32, #tpu.memory_space<vmem>>, vector<1x32x1xf32>
    %193 = vector.shape_cast %192 : vector<1x32x1xf32> to vector<32x1xf32>
    %c0_163 = arith.constant 0 : index
    %c111_164 = arith.constant 111 : index
    %194 = vector.load %arg9[%c0_163, %c111_164] : memref<32x401xbf16, #tpu.memory_space<vmem>>, vector<32x256xbf16>
    %cst_165 = arith.constant 0.000000e+00 : bf16
    %195 = vector.broadcast %cst_165 : bf16 to vector<32x256xbf16>
    %196 = arith.select %20, %194, %195 : vector<32x256xi1>, vector<32x256xbf16>
    %c0_166 = arith.constant 0 : index
    %c0_167 = arith.constant 0 : index
    %197 = vector.load %arg10[%c0_166, %c0_167] : memref<96x256xbf16, #tpu.memory_space<vmem>>, vector<32x256xbf16>
    tpu.vector_store %arg10[%c0_166, %c0_167], %196 {strides = array<i32>} : memref<96x256xbf16, #tpu.memory_space<vmem>>, vector<32x256xbf16>,
    %c0_168 = arith.constant 0 : index
    %c112_169 = arith.constant 112 : index
    %198 = vector.load %arg9[%c0_168, %c112_169] : memref<32x401xbf16, #tpu.memory_space<vmem>>, vector<32x256xbf16>
    %c32_170 = arith.constant 32 : index
    %c0_171 = arith.constant 0 : index
    %199 = vector.load %arg10[%c32_170, %c0_171] : memref<96x256xbf16, #tpu.memory_space<vmem>>, vector<32x256xbf16>
    tpu.vector_store %arg10[%c32_170, %c0_171], %198 {strides = array<i32>} : memref<96x256xbf16, #tpu.memory_space<vmem>>, vector<32x256xbf16>,
    %c0_172 = arith.constant 0 : index
    %c113_173 = arith.constant 113 : index
    %200 = vector.load %arg9[%c0_172, %c113_173] : memref<32x401xbf16, #tpu.memory_space<vmem>>, vector<32x256xbf16>
    %cst_174 = arith.constant 0.000000e+00 : bf16
    %201 = vector.broadcast %cst_174 : bf16 to vector<32x256xbf16>
    %202 = arith.select %24, %200, %201 : vector<32x256xi1>, vector<32x256xbf16>
    %c64_175 = arith.constant 64 : index
    %c0_176 = arith.constant 0 : index
    %203 = vector.load %arg10[%c64_175, %c0_176] : memref<96x256xbf16, #tpu.memory_space<vmem>>, vector<32x256xbf16>
    tpu.vector_store %arg10[%c64_175, %c0_176], %202 {strides = array<i32>} : memref<96x256xbf16, #tpu.memory_space<vmem>>, vector<32x256xbf16>,
    %c0_177 = arith.constant 0 : index
    %c0_178 = arith.constant 0 : index
    %204 = vector.load %arg10[%c0_177, %c0_178] : memref<96x256xbf16, #tpu.memory_space<vmem>>, vector<96x256xbf16>
    %205 = vector.extract_strided_slice %191 {offsets = [0, 0, 0], sizes = [1, 32, 96], strides = [1, 1, 1]} : vector<3x32x96xbf16> to vector<1x32x96xbf16>
    %206 = vector.shape_cast %205 : vector<1x32x96xbf16> to vector<32x96xbf16>
    %cst_179 = arith.constant dense<0.000000e+00> : vector<32x256xf32>
    %207 = tpu.matmul %206, %204, %cst_179 {dimension_numbers = #tpu.dot_dimension_numbers<[1], [0], [0], [1], [0, 0, 1, 1], [], []>} : vector<32x96xbf16>, vector<96x256xbf16>, vector<32x256xf32> -> vector<32x256xf32>
    %c0_180 = arith.constant 0 : index
    %c127_181 = arith.constant 127 : index
    %208 = vector.load %arg9[%c0_180, %c127_181] : memref<32x401xbf16, #tpu.memory_space<vmem>>, vector<32x256xbf16>
    %cst_182 = arith.constant 0.000000e+00 : bf16
    %209 = vector.broadcast %cst_182 : bf16 to vector<32x256xbf16>
    %210 = arith.select %20, %208, %209 : vector<32x256xi1>, vector<32x256xbf16>
    %c0_183 = arith.constant 0 : index
    %c0_184 = arith.constant 0 : index
    %211 = vector.load %arg10[%c0_183, %c0_184] : memref<96x256xbf16, #tpu.memory_space<vmem>>, vector<32x256xbf16>
    tpu.vector_store %arg10[%c0_183, %c0_184], %210 {strides = array<i32>} : memref<96x256xbf16, #tpu.memory_space<vmem>>, vector<32x256xbf16>,
    %c0_185 = arith.constant 0 : index
    %c128_186 = arith.constant 128 : index
    %212 = vector.load %arg9[%c0_185, %c128_186] : memref<32x401xbf16, #tpu.memory_space<vmem>>, vector<32x256xbf16>
    %c32_187 = arith.constant 32 : index
    %c0_188 = arith.constant 0 : index
    %213 = vector.load %arg10[%c32_187, %c0_188] : memref<96x256xbf16, #tpu.memory_space<vmem>>, vector<32x256xbf16>
    tpu.vector_store %arg10[%c32_187, %c0_188], %212 {strides = array<i32>} : memref<96x256xbf16, #tpu.memory_space<vmem>>, vector<32x256xbf16>,
    %c0_189 = arith.constant 0 : index
    %c129_190 = arith.constant 129 : index
    %214 = vector.load %arg9[%c0_189, %c129_190] : memref<32x401xbf16, #tpu.memory_space<vmem>>, vector<32x256xbf16>
    %cst_191 = arith.constant 0.000000e+00 : bf16
    %215 = vector.broadcast %cst_191 : bf16 to vector<32x256xbf16>
    %216 = arith.select %24, %214, %215 : vector<32x256xi1>, vector<32x256xbf16>
    %c64_192 = arith.constant 64 : index
    %c0_193 = arith.constant 0 : index
    %217 = vector.load %arg10[%c64_192, %c0_193] : memref<96x256xbf16, #tpu.memory_space<vmem>>, vector<32x256xbf16>
    tpu.vector_store %arg10[%c64_192, %c0_193], %216 {strides = array<i32>} : memref<96x256xbf16, #tpu.memory_space<vmem>>, vector<32x256xbf16>,
    %c0_194 = arith.constant 0 : index
    %c0_195 = arith.constant 0 : index
    %218 = vector.load %arg10[%c0_194, %c0_195] : memref<96x256xbf16, #tpu.memory_space<vmem>>, vector<96x256xbf16>
    %219 = vector.extract_strided_slice %191 {offsets = [1, 0, 0], sizes = [1, 32, 96], strides = [1, 1, 1]} : vector<3x32x96xbf16> to vector<1x32x96xbf16>
    %220 = vector.shape_cast %219 : vector<1x32x96xbf16> to vector<32x96xbf16>
    %cst_196 = arith.constant dense<0.000000e+00> : vector<32x256xf32>
    %221 = tpu.matmul %220, %218, %cst_196 {dimension_numbers = #tpu.dot_dimension_numbers<[1], [0], [0], [1], [0, 0, 1, 1], [], []>} : vector<32x96xbf16>, vector<96x256xbf16>, vector<32x256xf32> -> vector<32x256xf32>
    %222 = arith.addf %207, %221 : vector<32x256xf32>
    %c0_197 = arith.constant 0 : index
    %c143_198 = arith.constant 143 : index
    %223 = vector.load %arg9[%c0_197, %c143_198] : memref<32x401xbf16, #tpu.memory_space<vmem>>, vector<32x256xbf16>
    %cst_199 = arith.constant 0.000000e+00 : bf16
    %224 = vector.broadcast %cst_199 : bf16 to vector<32x256xbf16>
    %225 = arith.select %20, %223, %224 : vector<32x256xi1>, vector<32x256xbf16>
    %c0_200 = arith.constant 0 : index
    %c0_201 = arith.constant 0 : index
    %226 = vector.load %arg10[%c0_200, %c0_201] : memref<96x256xbf16, #tpu.memory_space<vmem>>, vector<32x256xbf16>
    tpu.vector_store %arg10[%c0_200, %c0_201], %225 {strides = array<i32>} : memref<96x256xbf16, #tpu.memory_space<vmem>>, vector<32x256xbf16>,
    %c0_202 = arith.constant 0 : index
    %c144_203 = arith.constant 144 : index
    %227 = vector.load %arg9[%c0_202, %c144_203] : memref<32x401xbf16, #tpu.memory_space<vmem>>, vector<32x256xbf16>
    %c32_204 = arith.constant 32 : index
    %c0_205 = arith.constant 0 : index
    %228 = vector.load %arg10[%c32_204, %c0_205] : memref<96x256xbf16, #tpu.memory_space<vmem>>, vector<32x256xbf16>
    tpu.vector_store %arg10[%c32_204, %c0_205], %227 {strides = array<i32>} : memref<96x256xbf16, #tpu.memory_space<vmem>>, vector<32x256xbf16>,
    %c0_206 = arith.constant 0 : index
    %c145_207 = arith.constant 145 : index
    %229 = vector.load %arg9[%c0_206, %c145_207] : memref<32x401xbf16, #tpu.memory_space<vmem>>, vector<32x256xbf16>
    %cst_208 = arith.constant 0.000000e+00 : bf16
    %230 = vector.broadcast %cst_208 : bf16 to vector<32x256xbf16>
    %231 = arith.select %24, %229, %230 : vector<32x256xi1>, vector<32x256xbf16>
    %c64_209 = arith.constant 64 : index
    %c0_210 = arith.constant 0 : index
    %232 = vector.load %arg10[%c64_209, %c0_210] : memref<96x256xbf16, #tpu.memory_space<vmem>>, vector<32x256xbf16>
    tpu.vector_store %arg10[%c64_209, %c0_210], %231 {strides = array<i32>} : memref<96x256xbf16, #tpu.memory_space<vmem>>, vector<32x256xbf16>,
    %c0_211 = arith.constant 0 : index
    %c0_212 = arith.constant 0 : index
    %233 = vector.load %arg10[%c0_211, %c0_212] : memref<96x256xbf16, #tpu.memory_space<vmem>>, vector<96x256xbf16>
    %234 = vector.extract_strided_slice %191 {offsets = [2, 0, 0], sizes = [1, 32, 96], strides = [1, 1, 1]} : vector<3x32x96xbf16> to vector<1x32x96xbf16>
    %235 = vector.shape_cast %234 : vector<1x32x96xbf16> to vector<32x96xbf16>
    %cst_213 = arith.constant dense<0.000000e+00> : vector<32x256xf32>
    %236 = tpu.matmul %235, %233, %cst_213 {dimension_numbers = #tpu.dot_dimension_numbers<[1], [0], [0], [1], [0, 0, 1, 1], [], []>} : vector<32x96xbf16>, vector<96x256xbf16>, vector<32x256xf32> -> vector<32x256xf32>
    %237 = arith.addf %222, %236 : vector<32x256xf32>
    %238 = vector.broadcast %193 : vector<32x1xf32> to vector<32x256xf32>
    %239 = arith.addf %237, %238 : vector<32x256xf32>
    %cst_214 = arith.constant 0.000000e+00 : f32
    %240 = vector.broadcast %cst_214 : f32 to vector<32x256xf32>
    %241 = arith.maximumf %239, %240 : vector<32x256xf32>
    %242 = arith.truncf %241 : vector<32x256xf32> to vector<32x256xbf16>
    %c0_215 = arith.constant 0 : index
    %c128_216 = arith.constant 128 : index
    %243 = vector.load %arg9[%c0_215, %c128_216] : memref<32x401xbf16, #tpu.memory_space<vmem>>, vector<32x256xbf16>
    tpu.vector_store %arg9[%c0_215, %c128_216], %242 {strides = array<i32>} : memref<32x401xbf16, #tpu.memory_space<vmem>>, vector<32x256xbf16>,
    %c0_217 = arith.constant 0 : index
    %c0_218 = arith.constant 0 : index
    %c0_219 = arith.constant 0 : index
    %244 = vector.load %arg6[%c0_217, %c0_218, %c0_219] : memref<3x2x96xbf16, #tpu.memory_space<vmem>>, vector<3x2x96xbf16>
    %c0_220 = arith.constant 0 : index
    %c0_221 = arith.constant 0 : index
    %245 = vector.load %arg7[%c0_220, %c0_221] : memref<2x1xf32, #tpu.memory_space<vmem>>, vector<2x1xf32>
    %c0_222 = arith.constant 0 : index
    %c111_223 = arith.constant 111 : index
    %246 = vector.load %arg9[%c0_222, %c111_223] : memref<32x401xbf16, #tpu.memory_space<vmem>>, vector<32x256xbf16>
    %cst_224 = arith.constant 0.000000e+00 : bf16
    %247 = vector.broadcast %cst_224 : bf16 to vector<32x256xbf16>
    %248 = arith.select %20, %246, %247 : vector<32x256xi1>, vector<32x256xbf16>
    %c0_225 = arith.constant 0 : index
    %c0_226 = arith.constant 0 : index
    %249 = vector.load %arg10[%c0_225, %c0_226] : memref<96x256xbf16, #tpu.memory_space<vmem>>, vector<32x256xbf16>
    tpu.vector_store %arg10[%c0_225, %c0_226], %248 {strides = array<i32>} : memref<96x256xbf16, #tpu.memory_space<vmem>>, vector<32x256xbf16>,
    %c0_227 = arith.constant 0 : index
    %c112_228 = arith.constant 112 : index
    %250 = vector.load %arg9[%c0_227, %c112_228] : memref<32x401xbf16, #tpu.memory_space<vmem>>, vector<32x256xbf16>
    %c32_229 = arith.constant 32 : index
    %c0_230 = arith.constant 0 : index
    %251 = vector.load %arg10[%c32_229, %c0_230] : memref<96x256xbf16, #tpu.memory_space<vmem>>, vector<32x256xbf16>
    tpu.vector_store %arg10[%c32_229, %c0_230], %250 {strides = array<i32>} : memref<96x256xbf16, #tpu.memory_space<vmem>>, vector<32x256xbf16>,
    %c0_231 = arith.constant 0 : index
    %c113_232 = arith.constant 113 : index
    %252 = vector.load %arg9[%c0_231, %c113_232] : memref<32x401xbf16, #tpu.memory_space<vmem>>, vector<32x256xbf16>
    %cst_233 = arith.constant 0.000000e+00 : bf16
    %253 = vector.broadcast %cst_233 : bf16 to vector<32x256xbf16>
    %254 = arith.select %24, %252, %253 : vector<32x256xi1>, vector<32x256xbf16>
    %c64_234 = arith.constant 64 : index
    %c0_235 = arith.constant 0 : index
    %255 = vector.load %arg10[%c64_234, %c0_235] : memref<96x256xbf16, #tpu.memory_space<vmem>>, vector<32x256xbf16>
    tpu.vector_store %arg10[%c64_234, %c0_235], %254 {strides = array<i32>} : memref<96x256xbf16, #tpu.memory_space<vmem>>, vector<32x256xbf16>,
    %c0_236 = arith.constant 0 : index
    %c0_237 = arith.constant 0 : index
    %256 = vector.load %arg10[%c0_236, %c0_237] : memref<96x256xbf16, #tpu.memory_space<vmem>>, vector<96x256xbf16>
    %257 = vector.extract_strided_slice %244 {offsets = [0, 0, 0], sizes = [1, 2, 96], strides = [1, 1, 1]} : vector<3x2x96xbf16> to vector<1x2x96xbf16>
    %258 = vector.shape_cast %257 : vector<1x2x96xbf16> to vector<2x96xbf16>
    %cst_238 = arith.constant dense<0.000000e+00> : vector<2x256xf32>
    %259 = tpu.matmul %258, %256, %cst_238 {dimension_numbers = #tpu.dot_dimension_numbers<[1], [0], [0], [1], [0, 0, 1, 1], [], []>} : vector<2x96xbf16>, vector<96x256xbf16>, vector<2x256xf32> -> vector<2x256xf32>
    %c0_239 = arith.constant 0 : index
    %c127_240 = arith.constant 127 : index
    %260 = vector.load %arg9[%c0_239, %c127_240] : memref<32x401xbf16, #tpu.memory_space<vmem>>, vector<32x256xbf16>
    %cst_241 = arith.constant 0.000000e+00 : bf16
    %261 = vector.broadcast %cst_241 : bf16 to vector<32x256xbf16>
    %262 = arith.select %20, %260, %261 : vector<32x256xi1>, vector<32x256xbf16>
    %c0_242 = arith.constant 0 : index
    %c0_243 = arith.constant 0 : index
    %263 = vector.load %arg10[%c0_242, %c0_243] : memref<96x256xbf16, #tpu.memory_space<vmem>>, vector<32x256xbf16>
    tpu.vector_store %arg10[%c0_242, %c0_243], %262 {strides = array<i32>} : memref<96x256xbf16, #tpu.memory_space<vmem>>, vector<32x256xbf16>,
    %c0_244 = arith.constant 0 : index
    %c128_245 = arith.constant 128 : index
    %264 = vector.load %arg9[%c0_244, %c128_245] : memref<32x401xbf16, #tpu.memory_space<vmem>>, vector<32x256xbf16>
    %c32_246 = arith.constant 32 : index
    %c0_247 = arith.constant 0 : index
    %265 = vector.load %arg10[%c32_246, %c0_247] : memref<96x256xbf16, #tpu.memory_space<vmem>>, vector<32x256xbf16>
    tpu.vector_store %arg10[%c32_246, %c0_247], %264 {strides = array<i32>} : memref<96x256xbf16, #tpu.memory_space<vmem>>, vector<32x256xbf16>,
    %c0_248 = arith.constant 0 : index
    %c129_249 = arith.constant 129 : index
    %266 = vector.load %arg9[%c0_248, %c129_249] : memref<32x401xbf16, #tpu.memory_space<vmem>>, vector<32x256xbf16>
    %cst_250 = arith.constant 0.000000e+00 : bf16
    %267 = vector.broadcast %cst_250 : bf16 to vector<32x256xbf16>
    %268 = arith.select %24, %266, %267 : vector<32x256xi1>, vector<32x256xbf16>
    %c64_251 = arith.constant 64 : index
    %c0_252 = arith.constant 0 : index
    %269 = vector.load %arg10[%c64_251, %c0_252] : memref<96x256xbf16, #tpu.memory_space<vmem>>, vector<32x256xbf16>
    tpu.vector_store %arg10[%c64_251, %c0_252], %268 {strides = array<i32>} : memref<96x256xbf16, #tpu.memory_space<vmem>>, vector<32x256xbf16>,
    %c0_253 = arith.constant 0 : index
    %c0_254 = arith.constant 0 : index
    %270 = vector.load %arg10[%c0_253, %c0_254] : memref<96x256xbf16, #tpu.memory_space<vmem>>, vector<96x256xbf16>
    %271 = vector.extract_strided_slice %244 {offsets = [1, 0, 0], sizes = [1, 2, 96], strides = [1, 1, 1]} : vector<3x2x96xbf16> to vector<1x2x96xbf16>
    %272 = vector.shape_cast %271 : vector<1x2x96xbf16> to vector<2x96xbf16>
    %cst_255 = arith.constant dense<0.000000e+00> : vector<2x256xf32>
    %273 = tpu.matmul %272, %270, %cst_255 {dimension_numbers = #tpu.dot_dimension_numbers<[1], [0], [0], [1], [0, 0, 1, 1], [], []>} : vector<2x96xbf16>, vector<96x256xbf16>, vector<2x256xf32> -> vector<2x256xf32>
    %274 = arith.addf %259, %273 : vector<2x256xf32>
    %c0_256 = arith.constant 0 : index
    %c143_257 = arith.constant 143 : index
    %275 = vector.load %arg9[%c0_256, %c143_257] : memref<32x401xbf16, #tpu.memory_space<vmem>>, vector<32x256xbf16>
    %cst_258 = arith.constant 0.000000e+00 : bf16
    %276 = vector.broadcast %cst_258 : bf16 to vector<32x256xbf16>
    %277 = arith.select %20, %275, %276 : vector<32x256xi1>, vector<32x256xbf16>
    %c0_259 = arith.constant 0 : index
    %c0_260 = arith.constant 0 : index
    %278 = vector.load %arg10[%c0_259, %c0_260] : memref<96x256xbf16, #tpu.memory_space<vmem>>, vector<32x256xbf16>
    tpu.vector_store %arg10[%c0_259, %c0_260], %277 {strides = array<i32>} : memref<96x256xbf16, #tpu.memory_space<vmem>>, vector<32x256xbf16>,
    %c0_261 = arith.constant 0 : index
    %c144_262 = arith.constant 144 : index
    %279 = vector.load %arg9[%c0_261, %c144_262] : memref<32x401xbf16, #tpu.memory_space<vmem>>, vector<32x256xbf16>
    %c32_263 = arith.constant 32 : index
    %c0_264 = arith.constant 0 : index
    %280 = vector.load %arg10[%c32_263, %c0_264] : memref<96x256xbf16, #tpu.memory_space<vmem>>, vector<32x256xbf16>
    tpu.vector_store %arg10[%c32_263, %c0_264], %279 {strides = array<i32>} : memref<96x256xbf16, #tpu.memory_space<vmem>>, vector<32x256xbf16>,
    %c0_265 = arith.constant 0 : index
    %c145_266 = arith.constant 145 : index
    %281 = vector.load %arg9[%c0_265, %c145_266] : memref<32x401xbf16, #tpu.memory_space<vmem>>, vector<32x256xbf16>
    %cst_267 = arith.constant 0.000000e+00 : bf16
    %282 = vector.broadcast %cst_267 : bf16 to vector<32x256xbf16>
    %283 = arith.select %24, %281, %282 : vector<32x256xi1>, vector<32x256xbf16>
    %c64_268 = arith.constant 64 : index
    %c0_269 = arith.constant 0 : index
    %284 = vector.load %arg10[%c64_268, %c0_269] : memref<96x256xbf16, #tpu.memory_space<vmem>>, vector<32x256xbf16>
    tpu.vector_store %arg10[%c64_268, %c0_269], %283 {strides = array<i32>} : memref<96x256xbf16, #tpu.memory_space<vmem>>, vector<32x256xbf16>,
    %c0_270 = arith.constant 0 : index
    %c0_271 = arith.constant 0 : index
    %285 = vector.load %arg10[%c0_270, %c0_271] : memref<96x256xbf16, #tpu.memory_space<vmem>>, vector<96x256xbf16>
    %286 = vector.extract_strided_slice %244 {offsets = [2, 0, 0], sizes = [1, 2, 96], strides = [1, 1, 1]} : vector<3x2x96xbf16> to vector<1x2x96xbf16>
    %287 = vector.shape_cast %286 : vector<1x2x96xbf16> to vector<2x96xbf16>
    %cst_272 = arith.constant dense<0.000000e+00> : vector<2x256xf32>
    %288 = tpu.matmul %287, %285, %cst_272 {dimension_numbers = #tpu.dot_dimension_numbers<[1], [0], [0], [1], [0, 0, 1, 1], [], []>} : vector<2x96xbf16>, vector<96x256xbf16>, vector<2x256xf32> -> vector<2x256xf32>
    %289 = arith.addf %274, %288 : vector<2x256xf32>
    %290 = vector.broadcast %245 : vector<2x1xf32> to vector<2x256xf32>
    %291 = arith.addf %289, %290 : vector<2x256xf32>
    %292 = arith.addf %291, %30 : vector<2x256xf32>
    %c0_273 = arith.constant 0 : index
    %c0_274 = arith.constant 0 : index
    %c0_275 = arith.constant 0 : index
    %293 = vector.load %arg8[%c0_273, %c0_274, %c0_275] : memref<1x2x256xf32, #tpu.memory_space<vmem>>, vector<1x2x256xf32>
    %294 = vector.shape_cast %293 : vector<1x2x256xf32> to vector<2x256xf32>
    %295 = vector.shape_cast %292 : vector<2x256xf32> to vector<1x2x256xf32>
    tpu.vector_store %arg8[%c0_273, %c0_274, %c0_275], %295 {strides = array<i32>} : memref<1x2x256xf32, #tpu.memory_space<vmem>>, vector<1x2x256xf32>,
    return
  }
  func.func @transform_0(%arg0: i32) -> (i32, i32, i32) {
    %c0_i32 = arith.constant 0 : i32
    %c0_i32_0 = arith.constant 0 : i32
    %c0_i32_1 = arith.constant 0 : i32
    return %arg0, %c0_i32, %c0_i32_0 : i32, i32, i32
  }
  func.func @transform_1(%arg0: i32) -> (i32, i32, i32) {
    %c0_i32 = arith.constant 0 : i32
    %c0_i32_0 = arith.constant 0 : i32
    %c0_i32_1 = arith.constant 0 : i32
    %c0_i32_2 = arith.constant 0 : i32
    return %c0_i32, %c0_i32_0, %c0_i32_1 : i32, i32, i32
  }
  func.func @transform_2(%arg0: i32) -> (i32, i32) {
    %c0_i32 = arith.constant 0 : i32
    %c0_i32_0 = arith.constant 0 : i32
    %c0_i32_1 = arith.constant 0 : i32
    return %c0_i32, %c0_i32_0 : i32, i32
  }
  func.func @transform_3(%arg0: i32) -> (i32, i32, i32, i32) {
    %c0_i32 = arith.constant 0 : i32
    %c0_i32_0 = arith.constant 0 : i32
    %c0_i32_1 = arith.constant 0 : i32
    %c0_i32_2 = arith.constant 0 : i32
    %c0_i32_3 = arith.constant 0 : i32
    return %c0_i32, %c0_i32_0, %c0_i32_1, %c0_i32_2 : i32, i32, i32, i32
  }
  func.func @transform_4(%arg0: i32) -> (i32, i32, i32) {
    %c0_i32 = arith.constant 0 : i32
    %c0_i32_0 = arith.constant 0 : i32
    %c0_i32_1 = arith.constant 0 : i32
    %c0_i32_2 = arith.constant 0 : i32
    return %c0_i32, %c0_i32_0, %c0_i32_1 : i32, i32, i32
  }
  func.func @transform_5(%arg0: i32) -> (i32, i32, i32) {
    %c0_i32 = arith.constant 0 : i32
    %c0_i32_0 = arith.constant 0 : i32
    %c0_i32_1 = arith.constant 0 : i32
    %c0_i32_2 = arith.constant 0 : i32
    return %c0_i32, %c0_i32_0, %c0_i32_1 : i32, i32, i32
  }
  func.func @transform_6(%arg0: i32) -> (i32, i32) {
    %c0_i32 = arith.constant 0 : i32
    %c0_i32_0 = arith.constant 0 : i32
    %c0_i32_1 = arith.constant 0 : i32
    return %c0_i32, %c0_i32_0 : i32, i32
  }
  func.func @transform_7(%arg0: i32) -> (i32, i32, i32) {
    %c0_i32 = arith.constant 0 : i32
    %c0_i32_0 = arith.constant 0 : i32
    %c0_i32_1 = arith.constant 0 : i32
    return %arg0, %c0_i32, %c0_i32_0 : i32, i32, i32
  }
}

module attributes {stable_mosaic.version = 11 : i64} {
  func.func @_dc_combine_kernel(%arg0: i32, %arg1: i32, %arg2: memref<1x2x256xf32, #tpu.memory_space<vmem>>, %arg3: memref<1x2x256xf32, #tpu.memory_space<vmem>>, %arg4: memref<1x1x256xf32, #tpu.memory_space<vmem>>, %arg5: memref<1x2x256xf32, #tpu.memory_space<vmem>>) attributes {dimension_semantics = [#tpu.dimension_semantics<parallel>, #tpu.dimension_semantics<parallel>], iteration_bounds = array<i64: 2, 1>, scalar_prefetch = 0 : i64, scratch_operands = 0 : i64, tpu.core_type = #tpu.core_type<tc>, window_params = [{transform_indices = @transform_0, window_bounds = array<i64: 1, 2, 256>}, {transform_indices = @transform_1, window_bounds = array<i64: 1, 2, 256>}, {transform_indices = @transform_2, window_bounds = array<i64: 1, 1, 256>}, {transform_indices = @transform_3, window_bounds = array<i64: 1, 2, 256>}]} {
    %c0 = arith.constant 0 : index
    %c0_0 = arith.constant 0 : index
    %c0_1 = arith.constant 0 : index
    %0 = vector.load %arg2[%c0, %c0_0, %c0_1] : memref<1x2x256xf32, #tpu.memory_space<vmem>>, vector<1x2x256xf32>
    %c0_2 = arith.constant 0 : index
    %c0_3 = arith.constant 0 : index
    %c0_4 = arith.constant 0 : index
    %1 = vector.load %arg3[%c0_2, %c0_3, %c0_4] : memref<1x2x256xf32, #tpu.memory_space<vmem>>, vector<1x2x256xf32>
    %c0_5 = arith.constant 0 : index
    %c0_6 = arith.constant 0 : index
    %c0_7 = arith.constant 0 : index
    %2 = vector.load %arg4[%c0_5, %c0_6, %c0_7] : memref<1x1x256xf32, #tpu.memory_space<vmem>>, vector<1x1x256xf32>
    %3 = arith.subf %1, %0 : vector<1x2x256xf32>
    %4 = vector.broadcast %2 : vector<1x1x256xf32> to vector<1x2x256xf32>
    %5 = arith.mulf %4, %3 : vector<1x2x256xf32>
    %6 = arith.addf %0, %5 : vector<1x2x256xf32>
    %c0_8 = arith.constant 0 : index
    %c0_9 = arith.constant 0 : index
    %c0_10 = arith.constant 0 : index
    %7 = vector.load %arg5[%c0_8, %c0_9, %c0_10] : memref<1x2x256xf32, #tpu.memory_space<vmem>>, vector<1x2x256xf32>
    tpu.vector_store %arg5[%c0_8, %c0_9, %c0_10], %6 {strides = array<i32>} : memref<1x2x256xf32, #tpu.memory_space<vmem>>, vector<1x2x256xf32>,
    return
  }
  func.func @transform_0(%arg0: i32, %arg1: i32) -> (i32, i32, i32) {
    %c0_i32 = arith.constant 0 : i32
    %c0_i32_0 = arith.constant 0 : i32
    return %arg0, %c0_i32, %arg1 : i32, i32, i32
  }
  func.func @transform_1(%arg0: i32, %arg1: i32) -> (i32, i32, i32) {
    %c0_i32 = arith.constant 0 : i32
    %c0_i32_0 = arith.constant 0 : i32
    return %arg0, %c0_i32, %arg1 : i32, i32, i32
  }
  func.func @transform_2(%arg0: i32, %arg1: i32) -> (i32, i32, i32) {
    %c0_i32 = arith.constant 0 : i32
    %c0_i32_0 = arith.constant 0 : i32
    return %arg0, %c0_i32, %arg1 : i32, i32, i32
  }
  func.func @transform_3(%arg0: i32, %arg1: i32) -> (i32, i32, i32) {
    %c0_i32 = arith.constant 0 : i32
    %c0_i32_0 = arith.constant 0 : i32
    return %arg0, %c0_i32, %arg1 : i32, i32, i32
  }
}

</mosaic_0001>

<llo_original>
// kernel: dc_cnn_forward.11
$region0: #{dc_cnn_forward.11}
  #allocation0 [shape = 'u32[]', space=smem, size = 0x4, offset = 0x4, fixed_abs, tag = 'smem constant byte address 0x4 - core index']
  #allocation1 [shape = 'u32[144,128]{1,0:T(1,128)}', space=vmem, size = 0x12000, scoped, tag = 'internal scratch']
  %s0 = inlined_call_operand.vmem [shape: f32[2,2,256], index: 0, kind: input, shape index: {}]
  %s1 = inlined_call_operand.vmem [shape: f32[2,2,256], index: 1, kind: input, shape index: {}]
  %s2 = inlined_call_operand.vmem [shape: f32[2,1,256], index: 2, kind: input, shape index: {}]
  %s3 = inlined_call_operand.vmem [shape: f32[2,2,256], index: 3, kind: output, shape index: {}]
  %s4 = sld [smem:[#allocation0]]
  $region45: #{dc_cnn_forward.11} parent=0
    _
  %s6 = ssub.s32 1, %s4
  %s7 = scalar_select 0, %s6, %s4
  loop: start=0, step=1, limit=4
  $region2: #{dc_cnn_forward.11} parent=0 // loop_pre_header
    _
  $region3: #{dc_cnn_forward.11} parent=0 // loop_header
    %s9 = sphi 0, %s13
    %p10 = scmp.ge.s32.totalorder %s9, 4
    %s16 = sphi 0, %s28
    %s17 = sphi 0, %s24
    %s18 = sphi 0, %s16
    %s19 = sphi 0, %s17
    %s20 = sphi 0, %s18
    %s21 = sphi 0, %s19
    %s33 = sphi 0, %s35
    %s36 = sphi 0, %s33
    %s37 = sphi 0, %s36
    %s53 = sphi 0, %s37
    %s61 = sphi 0, %s63
    %s64 = sphi 0, %s61
    %s65 = sphi 0, %s64
    %s81 = sphi 0, %s65
    %s89 = sphi 0, %s91
    %s92 = sphi 0, %s89
    %s93 = sphi 0, %s92
    %s109 = sphi 0, %s93
    %s117 = sphi 0, %s119
    %s120 = sphi 0, %s117
    %s121 = sphi 0, %s120
    %s137 = sphi 0, %s121
  $region4: #{dc_cnn_forward.11} parent=0 // loop_header_branch
    %12 = sbr.rel (%p10) target = $region8
  $region5: #{dc_cnn_forward.11} parent=0 // loop_body
    %s14 = ssub.s32 %s9, 1
    %s15 = ssub.s32 %s9, 2
    %s22 = sadd.s32 1, %s17
    %p23 = scmp.ge.s32.totalorder %s22, 1
    %s24 = scalar_select %p23, 0, %s22
    %s25 = sadd.s32 1, %s16
    %s26 = scalar_select %p23, %s25, %s16
    %p27 = scmp.ge.s32.totalorder %s26, 2
    %s28 = scalar_select %p27, 0, %s26
    %s29 = ssub.s32 %s16, %s28
    %s30 = ssub.s32 %s17, %s24
    %s31 = sor.u32 %s29, %s30
    %p32 = scmp.eq.s32.totalorder %s31, 0
    %s34 = sadd.s32 %s33, 1
    %s35 = scalar_select %p32, %s33, %s34
    %p38 = pneg %p32
    %p39 = scmp.eq.s32.totalorder %s9, 1
    %p40 = por %p38, %p39
    %p41 = scmp.ne.s32.totalorder %s33, %s36
    %p42 = scmp.eq.s32.totalorder %s9, 0
    %p43 = por %p41, %p42
    %p44 = scmp.ne.s32.totalorder %s33, %s36
    %p45 = scmp.eq.s32.totalorder %s14, 1
    %p46 = por %p44, %p45
    %p47 = scmp.ne.s32.totalorder %s36, %s37
    %p48 = scmp.eq.s32.totalorder %s14, 0
    %p49 = por %p47, %p48
    %p50 = scmp.ne.s32.totalorder %s36, %s37
    %p51 = scmp.eq.s32.totalorder %s15, 1
    %p52 = por %p50, %p51
    %p54 = scmp.ne.s32.totalorder %s37, %s53
    %p55 = scmp.eq.s32.totalorder %s15, 0
    %p56 = por %p54, %p55
    %s57 = ssub.s32 %s16, %s28
    %s58 = ssub.s32 %s17, %s24
    %s59 = sor.u32 %s57, %s58
    %p60 = scmp.eq.s32.totalorder %s59, 0
    %s62 = sadd.s32 %s61, 1
    %s63 = scalar_select %p60, %s61, %s62
    %p66 = pneg %p60
    %p67 = scmp.eq.s32.totalorder %s9, 1
    %p68 = por %p66, %p67
    %p69 = scmp.ne.s32.totalorder %s61, %s64
    %p70 = scmp.eq.s32.totalorder %s9, 0
    %p71 = por %p69, %p70
    %p72 = scmp.ne.s32.totalorder %s61, %s64
    %p73 = scmp.eq.s32.totalorder %s14, 1
    %p74 = por %p72, %p73
    %p75 = scmp.ne.s32.totalorder %s64, %s65
    %p76 = scmp.eq.s32.totalorder %s14, 0
    %p77 = por %p75, %p76
    %p78 = scmp.ne.s32.totalorder %s64, %s65
    %p79 = scmp.eq.s32.totalorder %s15, 1
    %p80 = por %p78, %p79
    %p82 = scmp.ne.s32.totalorder %s65, %s81
    %p83 = scmp.eq.s32.totalorder %s15, 0
    %p84 = por %p82, %p83
    %s85 = ssub.s32 %s16, %s28
    %s86 = ssub.s32 %s17, %s24
    %s87 = sor.u32 %s85, %s86
    %p88 = scmp.eq.s32.totalorder %s87, 0
    %s90 = sadd.s32 %s89, 1
    %s91 = scalar_select %p88, %s89, %s90
    %p94 = pneg %p88
    %p95 = scmp.eq.s32.totalorder %s9, 1
    %p96 = por %p94, %p95
    %p97 = scmp.ne.s32.totalorder %s89, %s92
    %p98 = scmp.eq.s32.totalorder %s9, 0
    %p99 = por %p97, %p98
    %p100 = scmp.ne.s32.totalorder %s89, %s92
    %p101 = scmp.eq.s32.totalorder %s14, 1
    %p102 = por %p100, %p101
    %p103 = scmp.ne.s32.totalorder %s92, %s93
    %p104 = scmp.eq.s32.totalorder %s14, 0
    %p105 = por %p103, %p104
    %p106 = scmp.ne.s32.totalorder %s92, %s93
    %p107 = scmp.eq.s32.totalorder %s15, 1
    %p108 = por %p106, %p107
    %p110 = scmp.ne.s32.totalorder %s93, %s109
    %p111 = scmp.eq.s32.totalorder %s15, 0
    %p112 = por %p110, %p111
    %s113 = ssub.s32 %s16, %s28
    %s114 = ssub.s32 %s17, %s24
    %s115 = sor.u32 %s113, %s114
    %p116 = scmp.eq.s32.totalorder %s115, 0
    %s118 = sadd.s32 %s117, 1
    %s119 = scalar_select %p116, %s117, %s118
    %p122 = pneg %p116
    %p123 = scmp.eq.s32.totalorder %s9, 1
    %p124 = por %p122, %p123
    %p125 = scmp.ne.s32.totalorder %s117, %s120
    %p126 = scmp.eq.s32.totalorder %s9, 0
    %p127 = por %p125, %p126
    %p128 = scmp.ne.s32.totalorder %s117, %s120
    %p129 = scmp.eq.s32.totalorder %s14, 1
    %p130 = por %p128, %p129
    %p131 = scmp.ne.s32.totalorder %s120, %s121
    %p132 = scmp.eq.s32.totalorder %s14, 0
    %p133 = por %p131, %p132
    %p134 = scmp.ne.s32.totalorder %s120, %s121
    %p135 = scmp.eq.s32.totalorder %s15, 1
    %p136 = por %p134, %p135
    %p138 = scmp.ne.s32.totalorder %s121, %s137
    %p139 = scmp.eq.s32.totalorder %s15, 0
    %p140 = por %p138, %p139
    %p141 = scmp.le.s32.totalorder 1, %s9
    %p142 = scmp.lt.s32.totalorder %s9, 3
    %p143 = pnand %p141, %p142
    %p144 = pneg %p143
    // Predicated region
    $region9: #{dc_cnn_forward.11} parent=5 // pred_check
      _
    $region10: #{dc_cnn_forward.11} parent=5 // pred_check_branch
      %146 = sbr.rel (%p143) target = $region12
    $region11: #{dc_cnn_forward.11} parent=5 // pred_region
      %s147 = ssub.s32 %s9, 1
    $region12: #{dc_cnn_forward.11} parent=5 // pred_fallthru
      _
    %p148 = scmp.lt.s32.totalorder %s9, 2
    // Predicated region
    $region13: #{dc_cnn_forward.11} parent=5 // pred_check
      %p149 = pneg %p148
    $region14: #{dc_cnn_forward.11} parent=5 // pred_check_branch
      %151 = sbr.rel (%p149) target = $region16
    $region15: #{dc_cnn_forward.11} parent=5 // pred_region
      // Predicated region
      $region17: #{dc_cnn_forward.11} parent=15 // pred_check
        %p152 = pneg %p43
      $region18: #{dc_cnn_forward.11} parent=15 // pred_check_branch
        %154 = sbr.rel (%p152) target = $region20
      $region19: #{dc_cnn_forward.11} parent=15 // pred_region
        %s155 = smul.u32 2, %s17
        %p156 = scmp.lt.s32.totalorder %s16, 1
        %s157 = scalar_select %p156, %s16, 1
        %p158 = scmp.lt.s32.totalorder %s155, 1
        %s159 = scalar_select %p158, %s155, 1
        %s160 = smul.addr %s157, 2
        %s161 = sadd.s32 %s159, %s160
        %s162 = smul.addr %s161, 2
        %s163 = scalar_lea.vmem %s0, %s162
        %s164 = smul.u32 2, %s17
      $region20: #{dc_cnn_forward.11} parent=15 // pred_fallthru
        _
      // Predicated region
      $region21: #{dc_cnn_forward.11} parent=15 // pred_check
        %p165 = pneg %p71
      $region22: #{dc_cnn_forward.11} parent=15 // pred_check_branch
        %167 = sbr.rel (%p165) target = $region24
      $region23: #{dc_cnn_forward.11} parent=15 // pred_region
        %s168 = smul.u32 2, %s17
        %p169 = scmp.lt.s32.totalorder %s16, 1
        %s170 = scalar_select %p169, %s16, 1
        %p171 = scmp.lt.s32.totalorder %s168, 1
        %s172 = scalar_select %p171, %s168, 1
        %s173 = smul.addr %s170, 2
        %s174 = sadd.s32 %s172, %s173
        %s175 = smul.addr %s174, 2
        %s176 = scalar_lea.vmem %s1, %s175
        %s177 = smul.u32 2, %s17
      $region24: #{dc_cnn_forward.11} parent=15 // pred_fallthru
        _
      // Predicated region
      $region25: #{dc_cnn_forward.11} parent=15 // pred_check
        %p178 = pneg %p99
      $region26: #{dc_cnn_forward.11} parent=15 // pred_check_branch
        %180 = sbr.rel (%p178) target = $region28
      $region27: #{dc_cnn_forward.11} parent=15 // pred_region
        %s181 = smul.u32 2, %s17
        %p182 = scmp.lt.s32.totalorder %s16, 1
        %s183 = scalar_select %p182, %s16, 1
        %p184 = scmp.lt.s32.totalorder %s181, 1
        %s185 = scalar_select %p184, %s181, 1
        %s186 = smul.addr %s183, 2
        %s187 = sadd.s32 %s185, %s186
        %s188 = scalar_lea.vmem %s2, %s187
        %s189 = smul.u32 2, %s17
      $region28: #{dc_cnn_forward.11} parent=15 // pred_fallthru
        _
    $region16: #{dc_cnn_forward.11} parent=5 // pred_fallthru
      _
    %p190 = scmp.le.s32.totalorder 1, %s9
    %p191 = scmp.lt.s32.totalorder %s9, 3
    %p192 = pnand %p190, %p191
    %p193 = pneg %p192
    // Predicated region
    $region29: #{dc_cnn_forward.11} parent=5 // pred_check
      _
    $region30: #{dc_cnn_forward.11} parent=5 // pred_check_branch
      %195 = sbr.rel (%p192) target = $region32
    $region31: #{dc_cnn_forward.11} parent=5 // pred_region
      %s196 = ssub.s32 %s9, 1
      %s197 = smul.u32 2, %s19
      %p198 = scmp.lt.s32.totalorder %s18, 1
      %s199 = scalar_select %p198, %s18, 1
      %p200 = scmp.lt.s32.totalorder %s197, 1
      %s201 = scalar_select %p200, %s197, 1
      %s202 = smul.addr %s199, 2
      %s203 = sadd.s32 %s201, %s202
      %s204 = smul.addr %s203, 2
      %s205 = scalar_lea.vmem %s0, %s204
      %p206 = pneg %p49
      %p207 = pneg %p46
      %s208 = smul.u32 2, %s19
      %p209 = scmp.lt.s32.totalorder %s18, 1
      %s210 = scalar_select %p209, %s18, 1
      %p211 = scmp.lt.s32.totalorder %s208, 1
      %s212 = scalar_select %p211, %s208, 1
      %s213 = smul.addr %s210, 2
      %s214 = sadd.s32 %s212, %s213
      %s215 = smul.addr %s214, 2
      %s216 = scalar_lea.vmem %s1, %s215
      %p217 = pneg %p77
      %p218 = pneg %p74
      %s219 = smul.u32 2, %s19
      %p220 = scmp.lt.s32.totalorder %s18, 1
      %s221 = scalar_select %p220, %s18, 1
      %p222 = scmp.lt.s32.totalorder %s219, 1
      %s223 = scalar_select %p222, %s219, 1
      %s224 = smul.addr %s221, 2
      %s225 = sadd.s32 %s223, %s224
      %s226 = scalar_lea.vmem %s2, %s225
      %p227 = pneg %p105
      %p228 = pneg %p102
      %p229 = pneg %p133
      %p230 = pneg %p130
      %s231 = smul.u32 2, %s19
      %p232 = scmp.lt.s32.totalorder %s18, 1
      %s233 = scalar_select %p232, %s18, 1
      %p234 = scmp.lt.s32.totalorder %s231, 1
      %s235 = scalar_select %p234, %s231, 1
      %s236 = smul.addr %s233, 2
      %s237 = sadd.s32 %s235, %s236
      %s238 = smul.addr %s237, 2
      %s239 = scalar_lea.vmem %s3, %s238
      %s240 = smul.u32 2, %s19
      %p241 = scmp.lt.s32.totalorder %s18, 1
      %s242 = scalar_select %p241, %s18, 1
      %p243 = scmp.lt.s32.totalorder %s240, 1
      %s244 = scalar_select %p243, %s240, 1
      %s245 = smul.addr %s242, 2
      %s246 = sadd.s32 %s244, %s245
      %s247 = smul.addr %s246, 2
      %s248 = scalar_lea.vmem %s0, %s247
      %s249 = smul.u32 2, %s19
      %s250 = smul.u32 2, %s19
      %p251 = scmp.lt.s32.totalorder %s18, 1
      %s252 = scalar_select %p251, %s18, 1
      %p253 = scmp.lt.s32.totalorder %s250, 1
      %s254 = scalar_select %p253, %s250, 1
      %s255 = smul.addr %s252, 2
      %s256 = sadd.s32 %s254, %s255
      %s257 = smul.addr %s256, 2
      %s258 = scalar_lea.vmem %s1, %s257
      %s259 = smul.u32 2, %s19
      %s260 = smul.u32 2, %s19
      %p261 = scmp.lt.s32.totalorder %s18, 1
      %s262 = scalar_select %p261, %s18, 1
      %p263 = scmp.lt.s32.totalorder %s260, 1
      %s264 = scalar_select %p263, %s260, 1
      %s265 = smul.addr %s262, 2
      %s266 = sadd.s32 %s264, %s265
      %s267 = scalar_lea.vmem %s2, %s266
      %s268 = smul.u32 2, %s19
      %s269 = smul.u32 2, %s19
      %p270 = scmp.lt.s32.totalorder %s18, 1
      %s271 = scalar_select %p270, %s18, 1
      %p272 = scmp.lt.s32.totalorder %s269, 1
      %s273 = scalar_select %p272, %s269, 1
      %s274 = smul.addr %s271, 2
      %s275 = sadd.s32 %s273, %s274
      %s276 = smul.addr %s275, 2
      %s277 = scalar_lea.vmem %s3, %s276
      %s278 = smul.u32 2, %s19
      %v279 = vld [vmem:[%s248] sm:$0xf]
      %v280 = vld [vmem:[%s258] sm:$0xf]
      %v281 = vld [vmem:[%s267] sm:$0x3]
      %v282 = vsub.f32 %v280, %v279
      %v284 = vlaneseq
      %v285 = vshrl.u32 %v284, 7
      %v286 = vsub.s32 0, %v285
      %v287 = vrot.slane %v281, %v286
      %v288 = vlaneseq
      %v289 = vshrl.u32 %v288, 7
      %v290 = vsub.s32 1, %v289
      %v291 = vrot.slane %v281, %v290
      %v296 = vunpack.c.l.s4 1983009808
      %v297 = vunpack.c.0.s8 %v296
      %v298 = vlaneseq
      %v299 = vshrl.u32 %v298, 7
      %v300 = vsub.s32 %v297, %v299
      %v301 = vrot.slane %v282, %v300
      %v302 = vcombine.high %v301, %v301
      %v305 = vmul.f32 %v287, %v301
      %v306 = vmul.f32 %v291, %v302
      %v309 = vcombine.low %v305, %v306
      %v311 = vunpack.c.l.s4 1983009808
      %v312 = vunpack.c.0.s8 %v311
      %v313 = vlaneseq
      %v314 = vshrl.u32 %v313, 7
      %v315 = vsub.s32 %v312, %v314
      %v316 = vrot.slane %v309, %v315
      %v318 = vadd.f32 %v279, %v316
      %319 = vst [vmem:[%s277] sm:$0xf] %v318
      %s320 = smul.u32 2, %s19
      %p321 = scmp.lt.s32.totalorder %s18, 1
      %s322 = scalar_select %p321, %s18, 1
      %p323 = scmp.lt.s32.totalorder %s320, 1
      %s324 = scalar_select %p323, %s320, 1
      %s325 = smul.addr %s322, 2
      %s326 = sadd.s32 %s324, %s325
      %s327 = smul.addr %s326, 2
      %s328 = scalar_lea.vmem %s3, %s327
      // Predicated region
      $region33: #{dc_cnn_forward.11} parent=31 // pred_check
        %p329 = pneg %p130
      $region34: #{dc_cnn_forward.11} parent=31 // pred_check_branch
        %331 = sbr.rel (%p329) target = $region36
      $region35: #{dc_cnn_forward.11} parent=31 // pred_region
        %s332 = smul.u32 2, %s19
      $region36: #{dc_cnn_forward.11} parent=31 // pred_fallthru
        _
    $region32: #{dc_cnn_forward.11} parent=5 // pred_fallthru
      _
    %p333 = scmp.le.s32.totalorder 2, %s9
    // Predicated region
    $region37: #{dc_cnn_forward.11} parent=5 // pred_check
      %p334 = pneg %p333
    $region38: #{dc_cnn_forward.11} parent=5 // pred_check_branch
      %336 = sbr.rel (%p334) target = $region40
    $region39: #{dc_cnn_forward.11} parent=5 // pred_region
      %s337 = ssub.s32 %s9, 2
      // Predicated region
      $region41: #{dc_cnn_forward.11} parent=39 // pred_check
        %p338 = pneg %p136
      $region42: #{dc_cnn_forward.11} parent=39 // pred_check_branch
        %340 = sbr.rel (%p338) target = $region44
      $region43: #{dc_cnn_forward.11} parent=39 // pred_region
        %s341 = smul.u32 2, %s21
        %p342 = scmp.lt.s32.totalorder %s20, 1
        %s343 = scalar_select %p342, %s20, 1
        %p344 = scmp.lt.s32.totalorder %s341, 1
        %s345 = scalar_select %p344, %s341, 1
        %s346 = smul.addr %s343, 2
        %s347 = sadd.s32 %s345, %s346
        %s348 = smul.addr %s347, 2
        %s349 = scalar_lea.vmem %s3, %s348
      $region44: #{dc_cnn_forward.11} parent=39 // pred_fallthru
        _
    $region40: #{dc_cnn_forward.11} parent=5 // pred_fallthru
      _
  $region6: #{dc_cnn_forward.11} parent=0 // loop_footer
    %s13 = sadd.s32 1, %s9
  $region7: #{dc_cnn_forward.11} parent=0 // loop_footer_branch
    %8 = sbr.rel target = $region3
  $region8: #{dc_cnn_forward.11} parent=0 // loop_exit
    _

// kernel: dc_cnn_forward.10
$region0: #{dc_cnn_forward.10}
  #allocation0 [shape = 'u32[]', space=smem, size = 0x4, offset = 0x4, fixed_abs, tag = 'smem constant byte address 0x4 - core index']
  #allocation1 [shape = 'u32[144,128]{1,0:T(1,128)}', space=vmem, size = 0x12000, scoped, tag = 'internal scratch']
  #allocation2 [shape = 'bf16[32,401]{1,0:T(8,128)(2,1)}', space=vmem, size = 0x8000, scoped, tag = 'scratch operand']
  #allocation3 [shape = 'bf16[96,256]{1,0:T(8,128)(2,1)}', space=vmem, size = 0xc000, scoped, tag = 'scratch operand']
  %s0 = inlined_call_operand.vmem [shape: f32[2,2,256], index: 0, kind: input, shape index: {}]
  %s1 = inlined_call_operand.vmem [shape: bf16[3,32,6], index: 1, kind: input, shape index: {}]
  %s2 = inlined_call_operand.vmem [shape: f32[32,1], index: 2, kind: input, shape index: {}]
  %s3 = inlined_call_operand.vmem [shape: bf16[3,3,32,96], index: 3, kind: input, shape index: {}]
  %s4 = inlined_call_operand.vmem [shape: f32[3,32,1], index: 4, kind: input, shape index: {}]
  %s5 = inlined_call_operand.vmem [shape: bf16[3,2,96], index: 5, kind: input, shape index: {}]
  %s6 = inlined_call_operand.vmem [shape: f32[2,1], index: 6, kind: input, shape index: {}]
  %s7 = inlined_call_operand.vmem [shape: f32[2,2,256], index: 7, kind: output, shape index: {}]
  %s8 = sld [smem:[#allocation0]]
  $region61: #{dc_cnn_forward.10} parent=0
    _
  %s10 = ssub.s32 1, %s8
  %s11 = scalar_select 0, %s10, %s8
  loop: start=0, step=1, limit=4
  $region2: #{dc_cnn_forward.10} parent=0 // loop_pre_header
    _
  $region3: #{dc_cnn_forward.10} parent=0 // loop_header
    %s13 = sphi 0, %s17
    %p14 = scmp.ge.s32.totalorder %s13, 4
    %s23 = sphi 0, %s25
    %s26 = sphi 0, %s23
    %s27 = sphi 0, %s26
    %s43 = sphi 0, %s27
    %s47 = sphi 0, %s47
    %s49 = sphi 0, %s47
    %s50 = sphi 0, %s49
    %s64 = sphi 0, %s50
    %s68 = sphi 0, %s68
    %s70 = sphi 0, %s68
    %s71 = sphi 0, %s70
    %s85 = sphi 0, %s71
    %s89 = sphi 0, %s89
    %s91 = sphi 0, %s89
    %s92 = sphi 0, %s91
    %s106 = sphi 0, %s92
    %s110 = sphi 0, %s110
    %s112 = sphi 0, %s110
    %s113 = sphi 0, %s112
    %s127 = sphi 0, %s113
    %s131 = sphi 0, %s131
    %s133 = sphi 0, %s131
    %s134 = sphi 0, %s133
    %s148 = sphi 0, %s134
    %s152 = sphi 0, %s152
    %s154 = sphi 0, %s152
    %s155 = sphi 0, %s154
    %s169 = sphi 0, %s155
    %s175 = sphi 0, %s177
    %s178 = sphi 0, %s175
    %s179 = sphi 0, %s178
    %s195 = sphi 0, %s179
  $region4: #{dc_cnn_forward.10} parent=0 // loop_header_branch
    %16 = sbr.rel (%p14) target = $region8
  $region5: #{dc_cnn_forward.10} parent=0 // loop_body
    %s18 = ssub.s32 %s13, 1
    %s19 = ssub.s32 %s13, 2
    %s20 = sadd.s32 %s13, 1
    %s21 = ssub.s32 %s13, %s20
    %p22 = scmp.eq.s32.totalorder %s21, 0
    %s24 = sadd.s32 %s23, 1
    %s25 = scalar_select %p22, %s23, %s24
    %p28 = pneg %p22
    %p29 = scmp.eq.s32.totalorder %s13, 1
    %p30 = por %p28, %p29
    %p31 = scmp.ne.s32.totalorder %s23, %s26
    %p32 = scmp.eq.s32.totalorder %s13, 0
    %p33 = por %p31, %p32
    %p34 = scmp.ne.s32.totalorder %s23, %s26
    %p35 = scmp.eq.s32.totalorder %s18, 1
    %p36 = por %p34, %p35
    %p37 = scmp.ne.s32.totalorder %s26, %s27
    %p38 = scmp.eq.s32.totalorder %s18, 0
    %p39 = por %p37, %p38
    %p40 = scmp.ne.s32.totalorder %s26, %s27
    %p41 = scmp.eq.s32.totalorder %s19, 1
    %p42 = por %p40, %p41
    %p44 = scmp.ne.s32.totalorder %s27, %s43
    %p45 = scmp.eq.s32.totalorder %s19, 0
    %p46 = por %p44, %p45
    %s48 = sadd.s32 %s47, 1
    %p51 = scmp.eq.s32.totalorder %s13, 1
    %p52 = scmp.ne.s32.totalorder %s47, %s49
    %p53 = scmp.eq.s32.totalorder %s13, 0
    %p54 = por %p52, %p53
    %p55 = scmp.ne.s32.totalorder %s47, %s49
    %p56 = scmp.eq.s32.totalorder %s18, 1
    %p57 = por %p55, %p56
    %p58 = scmp.ne.s32.totalorder %s49, %s50
    %p59 = scmp.eq.s32.totalorder %s18, 0
    %p60 = por %p58, %p59
    %p61 = scmp.ne.s32.totalorder %s49, %s50
    %p62 = scmp.eq.s32.totalorder %s19, 1
    %p63 = por %p61, %p62
    %p65 = scmp.ne.s32.totalorder %s50, %s64
    %p66 = scmp.eq.s32.totalorder %s19, 0
    %p67 = por %p65, %p66
    %s69 = sadd.s32 %s68, 1
    %p72 = scmp.eq.s32.totalorder %s13, 1
    %p73 = scmp.ne.s32.totalorder %s68, %s70
    %p74 = scmp.eq.s32.totalorder %s13, 0
    %p75 = por %p73, %p74
    %p76 = scmp.ne.s32.totalorder %s68, %s70
    %p77 = scmp.eq.s32.totalorder %s18, 1
    %p78 = por %p76, %p77
    %p79 = scmp.ne.s32.totalorder %s70, %s71
    %p80 = scmp.eq.s32.totalorder %s18, 0
    %p81 = por %p79, %p80
    %p82 = scmp.ne.s32.totalorder %s70, %s71
    %p83 = scmp.eq.s32.totalorder %s19, 1
    %p84 = por %p82, %p83
    %p86 = scmp.ne.s32.totalorder %s71, %s85
    %p87 = scmp.eq.s32.totalorder %s19, 0
    %p88 = por %p86, %p87
    %s90 = sadd.s32 %s89, 1
    %p93 = scmp.eq.s32.totalorder %s13, 1
    %p94 = scmp.ne.s32.totalorder %s89, %s91
    %p95 = scmp.eq.s32.totalorder %s13, 0
    %p96 = por %p94, %p95
    %p97 = scmp.ne.s32.totalorder %s89, %s91
    %p98 = scmp.eq.s32.totalorder %s18, 1
    %p99 = por %p97, %p98
    %p100 = scmp.ne.s32.totalorder %s91, %s92
    %p101 = scmp.eq.s32.totalorder %s18, 0
    %p102 = por %p100, %p101
    %p103 = scmp.ne.s32.totalorder %s91, %s92
    %p104 = scmp.eq.s32.totalorder %s19, 1
    %p105 = por %p103, %p104
    %p107 = scmp.ne.s32.totalorder %s92, %s106
    %p108 = scmp.eq.s32.totalorder %s19, 0
    %p109 = por %p107, %p108
    %s111 = sadd.s32 %s110, 1
    %p114 = scmp.eq.s32.totalorder %s13, 1
    %p115 = scmp.ne.s32.totalorder %s110, %s112
    %p116 = scmp.eq.s32.totalorder %s13, 0
    %p117 = por %p115, %p116
    %p118 = scmp.ne.s32.totalorder %s110, %s112
    %p119 = scmp.eq.s32.totalorder %s18, 1
    %p120 = por %p118, %p119
    %p121 = scmp.ne.s32.totalorder %s112, %s113
    %p122 = scmp.eq.s32.totalorder %s18, 0
    %p123 = por %p121, %p122
    %p124 = scmp.ne.s32.totalorder %s112, %s113
    %p125 = scmp.eq.s32.totalorder %s19, 1
    %p126 = por %p124, %p125
    %p128 = scmp.ne.s32.totalorder %s113, %s127
    %p129 = scmp.eq.s32.totalorder %s19, 0
    %p130 = por %p128, %p129
    %s132 = sadd.s32 %s131, 1
    %p135 = scmp.eq.s32.totalorder %s13, 1
    %p136 = scmp.ne.s32.totalorder %s131, %s133
    %p137 = scmp.eq.s32.totalorder %s13, 0
    %p138 = por %p136, %p137
    %p139 = scmp.ne.s32.totalorder %s131, %s133
    %p140 = scmp.eq.s32.totalorder %s18, 1
    %p141 = por %p139, %p140
    %p142 = scmp.ne.s32.totalorder %s133, %s134
    %p143 = scmp.eq.s32.totalorder %s18, 0
    %p144 = por %p142, %p143
    %p145 = scmp.ne.s32.totalorder %s133, %s134
    %p146 = scmp.eq.s32.totalorder %s19, 1
    %p147 = por %p145, %p146
    %p149 = scmp.ne.s32.totalorder %s134, %s148
    %p150 = scmp.eq.s32.totalorder %s19, 0
    %p151 = por %p149, %p150
    %s153 = sadd.s32 %s152, 1
    %p156 = scmp.eq.s32.totalorder %s13, 1
    %p157 = scmp.ne.s32.totalorder %s152, %s154
    %p158 = scmp.eq.s32.totalorder %s13, 0
    %p159 = por %p157, %p158
    %p160 = scmp.ne.s32.totalorder %s152, %s154
    %p161 = scmp.eq.s32.totalorder %s18, 1
    %p162 = por %p160, %p161
    %p163 = scmp.ne.s32.totalorder %s154, %s155
    %p164 = scmp.eq.s32.totalorder %s18, 0
    %p165 = por %p163, %p164
    %p166 = scmp.ne.s32.totalorder %s154, %s155
    %p167 = scmp.eq.s32.totalorder %s19, 1
    %p168 = por %p166, %p167
    %p170 = scmp.ne.s32.totalorder %s155, %s169
    %p171 = scmp.eq.s32.totalorder %s19, 0
    %p172 = por %p170, %p171
    %s173 = ssub.s32 %s13, %s20
    %p174 = scmp.eq.s32.totalorder %s173, 0
    %s176 = sadd.s32 %s175, 1
    %s177 = scalar_select %p174, %s175, %s176
    %p180 = pneg %p174
    %p181 = scmp.eq.s32.totalorder %s13, 1
    %p182 = por %p180, %p181
    %p183 = scmp.ne.s32.totalorder %s175, %s178
    %p184 = scmp.eq.s32.totalorder %s13, 0
    %p185 = por %p183, %p184
    %p186 = scmp.ne.s32.totalorder %s175, %s178
    %p187 = scmp.eq.s32.totalorder %s18, 1
    %p188 = por %p186, %p187
    %p189 = scmp.ne.s32.totalorder %s178, %s179
    %p190 = scmp.eq.s32.totalorder %s18, 0
    %p191 = por %p189, %p190
    %p192 = scmp.ne.s32.totalorder %s178, %s179
    %p193 = scmp.eq.s32.totalorder %s19, 1
    %p194 = por %p192, %p193
    %p196 = scmp.ne.s32.totalorder %s179, %s195
    %p197 = scmp.eq.s32.totalorder %s19, 0
    %p198 = por %p196, %p197
    %p199 = scmp.le.s32.totalorder 1, %s13
    %p200 = scmp.lt.s32.totalorder %s13, 3
    %p201 = pnand %p199, %p200
    %p202 = pneg %p201
    // Predicated region
    $region9: #{dc_cnn_forward.10} parent=5 // pred_check
      _
    $region10: #{dc_cnn_forward.10} parent=5 // pred_check_branch
      %204 = sbr.rel (%p201) target = $region12
    $region11: #{dc_cnn_forward.10} parent=5 // pred_region
      %s205 = ssub.s32 %s13, 1
      // Predicated region
      $region13: #{dc_cnn_forward.10} parent=11 // pred_check
        %p206 = pneg %p60
      $region14: #{dc_cnn_forward.10} parent=11 // pred_check_branch
        %208 = sbr.rel (%p206) target = $region16
      $region15: #{dc_cnn_forward.10} parent=11 // pred_region
        _
      $region16: #{dc_cnn_forward.10} parent=11 // pred_fallthru
        _
      // Predicated region
      $region17: #{dc_cnn_forward.10} parent=11 // pred_check
        %p209 = pneg %p81
      $region18: #{dc_cnn_forward.10} parent=11 // pred_check_branch
        %211 = sbr.rel (%p209) target = $region20
      $region19: #{dc_cnn_forward.10} parent=11 // pred_region
        _
      $region20: #{dc_cnn_forward.10} parent=11 // pred_fallthru
        _
      // Predicated region
      $region21: #{dc_cnn_forward.10} parent=11 // pred_check
        %p212 = pneg %p102
      $region22: #{dc_cnn_forward.10} parent=11 // pred_check_branch
        %214 = sbr.rel (%p212) target = $region24
      $region23: #{dc_cnn_forward.10} parent=11 // pred_region
        _
      $region24: #{dc_cnn_forward.10} parent=11 // pred_fallthru
        _
      // Predicated region
      $region25: #{dc_cnn_forward.10} parent=11 // pred_check
        %p215 = pneg %p123
      $region26: #{dc_cnn_forward.10} parent=11 // pred_check_branch
        %217 = sbr.rel (%p215) target = $region28
      $region27: #{dc_cnn_forward.10} parent=11 // pred_region
        _
      $region28: #{dc_cnn_forward.10} parent=11 // pred_fallthru
        _
      // Predicated region
      $region29: #{dc_cnn_forward.10} parent=11 // pred_check
        %p218 = pneg %p144
      $region30: #{dc_cnn_forward.10} parent=11 // pred_check_branch
        %220 = sbr.rel (%p218) target = $region32
      $region31: #{dc_cnn_forward.10} parent=11 // pred_region
        _
      $region32: #{dc_cnn_forward.10} parent=11 // pred_fallthru
        _
      // Predicated region
      $region33: #{dc_cnn_forward.10} parent=11 // pred_check
        %p221 = pneg %p165
      $region34: #{dc_cnn_forward.10} parent=11 // pred_check_branch
        %223 = sbr.rel (%p221) target = $region36
      $region35: #{dc_cnn_forward.10} parent=11 // pred_region
        _
      $region36: #{dc_cnn_forward.10} parent=11 // pred_fallthru
        _
    $region12: #{dc_cnn_forward.10} parent=5 // pred_fallthru
      _
    %p224 = scmp.lt.s32.totalorder %s13, 2
    // Predicated region
    $region37: #{dc_cnn_forward.10} parent=5 // pred_check
      %p225 = pneg %p224
    $region38: #{dc_cnn_forward.10} parent=5 // pred_check_branch
      %227 = sbr.rel (%p225) target = $region40
    $region39: #{dc_cnn_forward.10} parent=5 // pred_region
      // Predicated region
      $region41: #{dc_cnn_forward.10} parent=39 // pred_check
        %p228 = pneg %p33
      $region42: #{dc_cnn_forward.10} parent=39 // pred_check_branch
        %230 = sbr.rel (%p228) target = $region44
      $region43: #{dc_cnn_forward.10} parent=39 // pred_region
        %p231 = scmp.lt.s32.totalorder %s13, 1
        %s232 = scalar_select %p231, %s13, 1
        %s233 = smul.addr %s232, 2
        %s234 = smul.addr %s233, 2
        %s235 = scalar_lea.vmem %s0, %s234
      $region44: #{dc_cnn_forward.10} parent=39 // pred_fallthru
        _
    $region40: #{dc_cnn_forward.10} parent=5 // pred_fallthru
      _
    %p236 = scmp.le.s32.totalorder 1, %s13
    %p237 = scmp.lt.s32.totalorder %s13, 3
    %p238 = pnand %p236, %p237
    %p239 = pneg %p238
    // Predicated region
    $region45: #{dc_cnn_forward.10} parent=5 // pred_check
      _
    $region46: #{dc_cnn_forward.10} parent=5 // pred_check_branch
      %241 = sbr.rel (%p238) target = $region48
    $region47: #{dc_cnn_forward.10} parent=5 // pred_region
      %s242 = ssub.s32 %s13, 1
      %p243 = scmp.lt.s32.totalorder %s18, 1
      %s244 = scalar_select %p243, %s18, 1
      %s245 = smul.addr %s244, 2
      %s246 = smul.addr %s245, 2
      %s247 = scalar_lea.vmem %s0, %s246
      %p248 = pneg %p39
      %p249 = pneg %p36
      %p250 = pneg %p60
      %p251 = pneg %p57
      %p252 = pneg %p81
      %p253 = pneg %p78
      %p254 = pneg %p102
      %p255 = pneg %p99
      %p256 = pneg %p123
      %p257 = pneg %p120
      %p258 = pneg %p144
      %p259 = pneg %p141
      %p260 = pneg %p165
      %p261 = pneg %p162
      %p262 = pneg %p191
      %p263 = pneg %p188
      %p264 = scmp.lt.s32.totalorder %s18, 1
      %s265 = scalar_select %p264, %s18, 1
      %s266 = smul.addr %s265, 2
      %s267 = smul.addr %s266, 2
      %s268 = scalar_lea.vmem %s7, %s267
      %p269 = scmp.lt.s32.totalorder %s18, 1
      %s270 = scalar_select %p269, %s18, 1
      %s271 = smul.addr %s270, 2
      %s272 = smul.addr %s271, 2
      %s273 = scalar_lea.vmem %s0, %s272
      %p274 = scmp.lt.s32.totalorder %s18, 1
      %s275 = scalar_select %p274, %s18, 1
      %s276 = smul.addr %s275, 2
      %s277 = smul.addr %s276, 2
      %s278 = scalar_lea.vmem %s7, %s277
      %v282 = vlaneseq
      %v283 = vand.u32 %v282, 127
      %v284 = vadd.s32 %v283, 128
      %vm285 = vcmp.lt.s32.totalorder %v283, 0
      %v286 = vsub.s32 0, %v283
      %v287 = vsel %vm285, %v286, %v283
      %v288 = vshrl.u32 %v287, 4
      %v289 = vand.u32 %v287, 15
      %v290 = vsub.s32 0, %v289
      %v291 = vsel %vm285, %v290, %v289
      %vm292 = vcmp.lt.s32.totalorder %v284, 0
      %v293 = vsub.s32 0, %v284
      %v294 = vsel %vm292, %v293, %v284
      %v295 = vshrl.u32 %v294, 4
      %v296 = vand.u32 %v294, 15
      %v297 = vsub.s32 0, %v296
      %v298 = vsel %vm292, %v297, %v296
      %vm299 = vcmp.ne.s32.totalorder %v291, 0
      %vm300 = vcmp.ne.s32.totalorder %v298, 0
      %vm301 = vcmp.lt.s32.totalorder %v291, 0
      %vm302 = vcmp.lt.s32.totalorder %v298, 0
      %vm303 = vmand %vm301, %vm299
      %vm304 = vmand %vm302, %vm300
      %v305 = vadd.s32 %v291, 16
      %v306 = vadd.s32 %v298, 16
      %v307 = vsel %vm303, %v305, %v291
      %v308 = vsel %vm304, %v306, %v298
      %vm309 = vcmp.ge.s32.totalorder %v307, 1
      %vm310 = vcmp.ge.s32.totalorder %v308, 1
      %v311 = vsel %vm309, 1, 0
      %v312 = vsel %vm310, 1, 0
      %vm313 = vcmp.eq.s32.totalorder %v311, 1
      %vm314 = vcmp.eq.s32.totalorder %v312, 1
      %vm315 = vcmp.le.s32.totalorder %v307, 14
      %vm316 = vcmp.le.s32.totalorder %v308, 14
      %v317 = vsel %vm315, 1, 0
      %v318 = vsel %vm316, 1, 0
      %vm319 = vcmp.eq.s32.totalorder %v317, 1
      %vm320 = vcmp.eq.s32.totalorder %v318, 1
      %321 = vst [vmem:[#allocation2] sm:$0xf] 0
      %322 = vst [vmem:[#allocation2 + $0x10] sm:$0xf] 0
      %323 = vst [vmem:[#allocation2 + $0x20] sm:$0xf] 0
      %324 = vst [vmem:[#allocation2 + $0x30] sm:$0xf] 0
      %vm325 = vcmask 134144
      %326 = vst.msk [vmem:[#allocation2 + $0xc] sm:$0xf] %vm325, 0
      %327 = vst.msk [vmem:[#allocation2 + $0x1c] sm:$0xf] %vm325, 0
      %328 = vst.msk [vmem:[#allocation2 + $0x2c] sm:$0xf] %vm325, 0
      %329 = vst.msk [vmem:[#allocation2 + $0x3c] sm:$0xf] %vm325, 0
      %v330 = vld [vmem:[%s273] sm:$0xf]
      %v333 = vunpack.c.l.s4 1983009808
      %v334 = vunpack.c.0.s8 %v333
      %v335 = vlaneseq
      %v336 = vshrl.u32 %v335, 7
      %v337 = vsub.s32 %v334, %v336
      %v338 = vrot.slane %v330, %v337
      %v339 = vcombine.high %v338, %v338
      %v342 = vpack.c.bf16 %v338, %v338
      %v343 = vpack.c.bf16 %v339, %v339
      %v346 = vunpack.c.l.b16 %v342
      %v347 = vunpack.c.l.b16 %v343
      %v348 = vpack.c.b16 %v347, %v346
      %350 = vst [vmem:[#allocation2 + $0x4] sm:$0x11] %v348
      %v351 = vld [vmem:[%s1] sm:$0xf]
      %v352 = vld [vmem:[%s1 + $0x4] sm:$0xf]
      %v353 = vld [vmem:[%s1 + $0x8] sm:$0xf]
      %v354 = vld [vmem:[%s1 + $0xc] sm:$0xf]
      %v355 = vld [vmem:[%s1 + $0x10] sm:$0xf]
      %v356 = vld [vmem:[%s1 + $0x14] sm:$0xf]
      %v357 = vld [vmem:[%s1 + $0x18] sm:$0xf]
      %v358 = vld [vmem:[%s1 + $0x1c] sm:$0xf]
      %v359 = vld [vmem:[%s1 + $0x20] sm:$0xf]
      %v360 = vld [vmem:[%s1 + $0x24] sm:$0xf]
      %v361 = vld [vmem:[%s1 + $0x28] sm:$0xf]
      %v362 = vld [vmem:[%s1 + $0x2c] sm:$0xf]
      %v363 = vld [vmem:[%s2] sm:$0xff]
      %v364 = vld [vmem:[%s2 + $0x8] sm:$0xff]
      %v365 = vld [vmem:[%s2 + $0x10] sm:$0xff]
      %v366 = vld [vmem:[%s2 + $0x18] sm:$0xff]
      %v367 = vld [vmem:[#allocation2] sm:$0x11]
      %v368 = vld [vmem:[#allocation2 + $0x8] sm:$0x1]
      %vm369 = vmpackc.low %vm314, %vm313
      %v370 = vsel %vm369, 65537, 0
      %371 = vrot.lane.b32.xlu0 %v370, 111
      %v372 = vpop.permute.xlu0 %371
      %v373 = vrot.slane %v372, 4
      %vm374 = vcmask 908288
      %v375 = vsel %vm374, %v373, %v372
      %vm376 = vcmp.ne.s16.totalorder %v375, 0
      %vm377 = vcmp.ne.s16.totalorder %v373, 0
      %v378 = vsel %vm376, %v367, 0
      %v379 = vsel %vm377, %v368, 0
      %vm380 = vmpackc.low %vm320, %vm319
      %v381 = vsel %vm380, 65537, 0
      %382 = vrot.lane.b32.xlu0 %v381, 113
      %v383 = vpop.permute.xlu0 %382
      %v384 = vrot.slane %v383, 4
      %vm385 = vcmask 924672
      %v386 = vsel %vm385, %v384, %v383
      %vm387 = vcmp.ne.s16.totalorder %v386, 0
      %vm388 = vcmp.ne.s16.totalorder %v384, 0
      %v389 = vsel %vm387, %v367, 0
      %v390 = vsel %vm388, %v368, 0
      %v393 = vunpack.c.l.b16 %v378
      %v394 = vunpack.c.h.b16 %v378
      %v395 = vunpack.c.l.b16 %v379
      %v396 = vpack.c.b16 %v393, %v393
      %v397 = vpack.c.b16 %v394, %v394
      %v398 = vpack.c.b16 %v395, %v395
      %v401 = vunpack.c.l.b16 %v367
      %v402 = vunpack.c.h.b16 %v367
      %v403 = vunpack.c.l.b16 %v368
      %v404 = vpack.c.b16 %v401, %v401
      %v405 = vpack.c.b16 %v402, %v402
      %v406 = vpack.c.b16 %v403, %v403
      %v407 = vrot.slane %v404, 7
      %v408 = vrot.slane %v405, 7
      %v409 = vrot.slane %v406, 7
      %410 = vrot.lane.b32.xlu0 %v407, 127
      %v411 = vpop.permute.xlu0 %410
      %412 = vrot.lane.b32.xlu0 %v408, 127
      %v413 = vpop.permute.xlu0 %412
      %414 = vrot.lane.b32.xlu0 %v409, 127
      %v415 = vpop.permute.xlu0 %414
      %vm416 = vcmask 1039360
      %v417 = vsel %vm416, %v411, %v413
      %v418 = vsel %vm416, %v413, %v415
      %v421 = vunpack.c.l.b16 %v389
      %v422 = vunpack.c.h.b16 %v389
      %v423 = vunpack.c.l.b16 %v390
      %v424 = vpack.c.b16 %v421, %v421
      %v425 = vpack.c.b16 %v422, %v422
      %v426 = vpack.c.b16 %v423, %v423
      %v427 = vrot.slane %v424, 6
      %v428 = vrot.slane %v425, 6
      %v429 = vrot.slane %v426, 6
      %430 = vrot.lane.b32.xlu0 %v427, 126
      %v431 = vpop.permute.xlu0 %430
      %432 = vrot.lane.b32.xlu0 %v428, 126
      %v433 = vpop.permute.xlu0 %432
      %434 = vrot.lane.b32.xlu0 %v429, 126
      %v435 = vpop.permute.xlu0 %434
      %vm436 = vcmask 1031168
      %v437 = vsel %vm436, %v431, %v433
      %v438 = vsel %vm436, %v433, %v435
      %vm439 = vcmask 1040384
      %v442 = vsel %vm439, %v396, %v417
      %v445 = vsel %vm439, %v397, %v418
      %v448 = vsel %vm439, %v398, %v415
      %vm449 = vcmask 1041408
      %v451 = vsel %vm449, %v442, %v437
      %v453 = vsel %vm449, %v445, %v438
      %v455 = vsel %vm449, %v448, %v435
      %456 = vrot.lane.b32.xlu0 %v370, 127
      %v457 = vpop.permute.xlu0 %456
      %v458 = vrot.slane %v457, 4
      %v459 = vsel %vm416, %v458, %v457
      %vm460 = vcmp.ne.s16.totalorder %v459, 0
      %vm461 = vcmp.ne.s16.totalorder %v458, 0
      %v462 = vsel %vm460, %v367, 0
      %v463 = vsel %vm461, %v368, 0
      %v464 = vld [vmem:[#allocation2 + $0x4] sm:$0x11]
      %v465 = vld [vmem:[#allocation2 + $0xc] sm:$0x1]
      %466 = vrot.lane.b32.xlu0 %v381, 1
      %v467 = vpop.permute.xlu0 %466
      %v468 = vrot.slane %v467, 4
      %vm469 = vcmask 7168
      %v470 = vsel %vm469, %v468, %v467
      %vm471 = vcmp.ne.s16.totalorder %v470, 0
      %vm472 = vcmp.ne.s16.totalorder %v468, 0
      %v473 = vsel %vm471, %v464, 0
      %v474 = vsel %vm472, %v465, 0
      %v477 = vunpack.c.l.b16 %v462
      %v478 = vunpack.c.h.b16 %v462
      %v479 = vunpack.c.l.b16 %v463
      %v480 = vpack.c.b16 %v477, %v477
      %v481 = vpack.c.b16 %v478, %v478
      %v482 = vpack.c.b16 %v479, %v479
      %v484 = vunpack.c.l.b16 %v464
      %v485 = vunpack.c.h.b16 %v464
      %v486 = vpack.c.b16 %v484, %v484
      %v487 = vpack.c.b16 %v485, %v485
      %v488 = vrot.slane %v486, 7
      %v489 = vrot.slane %v487, 7
      %490 = vrot.lane.b32.xlu0 %v488, 127
      %v491 = vpop.permute.xlu0 %490
      %492 = vrot.lane.b32.xlu0 %v489, 127
      %v493 = vpop.permute.xlu0 %492
      %v494 = vsel %vm416, %v491, %v493
      %v497 = vunpack.c.l.b16 %v473
      %v498 = vunpack.c.h.b16 %v473
      %v499 = vunpack.c.l.b16 %v474
      %v500 = vpack.c.b16 %v497, %v497
      %v501 = vpack.c.b16 %v498, %v498
      %v502 = vpack.c.b16 %v499, %v499
      %v503 = vrot.slane %v500, 6
      %v504 = vrot.slane %v501, 6
      %v505 = vrot.slane %v502, 6
      %506 = vrot.lane.b32.xlu0 %v503, 126
      %v507 = vpop.permute.xlu0 %506
      %508 = vrot.lane.b32.xlu0 %v504, 126
      %v509 = vpop.permute.xlu0 %508
      %510 = vrot.lane.b32.xlu0 %v505, 126
      %v511 = vpop.permute.xlu0 %510
      %v512 = vsel %vm436, %v507, %v509
      %v513 = vsel %vm436, %v509, %v511
      %v516 = vsel %vm439, %v480, %v491
      %v519 = vsel %vm439, %v481, %v494
      %v522 = vsel %vm439, %v482, %v493
      %v524 = vsel %vm449, %v516, %v507
      %v526 = vsel %vm449, %v519, %v512
      %v528 = vsel %vm449, %v522, %v513
      %v533 = vunpack.c.l.b16 %v355
      %v534 = vunpack.c.l.b16 %v356
      %v535 = vunpack.c.l.b16 %v357
      %v536 = vunpack.c.l.b16 %v358
      %v537 = vpack.c.b16 %v534, %v533
      %v538 = vpack.c.b16 %v536, %v535
      %542 = vrot.lane.b32.xlu0 %v524, 1
      %v543 = vpop.permute.xlu0 %542
      %544 = vrot.lane.b32.xlu0 %v526, 1
      %v545 = vpop.permute.xlu0 %544
      %546 = vrot.lane.b32.xlu0 %v528, 1
      %v547 = vpop.permute.xlu0 %546
      %v548 = vsel %vm469, %v543, %v545
      %v549 = vsel %vm469, %v545, %v547
      %vm550 = vcmask 48128
      %v552 = vsel %vm550, %v537, 0
      %v555 = vsel %vm550, %v538, 0
      %vm557 = vcmask 1042432
      %v559 = vsel %vm557, %v548, 0
      %v562 = vsel %vm557, %v549, 0
      %564 = vmatprep.subr.bf16.mxu0 0
      %565 = vmatpush1.bf16.msra.mxu0 0
      %566 = vmatprep.subr.bf16.mxu0 0
      %567 = vmatpush1.bf16.msra.mxu0 0
      %568 = vmatprep.subr.bf16.mxu0 0
      %569 = vmatpush1.bf16.msra.mxu0 0
      %570 = vmatprep.subr.bf16.mxu0 0
      %571 = vmatpush1.bf16.msra.mxu0 0
      %572 = vmatprep.subr.bf16.mxu0 0
      %573 = vmatpush1.bf16.msra.mxu0 0
      %574 = vmatprep.subr.bf16.mxu0 0
      %575 = vmatpush1.bf16.msra.mxu0 0
      %576 = vmatprep.subr.bf16.mxu0 0
      %577 = vmatpush1.bf16.msra.mxu0 0
      %578 = vmatprep.subr.bf16.mxu0 %v562
      %579 = vmatpush1.bf16.msra.mxu0 %v559
      %580 = vmatprep.subr.bf16.mxu0 0
      %581 = vmatpush2.bf16.msra.mxu0 0
      %582 = vmatprep.subr.bf16.mxu0 0
      %583 = vmatpush2.bf16.msra.mxu0 0
      %584 = vmatprep.subr.bf16.mxu0 0
      %585 = vmatpush2.bf16.msra.mxu0 0
      %586 = vmatprep.subr.bf16.mxu0 0
      %587 = vmatpush2.bf16.msra.mxu0 0
      %588 = vmatprep.subr.bf16.mxu0 0
      %589 = vmatpush2.bf16.msra.mxu0 0
      %590 = vmatprep.subr.bf16.mxu0 0
      %591 = vmatpush2.bf16.msra.mxu0 0
      %592 = vmatprep.subr.bf16.mxu0 0
      %593 = vmatpush2.bf16.msra.mxu0 0
      %594 = vmatprep.subr.bf16.mxu0 0
      %595 = vmatpush2.bf16.msra.mxu0 0
      %596 = vmatprep.mubr.bf16.mxu0 0
      %597 = vmatmul.mubr.bf16.gmra.mxu0 %v552
      %v598 = vpop.f32.mrf.mxu0
      %v599 = vadd.f32 0.0, %v598
      %v600 = vpop.f32.mrf.mxu0
      %v601 = vadd.f32 0.0, %v600
      %v602 = vpop.f32.mrf.mxu0
      %v603 = vadd.f32 0.0, %v602
      %v604 = vpop.f32.mrf.mxu0
      %v605 = vadd.f32 0.0, %v604
      %606 = vmatprep.mubr.bf16.mxu0 0
      %607 = vmatmul.mubr.bf16.gmra.mxu0 %v555
      %v608 = vpop.f32.mrf.mxu0
      %v609 = vadd.f32 0.0, %v608
      %v610 = vpop.f32.mrf.mxu0
      %v611 = vadd.f32 0.0, %v610
      %v612 = vpop.f32.mrf.mxu0
      %v613 = vadd.f32 0.0, %v612
      %v614 = vpop.f32.mrf.mxu0
      %v615 = vadd.f32 0.0, %v614
      %616 = vdwg.mxu0
      %v621 = vunpack.c.l.b16 %v351
      %v622 = vunpack.c.l.b16 %v352
      %v623 = vunpack.c.l.b16 %v353
      %v624 = vunpack.c.l.b16 %v354
      %v625 = vpack.c.b16 %v622, %v621
      %v626 = vpack.c.b16 %v624, %v623
      %630 = vrot.lane.b32.xlu0 %v451, 17
      %v631 = vpop.permute.xlu0 %630
      %632 = vrot.lane.b32.xlu0 %v453, 17
      %v633 = vpop.permute.xlu0 %632
      %634 = vrot.lane.b32.xlu0 %v455, 17
      %v635 = vpop.permute.xlu0 %634
      %vm636 = vcmask 138240
      %v637 = vsel %vm636, %v631, %v633
      %v638 = vsel %vm636, %v633, %v635
      %v640 = vsel %vm550, %v625, 0
      %v643 = vsel %vm550, %v626, 0
      %v646 = vsel %vm557, %v637, 0
      %v649 = vsel %vm557, %v638, 0
      %651 = vmatprep.subr.bf16.mxu0 0
      %652 = vmatpush1.bf16.msra.mxu0 0
      %653 = vmatprep.subr.bf16.mxu0 0
      %654 = vmatpush1.bf16.msra.mxu0 0
      %655 = vmatprep.subr.bf16.mxu0 0
      %656 = vmatpush1.bf16.msra.mxu0 0
      %657 = vmatprep.subr.bf16.mxu0 0
      %658 = vmatpush1.bf16.msra.mxu0 0
      %659 = vmatprep.subr.bf16.mxu0 0
      %660 = vmatpush1.bf16.msra.mxu0 0
      %661 = vmatprep.subr.bf16.mxu0 0
      %662 = vmatpush1.bf16.msra.mxu0 0
      %663 = vmatprep.subr.bf16.mxu0 0
      %664 = vmatpush1.bf16.msra.mxu0 0
      %665 = vmatprep.subr.bf16.mxu0 %v649
      %666 = vmatpush1.bf16.msra.mxu0 %v646
      %667 = vmatprep.subr.bf16.mxu0 0
      %668 = vmatpush2.bf16.msra.mxu0 0
      %669 = vmatprep.subr.bf16.mxu0 0
      %670 = vmatpush2.bf16.msra.mxu0 0
      %671 = vmatprep.subr.bf16.mxu0 0
      %672 = vmatpush2.bf16.msra.mxu0 0
      %673 = vmatprep.subr.bf16.mxu0 0
      %674 = vmatpush2.bf16.msra.mxu0 0
      %675 = vmatprep.subr.bf16.mxu0 0
      %676 = vmatpush2.bf16.msra.mxu0 0
      %677 = vmatprep.subr.bf16.mxu0 0
      %678 = vmatpush2.bf16.msra.mxu0 0
      %679 = vmatprep.subr.bf16.mxu0 0
      %680 = vmatpush2.bf16.msra.mxu0 0
      %681 = vmatprep.subr.bf16.mxu0 0
      %682 = vmatpush2.bf16.msra.mxu0 0
      %683 = vmatprep.mubr.bf16.mxu0 0
      %684 = vmatmul.mubr.bf16.gmra.mxu0 %v640
      %v685 = vpop.f32.mrf.mxu0
      %v686 = vadd.f32 %v599, %v685
      %v687 = vpop.f32.mrf.mxu0
      %v688 = vadd.f32 %v601, %v687
      %v689 = vpop.f32.mrf.mxu0
      %v690 = vadd.f32 %v603, %v689
      %v691 = vpop.f32.mrf.mxu0
      %v692 = vadd.f32 %v605, %v691
      %693 = vmatprep.mubr.bf16.mxu0 0
      %694 = vmatmul.mubr.bf16.gmra.mxu0 %v643
      %v695 = vpop.f32.mrf.mxu0
      %v696 = vadd.f32 %v609, %v695
      %v697 = vpop.f32.mrf.mxu0
      %v698 = vadd.f32 %v611, %v697
      %v699 = vpop.f32.mrf.mxu0
      %v700 = vadd.f32 %v613, %v699
      %v701 = vpop.f32.mrf.mxu0
      %v702 = vadd.f32 %v615, %v701
      %703 = vdwg.mxu0
      %704 = vrot.lane.b32.xlu0 %v370, 15
      %v705 = vpop.permute.xlu0 %704
      %v706 = vrot.slane %v705, 4
      %vm707 = vcmask 121856
      %v708 = vsel %vm707, %v706, %v705
      %vm709 = vcmp.ne.s16.totalorder %v708, 0
      %vm710 = vcmp.ne.s16.totalorder %v706, 0
      %v711 = vsel %vm709, %v464, 0
      %v712 = vsel %vm710, %v465, 0
      %713 = vrot.lane.b32.xlu0 %v381, 17
      %v714 = vpop.permute.xlu0 %713
      %v715 = vrot.slane %v714, 4
      %v716 = vsel %vm636, %v715, %v714
      %vm717 = vcmp.ne.s16.totalorder %v716, 0
      %vm718 = vcmp.ne.s16.totalorder %v715, 0
      %v719 = vsel %vm717, %v464, 0
      %v720 = vsel %vm718, %v465, 0
      %v723 = vunpack.c.l.b16 %v711
      %v724 = vunpack.c.h.b16 %v711
      %v725 = vunpack.c.l.b16 %v712
      %v726 = vpack.c.b16 %v723, %v723
      %v727 = vpack.c.b16 %v724, %v724
      %v728 = vpack.c.b16 %v725, %v725
      %v730 = vunpack.c.l.b16 %v465
      %v731 = vpack.c.b16 %v730, %v730
      %v732 = vrot.slane %v731, 7
      %733 = vrot.lane.b32.xlu0 %v732, 127
      %v734 = vpop.permute.xlu0 %733
      %v735 = vsel %vm416, %v493, %v734
      %v738 = vunpack.c.l.b16 %v719
      %v739 = vunpack.c.h.b16 %v719
      %v740 = vunpack.c.l.b16 %v720
      %v741 = vpack.c.b16 %v738, %v738
      %v742 = vpack.c.b16 %v739, %v739
      %v743 = vpack.c.b16 %v740, %v740
      %v744 = vrot.slane %v741, 6
      %v745 = vrot.slane %v742, 6
      %v746 = vrot.slane %v743, 6
      %747 = vrot.lane.b32.xlu0 %v744, 126
      %v748 = vpop.permute.xlu0 %747
      %749 = vrot.lane.b32.xlu0 %v745, 126
      %v750 = vpop.permute.xlu0 %749
      %751 = vrot.lane.b32.xlu0 %v746, 126
      %v752 = vpop.permute.xlu0 %751
      %v753 = vsel %vm436, %v748, %v750
      %v754 = vsel %vm436, %v750, %v752
      %v756 = vsel %vm439, %v726, %v494
      %v759 = vsel %vm439, %v727, %v735
      %v762 = vsel %vm439, %v728, %v734
      %v764 = vsel %vm449, %v756, %v753
      %v766 = vsel %vm449, %v759, %v754
      %v768 = vsel %vm449, %v762, %v752
      %v773 = vunpack.c.l.b16 %v359
      %v774 = vunpack.c.l.b16 %v360
      %v775 = vunpack.c.l.b16 %v361
      %v776 = vunpack.c.l.b16 %v362
      %v777 = vpack.c.b16 %v774, %v773
      %v778 = vpack.c.b16 %v776, %v775
      %782 = vrot.lane.b32.xlu0 %v764, 113
      %v783 = vpop.permute.xlu0 %782
      %784 = vrot.lane.b32.xlu0 %v766, 113
      %v785 = vpop.permute.xlu0 %784
      %786 = vrot.lane.b32.xlu0 %v768, 113
      %v787 = vpop.permute.xlu0 %786
      %v788 = vsel %vm385, %v783, %v785
      %v789 = vsel %vm385, %v785, %v787
      %v791 = vsel %vm550, %v777, 0
      %v794 = vsel %vm550, %v778, 0
      %v797 = vsel %vm557, %v788, 0
      %v800 = vsel %vm557, %v789, 0
      %802 = vmatprep.subr.bf16.mxu0 0
      %803 = vmatpush1.bf16.msra.mxu0 0
      %804 = vmatprep.subr.bf16.mxu0 0
      %805 = vmatpush1.bf16.msra.mxu0 0
      %806 = vmatprep.subr.bf16.mxu0 0
      %807 = vmatpush1.bf16.msra.mxu0 0
      %808 = vmatprep.subr.bf16.mxu0 0
      %809 = vmatpush1.bf16.msra.mxu0 0
      %810 = vmatprep.subr.bf16.mxu0 0
      %811 = vmatpush1.bf16.msra.mxu0 0
      %812 = vmatprep.subr.bf16.mxu0 0
      %813 = vmatpush1.bf16.msra.mxu0 0
      %814 = vmatprep.subr.bf16.mxu0 0
      %815 = vmatpush1.bf16.msra.mxu0 0
      %816 = vmatprep.subr.bf16.mxu0 %v800
      %817 = vmatpush1.bf16.msra.mxu0 %v797
      %818 = vmatprep.subr.bf16.mxu0 0
      %819 = vmatpush2.bf16.msra.mxu0 0
      %820 = vmatprep.subr.bf16.mxu0 0
      %821 = vmatpush2.bf16.msra.mxu0 0
      %822 = vmatprep.subr.bf16.mxu0 0
      %823 = vmatpush2.bf16.msra.mxu0 0
      %824 = vmatprep.subr.bf16.mxu0 0
      %825 = vmatpush2.bf16.msra.mxu0 0
      %826 = vmatprep.subr.bf16.mxu0 0
      %827 = vmatpush2.bf16.msra.mxu0 0
      %828 = vmatprep.subr.bf16.mxu0 0
      %829 = vmatpush2.bf16.msra.mxu0 0
      %830 = vmatprep.subr.bf16.mxu0 0
      %831 = vmatpush2.bf16.msra.mxu0 0
      %832 = vmatprep.subr.bf16.mxu0 0
      %833 = vmatpush2.bf16.msra.mxu0 0
      %834 = vmatprep.mubr.bf16.mxu0 0
      %835 = vmatmul.mubr.bf16.gmra.mxu0 %v791
      %v836 = vpop.f32.mrf.mxu0
      %v837 = vadd.f32 0.0, %v836
      %v838 = vpop.f32.mrf.mxu0
      %v839 = vadd.f32 0.0, %v838
      %v840 = vpop.f32.mrf.mxu0
      %v841 = vadd.f32 0.0, %v840
      %v842 = vpop.f32.mrf.mxu0
      %v843 = vadd.f32 0.0, %v842
      %844 = vmatprep.mubr.bf16.mxu0 0
      %845 = vmatmul.mubr.bf16.gmra.mxu0 %v794
      %v846 = vpop.f32.mrf.mxu0
      %v847 = vadd.f32 0.0, %v846
      %v848 = vpop.f32.mrf.mxu0
      %v849 = vadd.f32 0.0, %v848
      %v850 = vpop.f32.mrf.mxu0
      %v851 = vadd.f32 0.0, %v850
      %v852 = vpop.f32.mrf.mxu0
      %v853 = vadd.f32 0.0, %v852
      %854 = vdwg.mxu0
      %v855 = vadd.f32 %v686, %v837
      %v856 = vadd.f32 %v688, %v839
      %v857 = vadd.f32 %v690, %v841
      %v858 = vadd.f32 %v692, %v843
      %v859 = vadd.f32 %v696, %v847
      %v860 = vadd.f32 %v698, %v849
      %v861 = vadd.f32 %v700, %v851
      %v862 = vadd.f32 %v702, %v853
      %864 = vset.pattern.permute.xlu0 0
      %865 = vperm.xlu0 %864, %v363
      %v866 = vpop.permute.xlu0 %865
      %869 = vset.pattern.permute.xlu0 0
      %870 = vperm.xlu0 %869, %v364
      %v871 = vpop.permute.xlu0 %870
      %874 = vset.pattern.permute.xlu0 0
      %875 = vperm.xlu0 %874, %v365
      %v876 = vpop.permute.xlu0 %875
      %879 = vset.pattern.permute.xlu0 0
      %880 = vperm.xlu0 %879, %v366
      %v881 = vpop.permute.xlu0 %880
      %v883 = vadd.f32 %v855, %v866
      %v884 = vadd.f32 %v856, %v866
      %v885 = vadd.f32 %v857, %v871
      %v886 = vadd.f32 %v858, %v871
      %v887 = vadd.f32 %v859, %v876
      %v888 = vadd.f32 %v860, %v876
      %v889 = vadd.f32 %v861, %v881
      %v890 = vadd.f32 %v862, %v881
      %v891 = vmax.f32 %v883, 0.0
      %v892 = vmax.f32 %v884, 0.0
      %v893 = vmax.f32 %v885, 0.0
      %v894 = vmax.f32 %v886, 0.0
      %v895 = vmax.f32 %v887, 0.0
      %v896 = vmax.f32 %v888, 0.0
      %v897 = vmax.f32 %v889, 0.0
      %v898 = vmax.f32 %v890, 0.0
      %v899 = vpack.c.bf16 %v893, %v891
      %v900 = vpack.c.bf16 %v894, %v892
      %v901 = vpack.c.bf16 %v897, %v895
      %v902 = vpack.c.bf16 %v898, %v896
      %v907 = vunpack.c.l.b16 %v899
      %v908 = vunpack.c.l.b16 %v900
      %v909 = vunpack.c.h.b16 %v899
      %v910 = vunpack.c.h.b16 %v900
      %v911 = vunpack.c.l.b16 %v901
      %v912 = vunpack.c.l.b16 %v902
      %v913 = vunpack.c.h.b16 %v901
      %v914 = vunpack.c.h.b16 %v902
      %v915 = vpack.c.b16 %v908, %v907
      %v916 = vpack.c.b16 %v910, %v909
      %v917 = vpack.c.b16 %v912, %v911
      %v918 = vpack.c.b16 %v914, %v913
      %923 = vst [vmem:[#allocation2 + $0x4] sm:$0xff] %v915
      %924 = vst [vmem:[#allocation2 + $0x14] sm:$0xff] %v916
      %925 = vst [vmem:[#allocation2 + $0x24] sm:$0xff] %v917
      %926 = vst [vmem:[#allocation2 + $0x34] sm:$0xff] %v918
      %v927 = vld [vmem:[%s3] sm:$0xf]
      %v928 = vld [vmem:[%s3 + $0x4] sm:$0xf]
      %v929 = vld [vmem:[%s3 + $0x8] sm:$0xf]
      %v930 = vld [vmem:[%s3 + $0xc] sm:$0xf]
      %v931 = vld [vmem:[%s3 + $0x10] sm:$0xf]
      %v932 = vld [vmem:[%s3 + $0x14] sm:$0xf]
      %v933 = vld [vmem:[%s3 + $0x18] sm:$0xf]
      %v934 = vld [vmem:[%s3 + $0x1c] sm:$0xf]
      %v935 = vld [vmem:[%s3 + $0x20] sm:$0xf]
      %v936 = vld [vmem:[%s3 + $0x24] sm:$0xf]
      %v937 = vld [vmem:[%s3 + $0x28] sm:$0xf]
      %v938 = vld [vmem:[%s3 + $0x2c] sm:$0xf]
      %v939 = vld [vmem:[%s4] sm:$0xff]
      %v940 = vld [vmem:[%s4 + $0x8] sm:$0xff]
      %v941 = vld [vmem:[%s4 + $0x10] sm:$0xff]
      %v942 = vld [vmem:[%s4 + $0x18] sm:$0xff]
      %v943 = vld [vmem:[#allocation2] sm:$0xff]
      %v944 = vld [vmem:[#allocation2 + $0x8] sm:$0xf]
      %v945 = vld [vmem:[#allocation2 + $0x10] sm:$0xff]
      %v946 = vld [vmem:[#allocation2 + $0x18] sm:$0xf]
      %v947 = vld [vmem:[#allocation2 + $0x20] sm:$0xff]
      %v948 = vld [vmem:[#allocation2 + $0x28] sm:$0xf]
      %v949 = vld [vmem:[#allocation2 + $0x30] sm:$0xff]
      %v950 = vld [vmem:[#allocation2 + $0x38] sm:$0xf]
      %v951 = vsel %vm376, %v943, 0
      %v952 = vsel %vm377, %v944, 0
      %v953 = vsel %vm376, %v945, 0
      %v954 = vsel %vm377, %v946, 0
      %v955 = vsel %vm376, %v947, 0
      %v956 = vsel %vm377, %v948, 0
      %v957 = vsel %vm376, %v949, 0
      %v958 = vsel %vm377, %v950, 0
      %967 = vrot.lane.b32.xlu0 %v951, 17
      %v968 = vpop.permute.xlu0 %967
      %969 = vrot.lane.b32.xlu0 %v952, 17
      %v970 = vpop.permute.xlu0 %969
      %971 = vrot.lane.b32.xlu0 %v953, 17
      %v972 = vpop.permute.xlu0 %971
      %973 = vrot.lane.b32.xlu0 %v954, 17
      %v974 = vpop.permute.xlu0 %973
      %975 = vrot.lane.b32.xlu0 %v955, 17
      %v976 = vpop.permute.xlu0 %975
      %977 = vrot.lane.b32.xlu0 %v956, 17
      %v978 = vpop.permute.xlu0 %977
      %979 = vrot.lane.b32.xlu0 %v957, 17
      %v980 = vpop.permute.xlu0 %979
      %981 = vrot.lane.b32.xlu0 %v958, 17
      %v982 = vpop.permute.xlu0 %981
      %v983 = vrot.slane %v968, 4
      %v984 = vrot.slane %v970, 4
      %v985 = vrot.slane %v972, 4
      %v986 = vrot.slane %v974, 4
      %v987 = vrot.slane %v976, 4
      %v988 = vrot.slane %v978, 4
      %v989 = vrot.slane %v980, 4
      %v990 = vrot.slane %v982, 4
      %vm991 = vcmask 1043456
      %v992 = vsel %vm991, %v983, %v984
      %v993 = vsel %vm636, %v968, %v992
      %v994 = vsel %vm991, %v985, %v986
      %v995 = vsel %vm636, %v972, %v994
      %v996 = vsel %vm991, %v987, %v988
      %v997 = vsel %vm636, %v976, %v996
      %v998 = vsel %vm991, %v989, %v990
      %v999 = vsel %vm636, %v980, %v998
      %1004 = vst [vmem:[#allocation3] sm:$0xff] %v993
      %1005 = vst [vmem:[#allocation3 + $0x8] sm:$0xff] %v995
      %1006 = vst [vmem:[#allocation3 + $0x10] sm:$0xff] %v997
      %1007 = vst [vmem:[#allocation3 + $0x18] sm:$0xff] %v999
      %v1008 = vld [vmem:[#allocation2] sm:$0xff]
      %v1009 = vld [vmem:[#allocation2 + $0x8] sm:$0xf]
      %v1010 = vld [vmem:[#allocation2 + $0x10] sm:$0xff]
      %v1011 = vld [vmem:[#allocation2 + $0x18] sm:$0xf]
      %v1012 = vld [vmem:[#allocation2 + $0x20] sm:$0xff]
      %v1013 = vld [vmem:[#allocation2 + $0x28] sm:$0xf]
      %v1014 = vld [vmem:[#allocation2 + $0x30] sm:$0xff]
      %v1015 = vld [vmem:[#allocation2 + $0x38] sm:$0xf]
      %1024 = vrot.lane.b32.xlu0 %v1008, 16
      %v1025 = vpop.permute.xlu0 %1024
      %1026 = vrot.lane.b32.xlu0 %v1009, 16
      %v1027 = vpop.permute.xlu0 %1026
      %1028 = vrot.lane.b32.xlu0 %v1010, 16
      %v1029 = vpop.permute.xlu0 %1028
      %1030 = vrot.lane.b32.xlu0 %v1011, 16
      %v1031 = vpop.permute.xlu0 %1030
      %1032 = vrot.lane.b32.xlu0 %v1012, 16
      %v1033 = vpop.permute.xlu0 %1032
      %1034 = vrot.lane.b32.xlu0 %v1013, 16
      %v1035 = vpop.permute.xlu0 %1034
      %1036 = vrot.lane.b32.xlu0 %v1014, 16
      %v1037 = vpop.permute.xlu0 %1036
      %1038 = vrot.lane.b32.xlu0 %v1015, 16
      %v1039 = vpop.permute.xlu0 %1038
      %v1040 = vrot.slane %v1025, 4
      %v1041 = vrot.slane %v1027, 4
      %v1042 = vrot.slane %v1029, 4
      %v1043 = vrot.slane %v1031, 4
      %v1044 = vrot.slane %v1033, 4
      %v1045 = vrot.slane %v1035, 4
      %v1046 = vrot.slane %v1037, 4
      %v1047 = vrot.slane %v1039, 4
      %v1048 = vsel %vm991, %v1040, %v1041
      %vm1049 = vcmask 130048
      %v1050 = vsel %vm1049, %v1025, %v1048
      %v1051 = vsel %vm991, %v1042, %v1043
      %v1052 = vsel %vm1049, %v1029, %v1051
      %v1053 = vsel %vm991, %v1044, %v1045
      %v1054 = vsel %vm1049, %v1033, %v1053
      %v1055 = vsel %vm991, %v1046, %v1047
      %v1056 = vsel %vm1049, %v1037, %v1055
      %1061 = vst [vmem:[#allocation3 + $0x20] sm:$0xff] %v1050
      %1062 = vst [vmem:[#allocation3 + $0x28] sm:$0xff] %v1052
      %1063 = vst [vmem:[#allocation3 + $0x30] sm:$0xff] %v1054
      %1064 = vst [vmem:[#allocation3 + $0x38] sm:$0xff] %v1056
      %v1065 = vld [vmem:[#allocation2] sm:$0xff]
      %v1066 = vld [vmem:[#allocation2 + $0x8] sm:$0xf]
      %v1067 = vld [vmem:[#allocation2 + $0x10] sm:$0xff]
      %v1068 = vld [vmem:[#allocation2 + $0x18] sm:$0xf]
      %v1069 = vld [vmem:[#allocation2 + $0x20] sm:$0xff]
      %v1070 = vld [vmem:[#allocation2 + $0x28] sm:$0xf]
      %v1071 = vld [vmem:[#allocation2 + $0x30] sm:$0xff]
      %v1072 = vld [vmem:[#allocation2 + $0x38] sm:$0xf]
      %v1073 = vsel %vm387, %v1065, 0
      %v1074 = vsel %vm388, %v1066, 0
      %v1075 = vsel %vm387, %v1067, 0
      %v1076 = vsel %vm388, %v1068, 0
      %v1077 = vsel %vm387, %v1069, 0
      %v1078 = vsel %vm388, %v1070, 0
      %v1079 = vsel %vm387, %v1071, 0
      %v1080 = vsel %vm388, %v1072, 0
      %1089 = vrot.lane.b32.xlu0 %v1073, 15
      %v1090 = vpop.permute.xlu0 %1089
      %1091 = vrot.lane.b32.xlu0 %v1074, 15
      %v1092 = vpop.permute.xlu0 %1091
      %1093 = vrot.lane.b32.xlu0 %v1075, 15
      %v1094 = vpop.permute.xlu0 %1093
      %1095 = vrot.lane.b32.xlu0 %v1076, 15
      %v1096 = vpop.permute.xlu0 %1095
      %1097 = vrot.lane.b32.xlu0 %v1077, 15
      %v1098 = vpop.permute.xlu0 %1097
      %1099 = vrot.lane.b32.xlu0 %v1078, 15
      %v1100 = vpop.permute.xlu0 %1099
      %1101 = vrot.lane.b32.xlu0 %v1079, 15
      %v1102 = vpop.permute.xlu0 %1101
      %1103 = vrot.lane.b32.xlu0 %v1080, 15
      %v1104 = vpop.permute.xlu0 %1103
      %v1105 = vrot.slane %v1090, 4
      %v1106 = vrot.slane %v1092, 4
      %v1107 = vrot.slane %v1094, 4
      %v1108 = vrot.slane %v1096, 4
      %v1109 = vrot.slane %v1098, 4
      %v1110 = vrot.slane %v1100, 4
      %v1111 = vrot.slane %v1102, 4
      %v1112 = vrot.slane %v1104, 4
      %v1113 = vsel %vm991, %v1105, %v1106
      %v1114 = vsel %vm707, %v1090, %v1113
      %v1115 = vsel %vm991, %v1107, %v1108
      %v1116 = vsel %vm707, %v1094, %v1115
      %v1117 = vsel %vm991, %v1109, %v1110
      %v1118 = vsel %vm707, %v1098, %v1117
      %v1119 = vsel %vm991, %v1111, %v1112
      %v1120 = vsel %vm707, %v1102, %v1119
      %1125 = vst [vmem:[#allocation3 + $0x40] sm:$0xff] %v1114
      %1126 = vst [vmem:[#allocation3 + $0x48] sm:$0xff] %v1116
      %1127 = vst [vmem:[#allocation3 + $0x50] sm:$0xff] %v1118
      %1128 = vst [vmem:[#allocation3 + $0x58] sm:$0xff] %v1120
      %v1129 = vld [vmem:[#allocation3] sm:$0xff]
      %v1130 = vld [vmem:[#allocation3 + $0x8] sm:$0xff]
      %v1131 = vld [vmem:[#allocation3 + $0x10] sm:$0xff]
      %v1132 = vld [vmem:[#allocation3 + $0x18] sm:$0xff]
      %v1133 = vld [vmem:[#allocation3 + $0x20] sm:$0xff]
      %v1134 = vld [vmem:[#allocation3 + $0x28] sm:$0xff]
      %v1135 = vld [vmem:[#allocation3 + $0x30] sm:$0xff]
      %v1136 = vld [vmem:[#allocation3 + $0x38] sm:$0xff]
      %v1137 = vld [vmem:[#allocation3 + $0x40] sm:$0xff]
      %v1138 = vld [vmem:[#allocation3 + $0x48] sm:$0xff]
      %v1139 = vld [vmem:[#allocation3 + $0x50] sm:$0xff]
      %v1140 = vld [vmem:[#allocation3 + $0x58] sm:$0xff]
      %v1141 = vld [vmem:[#allocation2] sm:$0xff]
      %v1142 = vld [vmem:[#allocation2 + $0x8] sm:$0xf]
      %v1143 = vld [vmem:[#allocation2 + $0x10] sm:$0xff]
      %v1144 = vld [vmem:[#allocation2 + $0x18] sm:$0xf]
      %v1145 = vld [vmem:[#allocation2 + $0x20] sm:$0xff]
      %v1146 = vld [vmem:[#allocation2 + $0x28] sm:$0xf]
      %v1147 = vld [vmem:[#allocation2 + $0x30] sm:$0xff]
      %v1148 = vld [vmem:[#allocation2 + $0x38] sm:$0xf]
      %v1149 = vsel %vm460, %v1141, 0
      %v1150 = vsel %vm461, %v1142, 0
      %v1151 = vsel %vm460, %v1143, 0
      %v1152 = vsel %vm461, %v1144, 0
      %v1153 = vsel %vm460, %v1145, 0
      %v1154 = vsel %vm461, %v1146, 0
      %v1155 = vsel %vm460, %v1147, 0
      %v1156 = vsel %vm461, %v1148, 0
      %1165 = vrot.lane.b32.xlu0 %v1149, 1
      %v1166 = vpop.permute.xlu0 %1165
      %1167 = vrot.lane.b32.xlu0 %v1150, 1
      %v1168 = vpop.permute.xlu0 %1167
      %1169 = vrot.lane.b32.xlu0 %v1151, 1
      %v1170 = vpop.permute.xlu0 %1169
      %1171 = vrot.lane.b32.xlu0 %v1152, 1
      %v1172 = vpop.permute.xlu0 %1171
      %1173 = vrot.lane.b32.xlu0 %v1153, 1
      %v1174 = vpop.permute.xlu0 %1173
      %1175 = vrot.lane.b32.xlu0 %v1154, 1
      %v1176 = vpop.permute.xlu0 %1175
      %1177 = vrot.lane.b32.xlu0 %v1155, 1
      %v1178 = vpop.permute.xlu0 %1177
      %1179 = vrot.lane.b32.xlu0 %v1156, 1
      %v1180 = vpop.permute.xlu0 %1179
      %v1181 = vrot.slane %v1166, 4
      %v1182 = vrot.slane %v1168, 4
      %v1183 = vrot.slane %v1170, 4
      %v1184 = vrot.slane %v1172, 4
      %v1185 = vrot.slane %v1174, 4
      %v1186 = vrot.slane %v1176, 4
      %v1187 = vrot.slane %v1178, 4
      %v1188 = vrot.slane %v1180, 4
      %v1189 = vsel %vm991, %v1181, %v1182
      %v1190 = vsel %vm469, %v1166, %v1189
      %v1191 = vsel %vm991, %v1183, %v1184
      %v1192 = vsel %vm469, %v1170, %v1191
      %v1193 = vsel %vm991, %v1185, %v1186
      %v1194 = vsel %vm469, %v1174, %v1193
      %v1195 = vsel %vm991, %v1187, %v1188
      %v1196 = vsel %vm469, %v1178, %v1195
      %1201 = vst [vmem:[#allocation3] sm:$0xff] %v1190
      %1202 = vst [vmem:[#allocation3 + $0x8] sm:$0xff] %v1192
      %1203 = vst [vmem:[#allocation3 + $0x10] sm:$0xff] %v1194
      %1204 = vst [vmem:[#allocation3 + $0x18] sm:$0xff] %v1196
      %v1205 = vld [vmem:[#allocation2 + $0x4] sm:$0xff]
      %v1206 = vld [vmem:[#allocation2 + $0x14] sm:$0xff]
      %v1207 = vld [vmem:[#allocation2 + $0x24] sm:$0xff]
      %v1208 = vld [vmem:[#allocation2 + $0x34] sm:$0xff]
      %1209 = vst [vmem:[#allocation3 + $0x20] sm:$0xff] %v1205
      %1210 = vst [vmem:[#allocation3 + $0x28] sm:$0xff] %v1206
      %1211 = vst [vmem:[#allocation3 + $0x30] sm:$0xff] %v1207
      %1212 = vst [vmem:[#allocation3 + $0x38] sm:$0xff] %v1208
      %v1213 = vld [vmem:[#allocation2 + $0x4] sm:$0xff]
      %v1214 = vld [vmem:[#allocation2 + $0xc] sm:$0xf]
      %v1215 = vld [vmem:[#allocation2 + $0x14] sm:$0xff]
      %v1216 = vld [vmem:[#allocation2 + $0x1c] sm:$0xf]
      %v1217 = vld [vmem:[#allocation2 + $0x24] sm:$0xff]
      %v1218 = vld [vmem:[#allocation2 + $0x2c] sm:$0xf]
      %v1219 = vld [vmem:[#allocation2 + $0x34] sm:$0xff]
      %v1220 = vld [vmem:[#allocation2 + $0x3c] sm:$0xf]
      %v1221 = vsel %vm471, %v1213, 0
      %v1222 = vsel %vm472, %v1214, 0
      %v1223 = vsel %vm471, %v1215, 0
      %v1224 = vsel %vm472, %v1216, 0
      %v1225 = vsel %vm471, %v1217, 0
      %v1226 = vsel %vm472, %v1218, 0
      %v1227 = vsel %vm471, %v1219, 0
      %v1228 = vsel %vm472, %v1220, 0
      %1237 = vrot.lane.b32.xlu0 %v1221, 127
      %v1238 = vpop.permute.xlu0 %1237
      %1239 = vrot.lane.b32.xlu0 %v1222, 127
      %v1240 = vpop.permute.xlu0 %1239
      %1241 = vrot.lane.b32.xlu0 %v1223, 127
      %v1242 = vpop.permute.xlu0 %1241
      %1243 = vrot.lane.b32.xlu0 %v1224, 127
      %v1244 = vpop.permute.xlu0 %1243
      %1245 = vrot.lane.b32.xlu0 %v1225, 127
      %v1246 = vpop.permute.xlu0 %1245
      %1247 = vrot.lane.b32.xlu0 %v1226, 127
      %v1248 = vpop.permute.xlu0 %1247
      %1249 = vrot.lane.b32.xlu0 %v1227, 127
      %v1250 = vpop.permute.xlu0 %1249
      %1251 = vrot.lane.b32.xlu0 %v1228, 127
      %v1252 = vpop.permute.xlu0 %1251
      %v1253 = vrot.slane %v1238, 4
      %v1254 = vrot.slane %v1240, 4
      %v1255 = vrot.slane %v1242, 4
      %v1256 = vrot.slane %v1244, 4
      %v1257 = vrot.slane %v1246, 4
      %v1258 = vrot.slane %v1248, 4
      %v1259 = vrot.slane %v1250, 4
      %v1260 = vrot.slane %v1252, 4
      %v1261 = vsel %vm991, %v1253, %v1254
      %v1262 = vsel %vm416, %v1238, %v1261
      %v1263 = vsel %vm991, %v1255, %v1256
      %v1264 = vsel %vm416, %v1242, %v1263
      %v1265 = vsel %vm991, %v1257, %v1258
      %v1266 = vsel %vm416, %v1246, %v1265
      %v1267 = vsel %vm991, %v1259, %v1260
      %v1268 = vsel %vm416, %v1250, %v1267
      %1273 = vst [vmem:[#allocation3 + $0x40] sm:$0xff] %v1262
      %1274 = vst [vmem:[#allocation3 + $0x48] sm:$0xff] %v1264
      %1275 = vst [vmem:[#allocation3 + $0x50] sm:$0xff] %v1266
      %1276 = vst [vmem:[#allocation3 + $0x58] sm:$0xff] %v1268
      %v1277 = vld [vmem:[#allocation3] sm:$0xff]
      %v1278 = vld [vmem:[#allocation3 + $0x8] sm:$0xff]
      %v1279 = vld [vmem:[#allocation3 + $0x10] sm:$0xff]
      %v1280 = vld [vmem:[#allocation3 + $0x18] sm:$0xff]
      %v1281 = vld [vmem:[#allocation3 + $0x20] sm:$0xff]
      %v1282 = vld [vmem:[#allocation3 + $0x28] sm:$0xff]
      %v1283 = vld [vmem:[#allocation3 + $0x30] sm:$0xff]
      %v1284 = vld [vmem:[#allocation3 + $0x38] sm:$0xff]
      %v1285 = vld [vmem:[#allocation3 + $0x40] sm:$0xff]
      %v1286 = vld [vmem:[#allocation3 + $0x48] sm:$0xff]
      %v1287 = vld [vmem:[#allocation3 + $0x50] sm:$0xff]
      %v1288 = vld [vmem:[#allocation3 + $0x58] sm:$0xff]
      %v1293 = vunpack.c.l.b16 %v931
      %v1294 = vunpack.c.l.b16 %v932
      %v1295 = vunpack.c.l.b16 %v933
      %v1296 = vunpack.c.l.b16 %v934
      %v1297 = vpack.c.b16 %v1294, %v1293
      %v1298 = vpack.c.b16 %v1296, %v1295
      %v1311 = vunpack.c.l.b16 %v1277
      %v1312 = vunpack.c.h.b16 %v1277
      %v1313 = vunpack.c.l.b16 %v1278
      %v1314 = vunpack.c.h.b16 %v1278
      %v1315 = vunpack.c.l.b16 %v1279
      %v1316 = vunpack.c.h.b16 %v1279
      %v1317 = vunpack.c.l.b16 %v1280
      %v1318 = vunpack.c.h.b16 %v1280
      %v1319 = vunpack.c.l.b16 %v1281
      %v1320 = vunpack.c.h.b16 %v1281
      %v1321 = vunpack.c.l.b16 %v1282
      %v1322 = vunpack.c.h.b16 %v1282
      %v1323 = vunpack.c.l.b16 %v1283
      %v1324 = vunpack.c.h.b16 %v1283
      %v1325 = vunpack.c.l.b16 %v1284
      %v1326 = vunpack.c.h.b16 %v1284
      %v1327 = vunpack.c.l.b16 %v1285
      %v1328 = vunpack.c.h.b16 %v1285
      %v1329 = vunpack.c.l.b16 %v1286
      %v1330 = vunpack.c.h.b16 %v1286
      %v1331 = vunpack.c.l.b16 %v1287
      %v1332 = vunpack.c.h.b16 %v1287
      %v1333 = vunpack.c.l.b16 %v1288
      %v1334 = vunpack.c.h.b16 %v1288
      %v1335 = vpack.c.b16 %v1313, %v1311
      %v1336 = vpack.c.b16 %v1314, %v1312
      %v1337 = vpack.c.b16 %v1317, %v1315
      %v1338 = vpack.c.b16 %v1318, %v1316
      %v1339 = vpack.c.b16 %v1321, %v1319
      %v1340 = vpack.c.b16 %v1322, %v1320
      %v1341 = vpack.c.b16 %v1325, %v1323
      %v1342 = vpack.c.b16 %v1326, %v1324
      %v1343 = vpack.c.b16 %v1329, %v1327
      %v1344 = vpack.c.b16 %v1330, %v1328
      %v1345 = vpack.c.b16 %v1333, %v1331
      %v1346 = vpack.c.b16 %v1334, %v1332
      %vm1359 = vcmask 785408
      %v1361 = vsel %vm1359, %v1297, 0
      %v1364 = vsel %vm1359, %v1298, 0
      %1366 = vmatprep.subr.bf16.mxu0 0
      %1367 = vmatpush1.bf16.msra.mxu0 0
      %1368 = vmatprep.subr.bf16.mxu0 0
      %1369 = vmatpush1.bf16.msra.mxu0 0
      %1370 = vmatprep.subr.bf16.mxu0 %v1346
      %1371 = vmatpush1.bf16.msra.mxu0 %v1345
      %1372 = vmatprep.subr.bf16.mxu0 %v1344
      %1373 = vmatpush1.bf16.msra.mxu0 %v1343
      %1374 = vmatprep.subr.bf16.mxu0 %v1342
      %1375 = vmatpush1.bf16.msra.mxu0 %v1341
      %1376 = vmatprep.subr.bf16.mxu0 %v1340
      %1377 = vmatpush1.bf16.msra.mxu0 %v1339
      %1378 = vmatprep.subr.bf16.mxu0 %v1338
      %1379 = vmatpush1.bf16.msra.mxu0 %v1337
      %1380 = vmatprep.subr.bf16.mxu0 %v1336
      %1381 = vmatpush1.bf16.msra.mxu0 %v1335
      %1382 = vmatprep.subr.bf16.mxu0 0
      %1383 = vmatpush2.bf16.msra.mxu0 0
      %1384 = vmatprep.subr.bf16.mxu0 0
      %1385 = vmatpush2.bf16.msra.mxu0 0
      %1386 = vmatprep.subr.bf16.mxu0 0
      %1387 = vmatpush2.bf16.msra.mxu0 0
      %1388 = vmatprep.subr.bf16.mxu0 0
      %1389 = vmatpush2.bf16.msra.mxu0 0
      %1390 = vmatprep.subr.bf16.mxu0 0
      %1391 = vmatpush2.bf16.msra.mxu0 0
      %1392 = vmatprep.subr.bf16.mxu0 0
      %1393 = vmatpush2.bf16.msra.mxu0 0
      %1394 = vmatprep.subr.bf16.mxu0 0
      %1395 = vmatpush2.bf16.msra.mxu0 0
      %1396 = vmatprep.subr.bf16.mxu0 0
      %1397 = vmatpush2.bf16.msra.mxu0 0
      %1398 = vmatprep.mubr.bf16.mxu0 0
      %1399 = vmatmul.mubr.bf16.gmra.mxu0 %v1361
      %v1400 = vpop.f32.mrf.mxu0
      %v1401 = vadd.f32 0.0, %v1400
      %v1402 = vpop.f32.mrf.mxu0
      %v1403 = vadd.f32 0.0, %v1402
      %v1404 = vpop.f32.mrf.mxu0
      %v1405 = vadd.f32 0.0, %v1404
      %v1406 = vpop.f32.mrf.mxu0
      %v1407 = vadd.f32 0.0, %v1406
      %1408 = vmatprep.mubr.bf16.mxu0 0
      %1409 = vmatmul.mubr.bf16.gmra.mxu0 %v1364
      %v1410 = vpop.f32.mrf.mxu0
      %v1411 = vadd.f32 0.0, %v1410
      %v1412 = vpop.f32.mrf.mxu0
      %v1413 = vadd.f32 0.0, %v1412
      %v1414 = vpop.f32.mrf.mxu0
      %v1415 = vadd.f32 0.0, %v1414
      %v1416 = vpop.f32.mrf.mxu0
      %v1417 = vadd.f32 0.0, %v1416
      %1418 = vdwg.mxu0
      %v1423 = vunpack.c.l.b16 %v927
      %v1424 = vunpack.c.l.b16 %v928
      %v1425 = vunpack.c.l.b16 %v929
      %v1426 = vunpack.c.l.b16 %v930
      %v1427 = vpack.c.b16 %v1424, %v1423
      %v1428 = vpack.c.b16 %v1426, %v1425
      %v1441 = vunpack.c.l.b16 %v1129
      %v1442 = vunpack.c.h.b16 %v1129
      %v1443 = vunpack.c.l.b16 %v1130
      %v1444 = vunpack.c.h.b16 %v1130
      %v1445 = vunpack.c.l.b16 %v1131
      %v1446 = vunpack.c.h.b16 %v1131
      %v1447 = vunpack.c.l.b16 %v1132
      %v1448 = vunpack.c.h.b16 %v1132
      %v1449 = vunpack.c.l.b16 %v1133
      %v1450 = vunpack.c.h.b16 %v1133
      %v1451 = vunpack.c.l.b16 %v1134
      %v1452 = vunpack.c.h.b16 %v1134
      %v1453 = vunpack.c.l.b16 %v1135
      %v1454 = vunpack.c.h.b16 %v1135
      %v1455 = vunpack.c.l.b16 %v1136
      %v1456 = vunpack.c.h.b16 %v1136
      %v1457 = vunpack.c.l.b16 %v1137
      %v1458 = vunpack.c.h.b16 %v1137
      %v1459 = vunpack.c.l.b16 %v1138
      %v1460 = vunpack.c.h.b16 %v1138
      %v1461 = vunpack.c.l.b16 %v1139
      %v1462 = vunpack.c.h.b16 %v1139
      %v1463 = vunpack.c.l.b16 %v1140
      %v1464 = vunpack.c.h.b16 %v1140
      %v1465 = vpack.c.b16 %v1443, %v1441
      %v1466 = vpack.c.b16 %v1444, %v1442
      %v1467 = vpack.c.b16 %v1447, %v1445
      %v1468 = vpack.c.b16 %v1448, %v1446
      %v1469 = vpack.c.b16 %v1451, %v1449
      %v1470 = vpack.c.b16 %v1452, %v1450
      %v1471 = vpack.c.b16 %v1455, %v1453
      %v1472 = vpack.c.b16 %v1456, %v1454
      %v1473 = vpack.c.b16 %v1459, %v1457
      %v1474 = vpack.c.b16 %v1460, %v1458
      %v1475 = vpack.c.b16 %v1463, %v1461
      %v1476 = vpack.c.b16 %v1464, %v1462
      %v1490 = vsel %vm1359, %v1427, 0
      %v1493 = vsel %vm1359, %v1428, 0
      %1495 = vmatprep.subr.bf16.mxu0 0
      %1496 = vmatpush1.bf16.msra.mxu0 0
      %1497 = vmatprep.subr.bf16.mxu0 0
      %1498 = vmatpush1.bf16.msra.mxu0 0
      %1499 = vmatprep.subr.bf16.mxu0 %v1476
      %1500 = vmatpush1.bf16.msra.mxu0 %v1475
      %1501 = vmatprep.subr.bf16.mxu0 %v1474
      %1502 = vmatpush1.bf16.msra.mxu0 %v1473
      %1503 = vmatprep.subr.bf16.mxu0 %v1472
      %1504 = vmatpush1.bf16.msra.mxu0 %v1471
      %1505 = vmatprep.subr.bf16.mxu0 %v1470
      %1506 = vmatpush1.bf16.msra.mxu0 %v1469
      %1507 = vmatprep.subr.bf16.mxu0 %v1468
      %1508 = vmatpush1.bf16.msra.mxu0 %v1467
      %1509 = vmatprep.subr.bf16.mxu0 %v1466
      %1510 = vmatpush1.bf16.msra.mxu0 %v1465
      %1511 = vmatprep.subr.bf16.mxu0 0
      %1512 = vmatpush2.bf16.msra.mxu0 0
      %1513 = vmatprep.subr.bf16.mxu0 0
      %1514 = vmatpush2.bf16.msra.mxu0 0
      %1515 = vmatprep.subr.bf16.mxu0 0
      %1516 = vmatpush2.bf16.msra.mxu0 0
      %1517 = vmatprep.subr.bf16.mxu0 0
      %1518 = vmatpush2.bf16.msra.mxu0 0
      %1519 = vmatprep.subr.bf16.mxu0 0
      %1520 = vmatpush2.bf16.msra.mxu0 0
      %1521 = vmatprep.subr.bf16.mxu0 0
      %1522 = vmatpush2.bf16.msra.mxu0 0
      %1523 = vmatprep.subr.bf16.mxu0 0
      %1524 = vmatpush2.bf16.msra.mxu0 0
      %1525 = vmatprep.subr.bf16.mxu0 0
      %1526 = vmatpush2.bf16.msra.mxu0 0
      %1527 = vmatprep.mubr.bf16.mxu0 0
      %1528 = vmatmul.mubr.bf16.gmra.mxu0 %v1490
      %v1529 = vpop.f32.mrf.mxu0
      %v1530 = vadd.f32 %v1401, %v1529
      %v1531 = vpop.f32.mrf.mxu0
      %v1532 = vadd.f32 %v1403, %v1531
      %v1533 = vpop.f32.mrf.mxu0
      %v1534 = vadd.f32 %v1405, %v1533
      %v1535 = vpop.f32.mrf.mxu0
      %v1536 = vadd.f32 %v1407, %v1535
      %1537 = vmatprep.mubr.bf16.mxu0 0
      %1538 = vmatmul.mubr.bf16.gmra.mxu0 %v1493
      %v1539 = vpop.f32.mrf.mxu0
      %v1540 = vadd.f32 %v1411, %v1539
      %v1541 = vpop.f32.mrf.mxu0
      %v1542 = vadd.f32 %v1413, %v1541
      %v1543 = vpop.f32.mrf.mxu0
      %v1544 = vadd.f32 %v1415, %v1543
      %v1545 = vpop.f32.mrf.mxu0
      %v1546 = vadd.f32 %v1417, %v1545
      %1547 = vdwg.mxu0
      %v1548 = vld [vmem:[#allocation2 + $0x4] sm:$0xff]
      %v1549 = vld [vmem:[#allocation2 + $0xc] sm:$0xf]
      %v1550 = vld [vmem:[#allocation2 + $0x14] sm:$0xff]
      %v1551 = vld [vmem:[#allocation2 + $0x1c] sm:$0xf]
      %v1552 = vld [vmem:[#allocation2 + $0x24] sm:$0xff]
      %v1553 = vld [vmem:[#allocation2 + $0x2c] sm:$0xf]
      %v1554 = vld [vmem:[#allocation2 + $0x34] sm:$0xff]
      %v1555 = vld [vmem:[#allocation2 + $0x3c] sm:$0xf]
      %v1556 = vsel %vm709, %v1548, 0
      %v1557 = vsel %vm710, %v1549, 0
      %v1558 = vsel %vm709, %v1550, 0
      %v1559 = vsel %vm710, %v1551, 0
      %v1560 = vsel %vm709, %v1552, 0
      %v1561 = vsel %vm710, %v1553, 0
      %v1562 = vsel %vm709, %v1554, 0
      %v1563 = vsel %vm710, %v1555, 0
      %1572 = vrot.lane.b32.xlu0 %v1556, 113
      %v1573 = vpop.permute.xlu0 %1572
      %1574 = vrot.lane.b32.xlu0 %v1557, 113
      %v1575 = vpop.permute.xlu0 %1574
      %1576 = vrot.lane.b32.xlu0 %v1558, 113
      %v1577 = vpop.permute.xlu0 %1576
      %1578 = vrot.lane.b32.xlu0 %v1559, 113
      %v1579 = vpop.permute.xlu0 %1578
      %1580 = vrot.lane.b32.xlu0 %v1560, 113
      %v1581 = vpop.permute.xlu0 %1580
      %1582 = vrot.lane.b32.xlu0 %v1561, 113
      %v1583 = vpop.permute.xlu0 %1582
      %1584 = vrot.lane.b32.xlu0 %v1562, 113
      %v1585 = vpop.permute.xlu0 %1584
      %1586 = vrot.lane.b32.xlu0 %v1563, 113
      %v1587 = vpop.permute.xlu0 %1586
      %v1588 = vrot.slane %v1573, 4
      %v1589 = vrot.slane %v1575, 4
      %v1590 = vrot.slane %v1577, 4
      %v1591 = vrot.slane %v1579, 4
      %v1592 = vrot.slane %v1581, 4
      %v1593 = vrot.slane %v1583, 4
      %v1594 = vrot.slane %v1585, 4
      %v1595 = vrot.slane %v1587, 4
      %v1596 = vsel %vm991, %v1588, %v1589
      %v1597 = vsel %vm385, %v1573, %v1596
      %v1598 = vsel %vm991, %v1590, %v1591
      %v1599 = vsel %vm385, %v1577, %v1598
      %v1600 = vsel %vm991, %v1592, %v1593
      %v1601 = vsel %vm385, %v1581, %v1600
      %v1602 = vsel %vm991, %v1594, %v1595
      %v1603 = vsel %vm385, %v1585, %v1602
      %1608 = vst [vmem:[#allocation3] sm:$0xff] %v1597
      %1609 = vst [vmem:[#allocation3 + $0x8] sm:$0xff] %v1599
      %1610 = vst [vmem:[#allocation3 + $0x10] sm:$0xff] %v1601
      %1611 = vst [vmem:[#allocation3 + $0x18] sm:$0xff] %v1603
      %v1612 = vld [vmem:[#allocation2 + $0x4] sm:$0xff]
      %v1613 = vld [vmem:[#allocation2 + $0xc] sm:$0xf]
      %v1614 = vld [vmem:[#allocation2 + $0x14] sm:$0xff]
      %v1615 = vld [vmem:[#allocation2 + $0x1c] sm:$0xf]
      %v1616 = vld [vmem:[#allocation2 + $0x24] sm:$0xff]
      %v1617 = vld [vmem:[#allocation2 + $0x2c] sm:$0xf]
      %v1618 = vld [vmem:[#allocation2 + $0x34] sm:$0xff]
      %v1619 = vld [vmem:[#allocation2 + $0x3c] sm:$0xf]
      %1628 = vrot.lane.b32.xlu0 %v1612, 112
      %v1629 = vpop.permute.xlu0 %1628
      %1630 = vrot.lane.b32.xlu0 %v1613, 112
      %v1631 = vpop.permute.xlu0 %1630
      %1632 = vrot.lane.b32.xlu0 %v1614, 112
      %v1633 = vpop.permute.xlu0 %1632
      %1634 = vrot.lane.b32.xlu0 %v1615, 112
      %v1635 = vpop.permute.xlu0 %1634
      %1636 = vrot.lane.b32.xlu0 %v1616, 112
      %v1637 = vpop.permute.xlu0 %1636
      %1638 = vrot.lane.b32.xlu0 %v1617, 112
      %v1639 = vpop.permute.xlu0 %1638
      %1640 = vrot.lane.b32.xlu0 %v1618, 112
      %v1641 = vpop.permute.xlu0 %1640
      %1642 = vrot.lane.b32.xlu0 %v1619, 112
      %v1643 = vpop.permute.xlu0 %1642
      %v1644 = vrot.slane %v1629, 4
      %v1645 = vrot.slane %v1631, 4
      %v1646 = vrot.slane %v1633, 4
      %v1647 = vrot.slane %v1635, 4
      %v1648 = vrot.slane %v1637, 4
      %v1649 = vrot.slane %v1639, 4
      %v1650 = vrot.slane %v1641, 4
      %v1651 = vrot.slane %v1643, 4
      %v1652 = vsel %vm991, %v1644, %v1645
      %vm1653 = vcmask 916480
      %v1654 = vsel %vm1653, %v1629, %v1652
      %v1655 = vsel %vm991, %v1646, %v1647
      %v1656 = vsel %vm1653, %v1633, %v1655
      %v1657 = vsel %vm991, %v1648, %v1649
      %v1658 = vsel %vm1653, %v1637, %v1657
      %v1659 = vsel %vm991, %v1650, %v1651
      %v1660 = vsel %vm1653, %v1641, %v1659
      %1665 = vst [vmem:[#allocation3 + $0x20] sm:$0xff] %v1654
      %1666 = vst [vmem:[#allocation3 + $0x28] sm:$0xff] %v1656
      %1667 = vst [vmem:[#allocation3 + $0x30] sm:$0xff] %v1658
      %1668 = vst [vmem:[#allocation3 + $0x38] sm:$0xff] %v1660
      %v1669 = vld [vmem:[#allocation2 + $0x4] sm:$0xff]
      %v1670 = vld [vmem:[#allocation2 + $0xc] sm:$0xf]
      %v1671 = vld [vmem:[#allocation2 + $0x14] sm:$0xff]
      %v1672 = vld [vmem:[#allocation2 + $0x1c] sm:$0xf]
      %v1673 = vld [vmem:[#allocation2 + $0x24] sm:$0xff]
      %v1674 = vld [vmem:[#allocation2 + $0x2c] sm:$0xf]
      %v1675 = vld [vmem:[#allocation2 + $0x34] sm:$0xff]
      %v1676 = vld [vmem:[#allocation2 + $0x3c] sm:$0xf]
      %v1677 = vsel %vm717, %v1669, 0
      %v1678 = vsel %vm718, %v1670, 0
      %v1679 = vsel %vm717, %v1671, 0
      %v1680 = vsel %vm718, %v1672, 0
      %v1681 = vsel %vm717, %v1673, 0
      %v1682 = vsel %vm718, %v1674, 0
      %v1683 = vsel %vm717, %v1675, 0
      %v1684 = vsel %vm718, %v1676, 0
      %1693 = vrot.lane.b32.xlu0 %v1677, 111
      %v1694 = vpop.permute.xlu0 %1693
      %1695 = vrot.lane.b32.xlu0 %v1678, 111
      %v1696 = vpop.permute.xlu0 %1695
      %1697 = vrot.lane.b32.xlu0 %v1679, 111
      %v1698 = vpop.permute.xlu0 %1697
      %1699 = vrot.lane.b32.xlu0 %v1680, 111
      %v1700 = vpop.permute.xlu0 %1699
      %1701 = vrot.lane.b32.xlu0 %v1681, 111
      %v1702 = vpop.permute.xlu0 %1701
      %1703 = vrot.lane.b32.xlu0 %v1682, 111
      %v1704 = vpop.permute.xlu0 %1703
      %1705 = vrot.lane.b32.xlu0 %v1683, 111
      %v1706 = vpop.permute.xlu0 %1705
      %1707 = vrot.lane.b32.xlu0 %v1684, 111
      %v1708 = vpop.permute.xlu0 %1707
      %v1709 = vrot.slane %v1694, 4
      %v1710 = vrot.slane %v1696, 4
      %v1711 = vrot.slane %v1698, 4
      %v1712 = vrot.slane %v1700, 4
      %v1713 = vrot.slane %v1702, 4
      %v1714 = vrot.slane %v1704, 4
      %v1715 = vrot.slane %v1706, 4
      %v1716 = vrot.slane %v1708, 4
      %v1717 = vsel %vm991, %v1709, %v1710
      %v1718 = vsel %vm374, %v1694, %v1717
      %v1719 = vsel %vm991, %v1711, %v1712
      %v1720 = vsel %vm374, %v1698, %v1719
      %v1721 = vsel %vm991, %v1713, %v1714
      %v1722 = vsel %vm374, %v1702, %v1721
      %v1723 = vsel %vm991, %v1715, %v1716
      %v1724 = vsel %vm374, %v1706, %v1723
      %1729 = vst [vmem:[#allocation3 + $0x40] sm:$0xff] %v1718
      %1730 = vst [vmem:[#allocation3 + $0x48] sm:$0xff] %v1720
      %1731 = vst [vmem:[#allocation3 + $0x50] sm:$0xff] %v1722
      %1732 = vst [vmem:[#allocation3 + $0x58] sm:$0xff] %v1724
      %v1733 = vld [vmem:[#allocation3] sm:$0xff]
      %v1734 = vld [vmem:[#allocation3 + $0x8] sm:$0xff]
      %v1735 = vld [vmem:[#allocation3 + $0x10] sm:$0xff]
      %v1736 = vld [vmem:[#allocation3 + $0x18] sm:$0xff]
      %v1737 = vld [vmem:[#allocation3 + $0x20] sm:$0xff]
      %v1738 = vld [vmem:[#allocation3 + $0x28] sm:$0xff]
      %v1739 = vld [vmem:[#allocation3 + $0x30] sm:$0xff]
      %v1740 = vld [vmem:[#allocation3 + $0x38] sm:$0xff]
      %v1741 = vld [vmem:[#allocation3 + $0x40] sm:$0xff]
      %v1742 = vld [vmem:[#allocation3 + $0x48] sm:$0xff]
      %v1743 = vld [vmem:[#allocation3 + $0x50] sm:$0xff]
      %v1744 = vld [vmem:[#allocation3 + $0x58] sm:$0xff]
      %v1749 = vunpack.c.l.b16 %v935
      %v1750 = vunpack.c.l.b16 %v936
      %v1751 = vunpack.c.l.b16 %v937
      %v1752 = vunpack.c.l.b16 %v938
      %v1753 = vpack.c.b16 %v1750, %v1749
      %v1754 = vpack.c.b16 %v1752, %v1751
      %v1767 = vunpack.c.l.b16 %v1733
      %v1768 = vunpack.c.h.b16 %v1733
      %v1769 = vunpack.c.l.b16 %v1734
      %v1770 = vunpack.c.h.b16 %v1734
      %v1771 = vunpack.c.l.b16 %v1735
      %v1772 = vunpack.c.h.b16 %v1735
      %v1773 = vunpack.c.l.b16 %v1736
      %v1774 = vunpack.c.h.b16 %v1736
      %v1775 = vunpack.c.l.b16 %v1737
      %v1776 = vunpack.c.h.b16 %v1737
      %v1777 = vunpack.c.l.b16 %v1738
      %v1778 = vunpack.c.h.b16 %v1738
      %v1779 = vunpack.c.l.b16 %v1739
      %v1780 = vunpack.c.h.b16 %v1739
      %v1781 = vunpack.c.l.b16 %v1740
      %v1782 = vunpack.c.h.b16 %v1740
      %v1783 = vunpack.c.l.b16 %v1741
      %v1784 = vunpack.c.h.b16 %v1741
      %v1785 = vunpack.c.l.b16 %v1742
      %v1786 = vunpack.c.h.b16 %v1742
      %v1787 = vunpack.c.l.b16 %v1743
      %v1788 = vunpack.c.h.b16 %v1743
      %v1789 = vunpack.c.l.b16 %v1744
      %v1790 = vunpack.c.h.b16 %v1744
      %v1791 = vpack.c.b16 %v1769, %v1767
      %v1792 = vpack.c.b16 %v1770, %v1768
      %v1793 = vpack.c.b16 %v1773, %v1771
      %v1794 = vpack.c.b16 %v1774, %v1772
      %v1795 = vpack.c.b16 %v1777, %v1775
      %v1796 = vpack.c.b16 %v1778, %v1776
      %v1797 = vpack.c.b16 %v1781, %v1779
      %v1798 = vpack.c.b16 %v1782, %v1780
      %v1799 = vpack.c.b16 %v1785, %v1783
      %v1800 = vpack.c.b16 %v1786, %v1784
      %v1801 = vpack.c.b16 %v1789, %v1787
      %v1802 = vpack.c.b16 %v1790, %v1788
      %v1816 = vsel %vm1359, %v1753, 0
      %v1819 = vsel %vm1359, %v1754, 0
      %1821 = vmatprep.subr.bf16.mxu0 0
      %1822 = vmatpush1.bf16.msra.mxu0 0
      %1823 = vmatprep.subr.bf16.mxu0 0
      %1824 = vmatpush1.bf16.msra.mxu0 0
      %1825 = vmatprep.subr.bf16.mxu0 %v1802
      %1826 = vmatpush1.bf16.msra.mxu0 %v1801
      %1827 = vmatprep.subr.bf16.mxu0 %v1800
      %1828 = vmatpush1.bf16.msra.mxu0 %v1799
      %1829 = vmatprep.subr.bf16.mxu0 %v1798
      %1830 = vmatpush1.bf16.msra.mxu0 %v1797
      %1831 = vmatprep.subr.bf16.mxu0 %v1796
      %1832 = vmatpush1.bf16.msra.mxu0 %v1795
      %1833 = vmatprep.subr.bf16.mxu0 %v1794
      %1834 = vmatpush1.bf16.msra.mxu0 %v1793
      %1835 = vmatprep.subr.bf16.mxu0 %v1792
      %1836 = vmatpush1.bf16.msra.mxu0 %v1791
      %1837 = vmatprep.subr.bf16.mxu0 0
      %1838 = vmatpush2.bf16.msra.mxu0 0
      %1839 = vmatprep.subr.bf16.mxu0 0
      %1840 = vmatpush2.bf16.msra.mxu0 0
      %1841 = vmatprep.subr.bf16.mxu0 0
      %1842 = vmatpush2.bf16.msra.mxu0 0
      %1843 = vmatprep.subr.bf16.mxu0 0
      %1844 = vmatpush2.bf16.msra.mxu0 0
      %1845 = vmatprep.subr.bf16.mxu0 0
      %1846 = vmatpush2.bf16.msra.mxu0 0
      %1847 = vmatprep.subr.bf16.mxu0 0
      %1848 = vmatpush2.bf16.msra.mxu0 0
      %1849 = vmatprep.subr.bf16.mxu0 0
      %1850 = vmatpush2.bf16.msra.mxu0 0
      %1851 = vmatprep.subr.bf16.mxu0 0
      %1852 = vmatpush2.bf16.msra.mxu0 0
      %1853 = vmatprep.mubr.bf16.mxu0 0
      %1854 = vmatmul.mubr.bf16.gmra.mxu0 %v1816
      %v1855 = vpop.f32.mrf.mxu0
      %v1856 = vadd.f32 0.0, %v1855
      %v1857 = vpop.f32.mrf.mxu0
      %v1858 = vadd.f32 0.0, %v1857
      %v1859 = vpop.f32.mrf.mxu0
      %v1860 = vadd.f32 0.0, %v1859
      %v1861 = vpop.f32.mrf.mxu0
      %v1862 = vadd.f32 0.0, %v1861
      %1863 = vmatprep.mubr.bf16.mxu0 0
      %1864 = vmatmul.mubr.bf16.gmra.mxu0 %v1819
      %v1865 = vpop.f32.mrf.mxu0
      %v1866 = vadd.f32 0.0, %v1865
      %v1867 = vpop.f32.mrf.mxu0
      %v1868 = vadd.f32 0.0, %v1867
      %v1869 = vpop.f32.mrf.mxu0
      %v1870 = vadd.f32 0.0, %v1869
      %v1871 = vpop.f32.mrf.mxu0
      %v1872 = vadd.f32 0.0, %v1871
      %1873 = vdwg.mxu0
      %v1874 = vadd.f32 %v1530, %v1856
      %v1875 = vadd.f32 %v1532, %v1858
      %v1876 = vadd.f32 %v1534, %v1860
      %v1877 = vadd.f32 %v1536, %v1862
      %v1878 = vadd.f32 %v1540, %v1866
      %v1879 = vadd.f32 %v1542, %v1868
      %v1880 = vadd.f32 %v1544, %v1870
      %v1881 = vadd.f32 %v1546, %v1872
      %1883 = vset.pattern.permute.xlu0 0
      %1884 = vperm.xlu0 %1883, %v939
      %v1885 = vpop.permute.xlu0 %1884
      %1888 = vset.pattern.permute.xlu0 0
      %1889 = vperm.xlu0 %1888, %v940
      %v1890 = vpop.permute.xlu0 %1889
      %1893 = vset.pattern.permute.xlu0 0
      %1894 = vperm.xlu0 %1893, %v941
      %v1895 = vpop.permute.xlu0 %1894
      %1898 = vset.pattern.permute.xlu0 0
      %1899 = vperm.xlu0 %1898, %v942
      %v1900 = vpop.permute.xlu0 %1899
      %v1902 = vadd.f32 %v1874, %v1885
      %v1903 = vadd.f32 %v1875, %v1885
      %v1904 = vadd.f32 %v1876, %v1890
      %v1905 = vadd.f32 %v1877, %v1890
      %v1906 = vadd.f32 %v1878, %v1895
      %v1907 = vadd.f32 %v1879, %v1895
      %v1908 = vadd.f32 %v1880, %v1900
      %v1909 = vadd.f32 %v1881, %v1900
      %v1910 = vmax.f32 %v1902, 0.0
      %v1911 = vmax.f32 %v1903, 0.0
      %v1912 = vmax.f32 %v1904, 0.0
      %v1913 = vmax.f32 %v1905, 0.0
      %v1914 = vmax.f32 %v1906, 0.0
      %v1915 = vmax.f32 %v1907, 0.0
      %v1916 = vmax.f32 %v1908, 0.0
      %v1917 = vmax.f32 %v1909, 0.0
      %v1918 = vpack.c.bf16 %v1912, %v1910
      %v1919 = vpack.c.bf16 %v1913, %v1911
      %v1920 = vpack.c.bf16 %v1916, %v1914
      %v1921 = vpack.c.bf16 %v1917, %v1915
      %v1926 = vunpack.c.l.b16 %v1918
      %v1927 = vunpack.c.l.b16 %v1919
      %v1928 = vunpack.c.h.b16 %v1918
      %v1929 = vunpack.c.h.b16 %v1919
      %v1930 = vunpack.c.l.b16 %v1920
      %v1931 = vunpack.c.l.b16 %v1921
      %v1932 = vunpack.c.h.b16 %v1920
      %v1933 = vunpack.c.h.b16 %v1921
      %v1934 = vpack.c.b16 %v1927, %v1926
      %v1935 = vpack.c.b16 %v1929, %v1928
      %v1936 = vpack.c.b16 %v1931, %v1930
      %v1937 = vpack.c.b16 %v1933, %v1932
      %1942 = vst [vmem:[#allocation2 + $0x4] sm:$0xff] %v1934
      %1943 = vst [vmem:[#allocation2 + $0x14] sm:$0xff] %v1935
      %1944 = vst [vmem:[#allocation2 + $0x24] sm:$0xff] %v1936
      %1945 = vst [vmem:[#allocation2 + $0x34] sm:$0xff] %v1937
      %s1946 = scalar_lea.vmem %s3, 48
      %v1947 = vld [vmem:[%s1946] sm:$0xf]
      %v1948 = vld [vmem:[%s1946 + $0x4] sm:$0xf]
      %v1949 = vld [vmem:[%s1946 + $0x8] sm:$0xf]
      %v1950 = vld [vmem:[%s1946 + $0xc] sm:$0xf]
      %v1951 = vld [vmem:[%s1946 + $0x10] sm:$0xf]
      %v1952 = vld [vmem:[%s1946 + $0x14] sm:$0xf]
      %v1953 = vld [vmem:[%s1946 + $0x18] sm:$0xf]
      %v1954 = vld [vmem:[%s1946 + $0x1c] sm:$0xf]
      %v1955 = vld [vmem:[%s1946 + $0x20] sm:$0xf]
      %v1956 = vld [vmem:[%s1946 + $0x24] sm:$0xf]
      %v1957 = vld [vmem:[%s1946 + $0x28] sm:$0xf]
      %v1958 = vld [vmem:[%s1946 + $0x2c] sm:$0xf]
      %s1959 = scalar_lea.vmem %s4, 32
      %v1960 = vld [vmem:[%s1959] sm:$0xff]
      %v1961 = vld [vmem:[%s1959 + $0x8] sm:$0xff]
      %v1962 = vld [vmem:[%s1959 + $0x10] sm:$0xff]
      %v1963 = vld [vmem:[%s1959 + $0x18] sm:$0xff]
      %v1964 = vld [vmem:[#allocation2] sm:$0xff]
      %v1965 = vld [vmem:[#allocation2 + $0x8] sm:$0xf]
      %v1966 = vld [vmem:[#allocation2 + $0x10] sm:$0xff]
      %v1967 = vld [vmem:[#allocation2 + $0x18] sm:$0xf]
      %v1968 = vld [vmem:[#allocation2 + $0x20] sm:$0xff]
      %v1969 = vld [vmem:[#allocation2 + $0x28] sm:$0xf]
      %v1970 = vld [vmem:[#allocation2 + $0x30] sm:$0xff]
      %v1971 = vld [vmem:[#allocation2 + $0x38] sm:$0xf]
      %v1972 = vsel %vm376, %v1964, 0
      %v1973 = vsel %vm377, %v1965, 0
      %v1974 = vsel %vm376, %v1966, 0
      %v1975 = vsel %vm377, %v1967, 0
      %v1976 = vsel %vm376, %v1968, 0
      %v1977 = vsel %vm377, %v1969, 0
      %v1978 = vsel %vm376, %v1970, 0
      %v1979 = vsel %vm377, %v1971, 0
      %1988 = vrot.lane.b32.xlu0 %v1972, 17
      %v1989 = vpop.permute.xlu0 %1988
      %1990 = vrot.lane.b32.xlu0 %v1973, 17
      %v1991 = vpop.permute.xlu0 %1990
      %1992 = vrot.lane.b32.xlu0 %v1974, 17
      %v1993 = vpop.permute.xlu0 %1992
      %1994 = vrot.lane.b32.xlu0 %v1975, 17
      %v1995 = vpop.permute.xlu0 %1994
      %1996 = vrot.lane.b32.xlu0 %v1976, 17
      %v1997 = vpop.permute.xlu0 %1996
      %1998 = vrot.lane.b32.xlu0 %v1977, 17
      %v1999 = vpop.permute.xlu0 %1998
      %2000 = vrot.lane.b32.xlu0 %v1978, 17
      %v2001 = vpop.permute.xlu0 %2000
      %2002 = vrot.lane.b32.xlu0 %v1979, 17
      %v2003 = vpop.permute.xlu0 %2002
      %v2004 = vrot.slane %v1989, 4
      %v2005 = vrot.slane %v1991, 4
      %v2006 = vrot.slane %v1993, 4
      %v2007 = vrot.slane %v1995, 4
      %v2008 = vrot.slane %v1997, 4
      %v2009 = vrot.slane %v1999, 4
      %v2010 = vrot.slane %v2001, 4
      %v2011 = vrot.slane %v2003, 4
      %v2012 = vsel %vm991, %v2004, %v2005
      %v2013 = vsel %vm636, %v1989, %v2012
      %v2014 = vsel %vm991, %v2006, %v2007
      %v2015 = vsel %vm636, %v1993, %v2014
      %v2016 = vsel %vm991, %v2008, %v2009
      %v2017 = vsel %vm636, %v1997, %v2016
      %v2018 = vsel %vm991, %v2010, %v2011
      %v2019 = vsel %vm636, %v2001, %v2018
      %2024 = vst [vmem:[#allocation3] sm:$0xff] %v2013
      %2025 = vst [vmem:[#allocation3 + $0x8] sm:$0xff] %v2015
      %2026 = vst [vmem:[#allocation3 + $0x10] sm:$0xff] %v2017
      %2027 = vst [vmem:[#allocation3 + $0x18] sm:$0xff] %v2019
      %v2028 = vld [vmem:[#allocation2] sm:$0xff]
      %v2029 = vld [vmem:[#allocation2 + $0x8] sm:$0xf]
      %v2030 = vld [vmem:[#allocation2 + $0x10] sm:$0xff]
      %v2031 = vld [vmem:[#allocation2 + $0x18] sm:$0xf]
      %v2032 = vld [vmem:[#allocation2 + $0x20] sm:$0xff]
      %v2033 = vld [vmem:[#allocation2 + $0x28] sm:$0xf]
      %v2034 = vld [vmem:[#allocation2 + $0x30] sm:$0xff]
      %v2035 = vld [vmem:[#allocation2 + $0x38] sm:$0xf]
      %2044 = vrot.lane.b32.xlu0 %v2028, 16
      %v2045 = vpop.permute.xlu0 %2044
      %2046 = vrot.lane.b32.xlu0 %v2029, 16
      %v2047 = vpop.permute.xlu0 %2046
      %2048 = vrot.lane.b32.xlu0 %v2030, 16
      %v2049 = vpop.permute.xlu0 %2048
      %2050 = vrot.lane.b32.xlu0 %v2031, 16
      %v2051 = vpop.permute.xlu0 %2050
      %2052 = vrot.lane.b32.xlu0 %v2032, 16
      %v2053 = vpop.permute.xlu0 %2052
      %2054 = vrot.lane.b32.xlu0 %v2033, 16
      %v2055 = vpop.permute.xlu0 %2054
      %2056 = vrot.lane.b32.xlu0 %v2034, 16
      %v2057 = vpop.permute.xlu0 %2056
      %2058 = vrot.lane.b32.xlu0 %v2035, 16
      %v2059 = vpop.permute.xlu0 %2058
      %v2060 = vrot.slane %v2045, 4
      %v2061 = vrot.slane %v2047, 4
      %v2062 = vrot.slane %v2049, 4
      %v2063 = vrot.slane %v2051, 4
      %v2064 = vrot.slane %v2053, 4
      %v2065 = vrot.slane %v2055, 4
      %v2066 = vrot.slane %v2057, 4
      %v2067 = vrot.slane %v2059, 4
      %v2068 = vsel %vm991, %v2060, %v2061
      %v2069 = vsel %vm1049, %v2045, %v2068
      %v2070 = vsel %vm991, %v2062, %v2063
      %v2071 = vsel %vm1049, %v2049, %v2070
      %v2072 = vsel %vm991, %v2064, %v2065
      %v2073 = vsel %vm1049, %v2053, %v2072
      %v2074 = vsel %vm991, %v2066, %v2067
      %v2075 = vsel %vm1049, %v2057, %v2074
      %2080 = vst [vmem:[#allocation3 + $0x20] sm:$0xff] %v2069
      %2081 = vst [vmem:[#allocation3 + $0x28] sm:$0xff] %v2071
      %2082 = vst [vmem:[#allocation3 + $0x30] sm:$0xff] %v2073
      %2083 = vst [vmem:[#allocation3 + $0x38] sm:$0xff] %v2075
      %v2084 = vld [vmem:[#allocation2] sm:$0xff]
      %v2085 = vld [vmem:[#allocation2 + $0x8] sm:$0xf]
      %v2086 = vld [vmem:[#allocation2 + $0x10] sm:$0xff]
      %v2087 = vld [vmem:[#allocation2 + $0x18] sm:$0xf]
      %v2088 = vld [vmem:[#allocation2 + $0x20] sm:$0xff]
      %v2089 = vld [vmem:[#allocation2 + $0x28] sm:$0xf]
      %v2090 = vld [vmem:[#allocation2 + $0x30] sm:$0xff]
      %v2091 = vld [vmem:[#allocation2 + $0x38] sm:$0xf]
      %v2092 = vsel %vm387, %v2084, 0
      %v2093 = vsel %vm388, %v2085, 0
      %v2094 = vsel %vm387, %v2086, 0
      %v2095 = vsel %vm388, %v2087, 0
      %v2096 = vsel %vm387, %v2088, 0
      %v2097 = vsel %vm388, %v2089, 0
      %v2098 = vsel %vm387, %v2090, 0
      %v2099 = vsel %vm388, %v2091, 0
      %2108 = vrot.lane.b32.xlu0 %v2092, 15
      %v2109 = vpop.permute.xlu0 %2108
      %2110 = vrot.lane.b32.xlu0 %v2093, 15
      %v2111 = vpop.permute.xlu0 %2110
      %2112 = vrot.lane.b32.xlu0 %v2094, 15
      %v2113 = vpop.permute.xlu0 %2112
      %2114 = vrot.lane.b32.xlu0 %v2095, 15
      %v2115 = vpop.permute.xlu0 %2114
      %2116 = vrot.lane.b32.xlu0 %v2096, 15
      %v2117 = vpop.permute.xlu0 %2116
      %2118 = vrot.lane.b32.xlu0 %v2097, 15
      %v2119 = vpop.permute.xlu0 %2118
      %2120 = vrot.lane.b32.xlu0 %v2098, 15
      %v2121 = vpop.permute.xlu0 %2120
      %2122 = vrot.lane.b32.xlu0 %v2099, 15
      %v2123 = vpop.permute.xlu0 %2122
      %v2124 = vrot.slane %v2109, 4
      %v2125 = vrot.slane %v2111, 4
      %v2126 = vrot.slane %v2113, 4
      %v2127 = vrot.slane %v2115, 4
      %v2128 = vrot.slane %v2117, 4
      %v2129 = vrot.slane %v2119, 4
      %v2130 = vrot.slane %v2121, 4
      %v2131 = vrot.slane %v2123, 4
      %v2132 = vsel %vm991, %v2124, %v2125
      %v2133 = vsel %vm707, %v2109, %v2132
      %v2134 = vsel %vm991, %v2126, %v2127
      %v2135 = vsel %vm707, %v2113, %v2134
      %v2136 = vsel %vm991, %v2128, %v2129
      %v2137 = vsel %vm707, %v2117, %v2136
      %v2138 = vsel %vm991, %v2130, %v2131
      %v2139 = vsel %vm707, %v2121, %v2138
      %2144 = vst [vmem:[#allocation3 + $0x40] sm:$0xff] %v2133
      %2145 = vst [vmem:[#allocation3 + $0x48] sm:$0xff] %v2135
      %2146 = vst [vmem:[#allocation3 + $0x50] sm:$0xff] %v2137
      %2147 = vst [vmem:[#allocation3 + $0x58] sm:$0xff] %v2139
      %v2148 = vld [vmem:[#allocation3] sm:$0xff]
      %v2149 = vld [vmem:[#allocation3 + $0x8] sm:$0xff]
      %v2150 = vld [vmem:[#allocation3 + $0x10] sm:$0xff]
      %v2151 = vld [vmem:[#allocation3 + $0x18] sm:$0xff]
      %v2152 = vld [vmem:[#allocation3 + $0x20] sm:$0xff]
      %v2153 = vld [vmem:[#allocation3 + $0x28] sm:$0xff]
      %v2154 = vld [vmem:[#allocation3 + $0x30] sm:$0xff]
      %v2155 = vld [vmem:[#allocation3 + $0x38] sm:$0xff]
      %v2156 = vld [vmem:[#allocation3 + $0x40] sm:$0xff]
      %v2157 = vld [vmem:[#allocation3 + $0x48] sm:$0xff]
      %v2158 = vld [vmem:[#allocation3 + $0x50] sm:$0xff]
      %v2159 = vld [vmem:[#allocation3 + $0x58] sm:$0xff]
      %v2160 = vld [vmem:[#allocation2] sm:$0xff]
      %v2161 = vld [vmem:[#allocation2 + $0x8] sm:$0xf]
      %v2162 = vld [vmem:[#allocation2 + $0x10] sm:$0xff]
      %v2163 = vld [vmem:[#allocation2 + $0x18] sm:$0xf]
      %v2164 = vld [vmem:[#allocation2 + $0x20] sm:$0xff]
      %v2165 = vld [vmem:[#allocation2 + $0x28] sm:$0xf]
      %v2166 = vld [vmem:[#allocation2 + $0x30] sm:$0xff]
      %v2167 = vld [vmem:[#allocation2 + $0x38] sm:$0xf]
      %v2168 = vsel %vm460, %v2160, 0
      %v2169 = vsel %vm461, %v2161, 0
      %v2170 = vsel %vm460, %v2162, 0
      %v2171 = vsel %vm461, %v2163, 0
      %v2172 = vsel %vm460, %v2164, 0
      %v2173 = vsel %vm461, %v2165, 0
      %v2174 = vsel %vm460, %v2166, 0
      %v2175 = vsel %vm461, %v2167, 0
      %2184 = vrot.lane.b32.xlu0 %v2168, 1
      %v2185 = vpop.permute.xlu0 %2184
      %2186 = vrot.lane.b32.xlu0 %v2169, 1
      %v2187 = vpop.permute.xlu0 %2186
      %2188 = vrot.lane.b32.xlu0 %v2170, 1
      %v2189 = vpop.permute.xlu0 %2188
      %2190 = vrot.lane.b32.xlu0 %v2171, 1
      %v2191 = vpop.permute.xlu0 %2190
      %2192 = vrot.lane.b32.xlu0 %v2172, 1
      %v2193 = vpop.permute.xlu0 %2192
      %2194 = vrot.lane.b32.xlu0 %v2173, 1
      %v2195 = vpop.permute.xlu0 %2194
      %2196 = vrot.lane.b32.xlu0 %v2174, 1
      %v2197 = vpop.permute.xlu0 %2196
      %2198 = vrot.lane.b32.xlu0 %v2175, 1
      %v2199 = vpop.permute.xlu0 %2198
      %v2200 = vrot.slane %v2185, 4
      %v2201 = vrot.slane %v2187, 4
      %v2202 = vrot.slane %v2189, 4
      %v2203 = vrot.slane %v2191, 4
      %v2204 = vrot.slane %v2193, 4
      %v2205 = vrot.slane %v2195, 4
      %v2206 = vrot.slane %v2197, 4
      %v2207 = vrot.slane %v2199, 4
      %v2208 = vsel %vm991, %v2200, %v2201
      %v2209 = vsel %vm469, %v2185, %v2208
      %v2210 = vsel %vm991, %v2202, %v2203
      %v2211 = vsel %vm469, %v2189, %v2210
      %v2212 = vsel %vm991, %v2204, %v2205
      %v2213 = vsel %vm469, %v2193, %v2212
      %v2214 = vsel %vm991, %v2206, %v2207
      %v2215 = vsel %vm469, %v2197, %v2214
      %2220 = vst [vmem:[#allocation3] sm:$0xff] %v2209
      %2221 = vst [vmem:[#allocation3 + $0x8] sm:$0xff] %v2211
      %2222 = vst [vmem:[#allocation3 + $0x10] sm:$0xff] %v2213
      %2223 = vst [vmem:[#allocation3 + $0x18] sm:$0xff] %v2215
      %v2224 = vld [vmem:[#allocation2 + $0x4] sm:$0xff]
      %v2225 = vld [vmem:[#allocation2 + $0x14] sm:$0xff]
      %v2226 = vld [vmem:[#allocation2 + $0x24] sm:$0xff]
      %v2227 = vld [vmem:[#allocation2 + $0x34] sm:$0xff]
      %2228 = vst [vmem:[#allocation3 + $0x20] sm:$0xff] %v2224
      %2229 = vst [vmem:[#allocation3 + $0x28] sm:$0xff] %v2225
      %2230 = vst [vmem:[#allocation3 + $0x30] sm:$0xff] %v2226
      %2231 = vst [vmem:[#allocation3 + $0x38] sm:$0xff] %v2227
      %v2232 = vld [vmem:[#allocation2 + $0x4] sm:$0xff]
      %v2233 = vld [vmem:[#allocation2 + $0xc] sm:$0xf]
      %v2234 = vld [vmem:[#allocation2 + $0x14] sm:$0xff]
      %v2235 = vld [vmem:[#allocation2 + $0x1c] sm:$0xf]
      %v2236 = vld [vmem:[#allocation2 + $0x24] sm:$0xff]
      %v2237 = vld [vmem:[#allocation2 + $0x2c] sm:$0xf]
      %v2238 = vld [vmem:[#allocation2 + $0x34] sm:$0xff]
      %v2239 = vld [vmem:[#allocation2 + $0x3c] sm:$0xf]
      %v2240 = vsel %vm471, %v2232, 0
      %v2241 = vsel %vm472, %v2233, 0
      %v2242 = vsel %vm471, %v2234, 0
      %v2243 = vsel %vm472, %v2235, 0
      %v2244 = vsel %vm471, %v2236, 0
      %v2245 = vsel %vm472, %v2237, 0
      %v2246 = vsel %vm471, %v2238, 0
      %v2247 = vsel %vm472, %v2239, 0
      %2256 = vrot.lane.b32.xlu0 %v2240, 127
      %v2257 = vpop.permute.xlu0 %2256
      %2258 = vrot.lane.b32.xlu0 %v2241, 127
      %v2259 = vpop.permute.xlu0 %2258
      %2260 = vrot.lane.b32.xlu0 %v2242, 127
      %v2261 = vpop.permute.xlu0 %2260
      %2262 = vrot.lane.b32.xlu0 %v2243, 127
      %v2263 = vpop.permute.xlu0 %2262
      %2264 = vrot.lane.b32.xlu0 %v2244, 127
      %v2265 = vpop.permute.xlu0 %2264
      %2266 = vrot.lane.b32.xlu0 %v2245, 127
      %v2267 = vpop.permute.xlu0 %2266
      %2268 = vrot.lane.b32.xlu0 %v2246, 127
      %v2269 = vpop.permute.xlu0 %2268
      %2270 = vrot.lane.b32.xlu0 %v2247, 127
      %v2271 = vpop.permute.xlu0 %2270
      %v2272 = vrot.slane %v2257, 4
      %v2273 = vrot.slane %v2259, 4
      %v2274 = vrot.slane %v2261, 4
      %v2275 = vrot.slane %v2263, 4
      %v2276 = vrot.slane %v2265, 4
      %v2277 = vrot.slane %v2267, 4
      %v2278 = vrot.slane %v2269, 4
      %v2279 = vrot.slane %v2271, 4
      %v2280 = vsel %vm991, %v2272, %v2273
      %v2281 = vsel %vm416, %v2257, %v2280
      %v2282 = vsel %vm991, %v2274, %v2275
      %v2283 = vsel %vm416, %v2261, %v2282
      %v2284 = vsel %vm991, %v2276, %v2277
      %v2285 = vsel %vm416, %v2265, %v2284
      %v2286 = vsel %vm991, %v2278, %v2279
      %v2287 = vsel %vm416, %v2269, %v2286
      %2292 = vst [vmem:[#allocation3 + $0x40] sm:$0xff] %v2281
      %2293 = vst [vmem:[#allocation3 + $0x48] sm:$0xff] %v2283
      %2294 = vst [vmem:[#allocation3 + $0x50] sm:$0xff] %v2285
      %2295 = vst [vmem:[#allocation3 + $0x58] sm:$0xff] %v2287
      %v2296 = vld [vmem:[#allocation3] sm:$0xff]
      %v2297 = vld [vmem:[#allocation3 + $0x8] sm:$0xff]
      %v2298 = vld [vmem:[#allocation3 + $0x10] sm:$0xff]
      %v2299 = vld [vmem:[#allocation3 + $0x18] sm:$0xff]
      %v2300 = vld [vmem:[#allocation3 + $0x20] sm:$0xff]
      %v2301 = vld [vmem:[#allocation3 + $0x28] sm:$0xff]
      %v2302 = vld [vmem:[#allocation3 + $0x30] sm:$0xff]
      %v2303 = vld [vmem:[#allocation3 + $0x38] sm:$0xff]
      %v2304 = vld [vmem:[#allocation3 + $0x40] sm:$0xff]
      %v2305 = vld [vmem:[#allocation3 + $0x48] sm:$0xff]
      %v2306 = vld [vmem:[#allocation3 + $0x50] sm:$0xff]
      %v2307 = vld [vmem:[#allocation3 + $0x58] sm:$0xff]
      %v2312 = vunpack.c.l.b16 %v1951
      %v2313 = vunpack.c.l.b16 %v1952
      %v2314 = vunpack.c.l.b16 %v1953
      %v2315 = vunpack.c.l.b16 %v1954
      %v2316 = vpack.c.b16 %v2313, %v2312
      %v2317 = vpack.c.b16 %v2315, %v2314
      %v2330 = vunpack.c.l.b16 %v2296
      %v2331 = vunpack.c.h.b16 %v2296
      %v2332 = vunpack.c.l.b16 %v2297
      %v2333 = vunpack.c.h.b16 %v2297
      %v2334 = vunpack.c.l.b16 %v2298
      %v2335 = vunpack.c.h.b16 %v2298
      %v2336 = vunpack.c.l.b16 %v2299
      %v2337 = vunpack.c.h.b16 %v2299
      %v2338 = vunpack.c.l.b16 %v2300
      %v2339 = vunpack.c.h.b16 %v2300
      %v2340 = vunpack.c.l.b16 %v2301
      %v2341 = vunpack.c.h.b16 %v2301
      %v2342 = vunpack.c.l.b16 %v2302
      %v2343 = vunpack.c.h.b16 %v2302
      %v2344 = vunpack.c.l.b16 %v2303
      %v2345 = vunpack.c.h.b16 %v2303
      %v2346 = vunpack.c.l.b16 %v2304
      %v2347 = vunpack.c.h.b16 %v2304
      %v2348 = vunpack.c.l.b16 %v2305
      %v2349 = vunpack.c.h.b16 %v2305
      %v2350 = vunpack.c.l.b16 %v2306
      %v2351 = vunpack.c.h.b16 %v2306
      %v2352 = vunpack.c.l.b16 %v2307
      %v2353 = vunpack.c.h.b16 %v2307
      %v2354 = vpack.c.b16 %v2332, %v2330
      %v2355 = vpack.c.b16 %v2333, %v2331
      %v2356 = vpack.c.b16 %v2336, %v2334
      %v2357 = vpack.c.b16 %v2337, %v2335
      %v2358 = vpack.c.b16 %v2340, %v2338
      %v2359 = vpack.c.b16 %v2341, %v2339
      %v2360 = vpack.c.b16 %v2344, %v2342
      %v2361 = vpack.c.b16 %v2345, %v2343
      %v2362 = vpack.c.b16 %v2348, %v2346
      %v2363 = vpack.c.b16 %v2349, %v2347
      %v2364 = vpack.c.b16 %v2352, %v2350
      %v2365 = vpack.c.b16 %v2353, %v2351
      %v2379 = vsel %vm1359, %v2316, 0
      %v2382 = vsel %vm1359, %v2317, 0
      %2384 = vmatprep.subr.bf16.mxu0 0
      %2385 = vmatpush1.bf16.msra.mxu0 0
      %2386 = vmatprep.subr.bf16.mxu0 0
      %2387 = vmatpush1.bf16.msra.mxu0 0
      %2388 = vmatprep.subr.bf16.mxu0 %v2365
      %2389 = vmatpush1.bf16.msra.mxu0 %v2364
      %2390 = vmatprep.subr.bf16.mxu0 %v2363
      %2391 = vmatpush1.bf16.msra.mxu0 %v2362
      %2392 = vmatprep.subr.bf16.mxu0 %v2361
      %2393 = vmatpush1.bf16.msra.mxu0 %v2360
      %2394 = vmatprep.subr.bf16.mxu0 %v2359
      %2395 = vmatpush1.bf16.msra.mxu0 %v2358
      %2396 = vmatprep.subr.bf16.mxu0 %v2357
      %2397 = vmatpush1.bf16.msra.mxu0 %v2356
      %2398 = vmatprep.subr.bf16.mxu0 %v2355
      %2399 = vmatpush1.bf16.msra.mxu0 %v2354
      %2400 = vmatprep.subr.bf16.mxu0 0
      %2401 = vmatpush2.bf16.msra.mxu0 0
      %2402 = vmatprep.subr.bf16.mxu0 0
      %2403 = vmatpush2.bf16.msra.mxu0 0
      %2404 = vmatprep.subr.bf16.mxu0 0
      %2405 = vmatpush2.bf16.msra.mxu0 0
      %2406 = vmatprep.subr.bf16.mxu0 0
      %2407 = vmatpush2.bf16.msra.mxu0 0
      %2408 = vmatprep.subr.bf16.mxu0 0
      %2409 = vmatpush2.bf16.msra.mxu0 0
      %2410 = vmatprep.subr.bf16.mxu0 0
      %2411 = vmatpush2.bf16.msra.mxu0 0
      %2412 = vmatprep.subr.bf16.mxu0 0
      %2413 = vmatpush2.bf16.msra.mxu0 0
      %2414 = vmatprep.subr.bf16.mxu0 0
      %2415 = vmatpush2.bf16.msra.mxu0 0
      %2416 = vmatprep.mubr.bf16.mxu0 0
      %2417 = vmatmul.mubr.bf16.gmra.mxu0 %v2379
      %v2418 = vpop.f32.mrf.mxu0
      %v2419 = vadd.f32 0.0, %v2418
      %v2420 = vpop.f32.mrf.mxu0
      %v2421 = vadd.f32 0.0, %v2420
      %v2422 = vpop.f32.mrf.mxu0
      %v2423 = vadd.f32 0.0, %v2422
      %v2424 = vpop.f32.mrf.mxu0
      %v2425 = vadd.f32 0.0, %v2424
      %2426 = vmatprep.mubr.bf16.mxu0 0
      %2427 = vmatmul.mubr.bf16.gmra.mxu0 %v2382
      %v2428 = vpop.f32.mrf.mxu0
      %v2429 = vadd.f32 0.0, %v2428
      %v2430 = vpop.f32.mrf.mxu0
      %v2431 = vadd.f32 0.0, %v2430
      %v2432 = vpop.f32.mrf.mxu0
      %v2433 = vadd.f32 0.0, %v2432
      %v2434 = vpop.f32.mrf.mxu0
      %v2435 = vadd.f32 0.0, %v2434
      %2436 = vdwg.mxu0
      %v2441 = vunpack.c.l.b16 %v1947
      %v2442 = vunpack.c.l.b16 %v1948
      %v2443 = vunpack.c.l.b16 %v1949
      %v2444 = vunpack.c.l.b16 %v1950
      %v2445 = vpack.c.b16 %v2442, %v2441
      %v2446 = vpack.c.b16 %v2444, %v2443
      %v2459 = vunpack.c.l.b16 %v2148
      %v2460 = vunpack.c.h.b16 %v2148
      %v2461 = vunpack.c.l.b16 %v2149
      %v2462 = vunpack.c.h.b16 %v2149
      %v2463 = vunpack.c.l.b16 %v2150
      %v2464 = vunpack.c.h.b16 %v2150
      %v2465 = vunpack.c.l.b16 %v2151
      %v2466 = vunpack.c.h.b16 %v2151
      %v2467 = vunpack.c.l.b16 %v2152
      %v2468 = vunpack.c.h.b16 %v2152
      %v2469 = vunpack.c.l.b16 %v2153
      %v2470 = vunpack.c.h.b16 %v2153
      %v2471 = vunpack.c.l.b16 %v2154
      %v2472 = vunpack.c.h.b16 %v2154
      %v2473 = vunpack.c.l.b16 %v2155
      %v2474 = vunpack.c.h.b16 %v2155
      %v2475 = vunpack.c.l.b16 %v2156
      %v2476 = vunpack.c.h.b16 %v2156
      %v2477 = vunpack.c.l.b16 %v2157
      %v2478 = vunpack.c.h.b16 %v2157
      %v2479 = vunpack.c.l.b16 %v2158
      %v2480 = vunpack.c.h.b16 %v2158
      %v2481 = vunpack.c.l.b16 %v2159
      %v2482 = vunpack.c.h.b16 %v2159
      %v2483 = vpack.c.b16 %v2461, %v2459
      %v2484 = vpack.c.b16 %v2462, %v2460
      %v2485 = vpack.c.b16 %v2465, %v2463
      %v2486 = vpack.c.b16 %v2466, %v2464
      %v2487 = vpack.c.b16 %v2469, %v2467
      %v2488 = vpack.c.b16 %v2470, %v2468
      %v2489 = vpack.c.b16 %v2473, %v2471
      %v2490 = vpack.c.b16 %v2474, %v2472
      %v2491 = vpack.c.b16 %v2477, %v2475
      %v2492 = vpack.c.b16 %v2478, %v2476
      %v2493 = vpack.c.b16 %v2481, %v2479
      %v2494 = vpack.c.b16 %v2482, %v2480
      %v2508 = vsel %vm1359, %v2445, 0
      %v2511 = vsel %vm1359, %v2446, 0
      %2513 = vmatprep.subr.bf16.mxu0 0
      %2514 = vmatpush1.bf16.msra.mxu0 0
      %2515 = vmatprep.subr.bf16.mxu0 0
      %2516 = vmatpush1.bf16.msra.mxu0 0
      %2517 = vmatprep.subr.bf16.mxu0 %v2494
      %2518 = vmatpush1.bf16.msra.mxu0 %v2493
      %2519 = vmatprep.subr.bf16.mxu0 %v2492
      %2520 = vmatpush1.bf16.msra.mxu0 %v2491
      %2521 = vmatprep.subr.bf16.mxu0 %v2490
      %2522 = vmatpush1.bf16.msra.mxu0 %v2489
      %2523 = vmatprep.subr.bf16.mxu0 %v2488
      %2524 = vmatpush1.bf16.msra.mxu0 %v2487
      %2525 = vmatprep.subr.bf16.mxu0 %v2486
      %2526 = vmatpush1.bf16.msra.mxu0 %v2485
      %2527 = vmatprep.subr.bf16.mxu0 %v2484
      %2528 = vmatpush1.bf16.msra.mxu0 %v2483
      %2529 = vmatprep.subr.bf16.mxu0 0
      %2530 = vmatpush2.bf16.msra.mxu0 0
      %2531 = vmatprep.subr.bf16.mxu0 0
      %2532 = vmatpush2.bf16.msra.mxu0 0
      %2533 = vmatprep.subr.bf16.mxu0 0
      %2534 = vmatpush2.bf16.msra.mxu0 0
      %2535 = vmatprep.subr.bf16.mxu0 0
      %2536 = vmatpush2.bf16.msra.mxu0 0
      %2537 = vmatprep.subr.bf16.mxu0 0
      %2538 = vmatpush2.bf16.msra.mxu0 0
      %2539 = vmatprep.subr.bf16.mxu0 0
      %2540 = vmatpush2.bf16.msra.mxu0 0
      %2541 = vmatprep.subr.bf16.mxu0 0
      %2542 = vmatpush2.bf16.msra.mxu0 0
      %2543 = vmatprep.subr.bf16.mxu0 0
      %2544 = vmatpush2.bf16.msra.mxu0 0
      %2545 = vmatprep.mubr.bf16.mxu0 0
      %2546 = vmatmul.mubr.bf16.gmra.mxu0 %v2508
      %v2547 = vpop.f32.mrf.mxu0
      %v2548 = vadd.f32 %v2419, %v2547
      %v2549 = vpop.f32.mrf.mxu0
      %v2550 = vadd.f32 %v2421, %v2549
      %v2551 = vpop.f32.mrf.mxu0
      %v2552 = vadd.f32 %v2423, %v2551
      %v2553 = vpop.f32.mrf.mxu0
      %v2554 = vadd.f32 %v2425, %v2553
      %2555 = vmatprep.mubr.bf16.mxu0 0
      %2556 = vmatmul.mubr.bf16.gmra.mxu0 %v2511
      %v2557 = vpop.f32.mrf.mxu0
      %v2558 = vadd.f32 %v2429, %v2557
      %v2559 = vpop.f32.mrf.mxu0
      %v2560 = vadd.f32 %v2431, %v2559
      %v2561 = vpop.f32.mrf.mxu0
      %v2562 = vadd.f32 %v2433, %v2561
      %v2563 = vpop.f32.mrf.mxu0
      %v2564 = vadd.f32 %v2435, %v2563
      %2565 = vdwg.mxu0
      %v2566 = vld [vmem:[#allocation2 + $0x4] sm:$0xff]
      %v2567 = vld [vmem:[#allocation2 + $0xc] sm:$0xf]
      %v2568 = vld [vmem:[#allocation2 + $0x14] sm:$0xff]
      %v2569 = vld [vmem:[#allocation2 + $0x1c] sm:$0xf]
      %v2570 = vld [vmem:[#allocation2 + $0x24] sm:$0xff]
      %v2571 = vld [vmem:[#allocation2 + $0x2c] sm:$0xf]
      %v2572 = vld [vmem:[#allocation2 + $0x34] sm:$0xff]
      %v2573 = vld [vmem:[#allocation2 + $0x3c] sm:$0xf]
      %v2574 = vsel %vm709, %v2566, 0
      %v2575 = vsel %vm710, %v2567, 0
      %v2576 = vsel %vm709, %v2568, 0
      %v2577 = vsel %vm710, %v2569, 0
      %v2578 = vsel %vm709, %v2570, 0
      %v2579 = vsel %vm710, %v2571, 0
      %v2580 = vsel %vm709, %v2572, 0
      %v2581 = vsel %vm710, %v2573, 0
      %2590 = vrot.lane.b32.xlu0 %v2574, 113
      %v2591 = vpop.permute.xlu0 %2590
      %2592 = vrot.lane.b32.xlu0 %v2575, 113
      %v2593 = vpop.permute.xlu0 %2592
      %2594 = vrot.lane.b32.xlu0 %v2576, 113
      %v2595 = vpop.permute.xlu0 %2594
      %2596 = vrot.lane.b32.xlu0 %v2577, 113
      %v2597 = vpop.permute.xlu0 %2596
      %2598 = vrot.lane.b32.xlu0 %v2578, 113
      %v2599 = vpop.permute.xlu0 %2598
      %2600 = vrot.lane.b32.xlu0 %v2579, 113
      %v2601 = vpop.permute.xlu0 %2600
      %2602 = vrot.lane.b32.xlu0 %v2580, 113
      %v2603 = vpop.permute.xlu0 %2602
      %2604 = vrot.lane.b32.xlu0 %v2581, 113
      %v2605 = vpop.permute.xlu0 %2604
      %v2606 = vrot.slane %v2591, 4
      %v2607 = vrot.slane %v2593, 4
      %v2608 = vrot.slane %v2595, 4
      %v2609 = vrot.slane %v2597, 4
      %v2610 = vrot.slane %v2599, 4
      %v2611 = vrot.slane %v2601, 4
      %v2612 = vrot.slane %v2603, 4
      %v2613 = vrot.slane %v2605, 4
      %v2614 = vsel %vm991, %v2606, %v2607
      %v2615 = vsel %vm385, %v2591, %v2614
      %v2616 = vsel %vm991, %v2608, %v2609
      %v2617 = vsel %vm385, %v2595, %v2616
      %v2618 = vsel %vm991, %v2610, %v2611
      %v2619 = vsel %vm385, %v2599, %v2618
      %v2620 = vsel %vm991, %v2612, %v2613
      %v2621 = vsel %vm385, %v2603, %v2620
      %2626 = vst [vmem:[#allocation3] sm:$0xff] %v2615
      %2627 = vst [vmem:[#allocation3 + $0x8] sm:$0xff] %v2617
      %2628 = vst [vmem:[#allocation3 + $0x10] sm:$0xff] %v2619
      %2629 = vst [vmem:[#allocation3 + $0x18] sm:$0xff] %v2621
      %v2630 = vld [vmem:[#allocation2 + $0x4] sm:$0xff]
      %v2631 = vld [vmem:[#allocation2 + $0xc] sm:$0xf]
      %v2632 = vld [vmem:[#allocation2 + $0x14] sm:$0xff]
      %v2633 = vld [vmem:[#allocation2 + $0x1c] sm:$0xf]
      %v2634 = vld [vmem:[#allocation2 + $0x24] sm:$0xff]
      %v2635 = vld [vmem:[#allocation2 + $0x2c] sm:$0xf]
      %v2636 = vld [vmem:[#allocation2 + $0x34] sm:$0xff]
      %v2637 = vld [vmem:[#allocation2 + $0x3c] sm:$0xf]
      %2646 = vrot.lane.b32.xlu0 %v2630, 112
      %v2647 = vpop.permute.xlu0 %2646
      %2648 = vrot.lane.b32.xlu0 %v2631, 112
      %v2649 = vpop.permute.xlu0 %2648
      %2650 = vrot.lane.b32.xlu0 %v2632, 112
      %v2651 = vpop.permute.xlu0 %2650
      %2652 = vrot.lane.b32.xlu0 %v2633, 112
      %v2653 = vpop.permute.xlu0 %2652
      %2654 = vrot.lane.b32.xlu0 %v2634, 112
      %v2655 = vpop.permute.xlu0 %2654
      %2656 = vrot.lane.b32.xlu0 %v2635, 112
      %v2657 = vpop.permute.xlu0 %2656
      %2658 = vrot.lane.b32.xlu0 %v2636, 112
      %v2659 = vpop.permute.xlu0 %2658
      %2660 = vrot.lane.b32.xlu0 %v2637, 112
      %v2661 = vpop.permute.xlu0 %2660
      %v2662 = vrot.slane %v2647, 4
      %v2663 = vrot.slane %v2649, 4
      %v2664 = vrot.slane %v2651, 4
      %v2665 = vrot.slane %v2653, 4
      %v2666 = vrot.slane %v2655, 4
      %v2667 = vrot.slane %v2657, 4
      %v2668 = vrot.slane %v2659, 4
      %v2669 = vrot.slane %v2661, 4
      %v2670 = vsel %vm991, %v2662, %v2663
      %v2671 = vsel %vm1653, %v2647, %v2670
      %v2672 = vsel %vm991, %v2664, %v2665
      %v2673 = vsel %vm1653, %v2651, %v2672
      %v2674 = vsel %vm991, %v2666, %v2667
      %v2675 = vsel %vm1653, %v2655, %v2674
      %v2676 = vsel %vm991, %v2668, %v2669
      %v2677 = vsel %vm1653, %v2659, %v2676
      %2682 = vst [vmem:[#allocation3 + $0x20] sm:$0xff] %v2671
      %2683 = vst [vmem:[#allocation3 + $0x28] sm:$0xff] %v2673
      %2684 = vst [vmem:[#allocation3 + $0x30] sm:$0xff] %v2675
      %2685 = vst [vmem:[#allocation3 + $0x38] sm:$0xff] %v2677
      %v2686 = vld [vmem:[#allocation2 + $0x4] sm:$0xff]
      %v2687 = vld [vmem:[#allocation2 + $0xc] sm:$0xf]
      %v2688 = vld [vmem:[#allocation2 + $0x14] sm:$0xff]
      %v2689 = vld [vmem:[#allocation2 + $0x1c] sm:$0xf]
      %v2690 = vld [vmem:[#allocation2 + $0x24] sm:$0xff]
      %v2691 = vld [vmem:[#allocation2 + $0x2c] sm:$0xf]
      %v2692 = vld [vmem:[#allocation2 + $0x34] sm:$0xff]
      %v2693 = vld [vmem:[#allocation2 + $0x3c] sm:$0xf]
      %v2694 = vsel %vm717, %v2686, 0
      %v2695 = vsel %vm718, %v2687, 0
      %v2696 = vsel %vm717, %v2688, 0
      %v2697 = vsel %vm718, %v2689, 0
      %v2698 = vsel %vm717, %v2690, 0
      %v2699 = vsel %vm718, %v2691, 0
      %v2700 = vsel %vm717, %v2692, 0
      %v2701 = vsel %vm718, %v2693, 0
      %2710 = vrot.lane.b32.xlu0 %v2694, 111
      %v2711 = vpop.permute.xlu0 %2710
      %2712 = vrot.lane.b32.xlu0 %v2695, 111
      %v2713 = vpop.permute.xlu0 %2712
      %2714 = vrot.lane.b32.xlu0 %v2696, 111
      %v2715 = vpop.permute.xlu0 %2714
      %2716 = vrot.lane.b32.xlu0 %v2697, 111
      %v2717 = vpop.permute.xlu0 %2716
      %2718 = vrot.lane.b32.xlu0 %v2698, 111
      %v2719 = vpop.permute.xlu0 %2718
      %2720 = vrot.lane.b32.xlu0 %v2699, 111
      %v2721 = vpop.permute.xlu0 %2720
      %2722 = vrot.lane.b32.xlu0 %v2700, 111
      %v2723 = vpop.permute.xlu0 %2722
      %2724 = vrot.lane.b32.xlu0 %v2701, 111
      %v2725 = vpop.permute.xlu0 %2724
      %v2726 = vrot.slane %v2711, 4
      %v2727 = vrot.slane %v2713, 4
      %v2728 = vrot.slane %v2715, 4
      %v2729 = vrot.slane %v2717, 4
      %v2730 = vrot.slane %v2719, 4
      %v2731 = vrot.slane %v2721, 4
      %v2732 = vrot.slane %v2723, 4
      %v2733 = vrot.slane %v2725, 4
      %v2734 = vsel %vm991, %v2726, %v2727
      %v2735 = vsel %vm374, %v2711, %v2734
      %v2736 = vsel %vm991, %v2728, %v2729
      %v2737 = vsel %vm374, %v2715, %v2736
      %v2738 = vsel %vm991, %v2730, %v2731
      %v2739 = vsel %vm374, %v2719, %v2738
      %v2740 = vsel %vm991, %v2732, %v2733
      %v2741 = vsel %vm374, %v2723, %v2740
      %2746 = vst [vmem:[#allocation3 + $0x40] sm:$0xff] %v2735
      %2747 = vst [vmem:[#allocation3 + $0x48] sm:$0xff] %v2737
      %2748 = vst [vmem:[#allocation3 + $0x50] sm:$0xff] %v2739
      %2749 = vst [vmem:[#allocation3 + $0x58] sm:$0xff] %v2741
      %v2750 = vld [vmem:[#allocation3] sm:$0xff]
      %v2751 = vld [vmem:[#allocation3 + $0x8] sm:$0xff]
      %v2752 = vld [vmem:[#allocation3 + $0x10] sm:$0xff]
      %v2753 = vld [vmem:[#allocation3 + $0x18] sm:$0xff]
      %v2754 = vld [vmem:[#allocation3 + $0x20] sm:$0xff]
      %v2755 = vld [vmem:[#allocation3 + $0x28] sm:$0xff]
      %v2756 = vld [vmem:[#allocation3 + $0x30] sm:$0xff]
      %v2757 = vld [vmem:[#allocation3 + $0x38] sm:$0xff]
      %v2758 = vld [vmem:[#allocation3 + $0x40] sm:$0xff]
      %v2759 = vld [vmem:[#allocation3 + $0x48] sm:$0xff]
      %v2760 = vld [vmem:[#allocation3 + $0x50] sm:$0xff]
      %v2761 = vld [vmem:[#allocation3 + $0x58] sm:$0xff]
      %v2766 = vunpack.c.l.b16 %v1955
      %v2767 = vunpack.c.l.b16 %v1956
      %v2768 = vunpack.c.l.b16 %v1957
      %v2769 = vunpack.c.l.b16 %v1958
      %v2770 = vpack.c.b16 %v2767, %v2766
      %v2771 = vpack.c.b16 %v2769, %v2768
      %v2784 = vunpack.c.l.b16 %v2750
      %v2785 = vunpack.c.h.b16 %v2750
      %v2786 = vunpack.c.l.b16 %v2751
      %v2787 = vunpack.c.h.b16 %v2751
      %v2788 = vunpack.c.l.b16 %v2752
      %v2789 = vunpack.c.h.b16 %v2752
      %v2790 = vunpack.c.l.b16 %v2753
      %v2791 = vunpack.c.h.b16 %v2753
      %v2792 = vunpack.c.l.b16 %v2754
      %v2793 = vunpack.c.h.b16 %v2754
      %v2794 = vunpack.c.l.b16 %v2755
      %v2795 = vunpack.c.h.b16 %v2755
      %v2796 = vunpack.c.l.b16 %v2756
      %v2797 = vunpack.c.h.b16 %v2756
      %v2798 = vunpack.c.l.b16 %v2757
      %v2799 = vunpack.c.h.b16 %v2757
      %v2800 = vunpack.c.l.b16 %v2758
      %v2801 = vunpack.c.h.b16 %v2758
      %v2802 = vunpack.c.l.b16 %v2759
      %v2803 = vunpack.c.h.b16 %v2759
      %v2804 = vunpack.c.l.b16 %v2760
      %v2805 = vunpack.c.h.b16 %v2760
      %v2806 = vunpack.c.l.b16 %v2761
      %v2807 = vunpack.c.h.b16 %v2761
      %v2808 = vpack.c.b16 %v2786, %v2784
      %v2809 = vpack.c.b16 %v2787, %v2785
      %v2810 = vpack.c.b16 %v2790, %v2788
      %v2811 = vpack.c.b16 %v2791, %v2789
      %v2812 = vpack.c.b16 %v2794, %v2792
      %v2813 = vpack.c.b16 %v2795, %v2793
      %v2814 = vpack.c.b16 %v2798, %v2796
      %v2815 = vpack.c.b16 %v2799, %v2797
      %v2816 = vpack.c.b16 %v2802, %v2800
      %v2817 = vpack.c.b16 %v2803, %v2801
      %v2818 = vpack.c.b16 %v2806, %v2804
      %v2819 = vpack.c.b16 %v2807, %v2805
      %v2833 = vsel %vm1359, %v2770, 0
      %v2836 = vsel %vm1359, %v2771, 0
      %2838 = vmatprep.subr.bf16.mxu0 0
      %2839 = vmatpush1.bf16.msra.mxu0 0
      %2840 = vmatprep.subr.bf16.mxu0 0
      %2841 = vmatpush1.bf16.msra.mxu0 0
      %2842 = vmatprep.subr.bf16.mxu0 %v2819
      %2843 = vmatpush1.bf16.msra.mxu0 %v2818
      %2844 = vmatprep.subr.bf16.mxu0 %v2817
      %2845 = vmatpush1.bf16.msra.mxu0 %v2816
      %2846 = vmatprep.subr.bf16.mxu0 %v2815
      %2847 = vmatpush1.bf16.msra.mxu0 %v2814
      %2848 = vmatprep.subr.bf16.mxu0 %v2813
      %2849 = vmatpush1.bf16.msra.mxu0 %v2812
      %2850 = vmatprep.subr.bf16.mxu0 %v2811
      %2851 = vmatpush1.bf16.msra.mxu0 %v2810
      %2852 = vmatprep.subr.bf16.mxu0 %v2809
      %2853 = vmatpush1.bf16.msra.mxu0 %v2808
      %2854 = vmatprep.subr.bf16.mxu0 0
      %2855 = vmatpush2.bf16.msra.mxu0 0
      %2856 = vmatprep.subr.bf16.mxu0 0
      %2857 = vmatpush2.bf16.msra.mxu0 0
      %2858 = vmatprep.subr.bf16.mxu0 0
      %2859 = vmatpush2.bf16.msra.mxu0 0
      %2860 = vmatprep.subr.bf16.mxu0 0
      %2861 = vmatpush2.bf16.msra.mxu0 0
      %2862 = vmatprep.subr.bf16.mxu0 0
      %2863 = vmatpush2.bf16.msra.mxu0 0
      %2864 = vmatprep.subr.bf16.mxu0 0
      %2865 = vmatpush2.bf16.msra.mxu0 0
      %2866 = vmatprep.subr.bf16.mxu0 0
      %2867 = vmatpush2.bf16.msra.mxu0 0
      %2868 = vmatprep.subr.bf16.mxu0 0
      %2869 = vmatpush2.bf16.msra.mxu0 0
      %2870 = vmatprep.mubr.bf16.mxu0 0
      %2871 = vmatmul.mubr.bf16.gmra.mxu0 %v2833
      %v2872 = vpop.f32.mrf.mxu0
      %v2873 = vadd.f32 0.0, %v2872
      %v2874 = vpop.f32.mrf.mxu0
      %v2875 = vadd.f32 0.0, %v2874
      %v2876 = vpop.f32.mrf.mxu0
      %v2877 = vadd.f32 0.0, %v2876
      %v2878 = vpop.f32.mrf.mxu0
      %v2879 = vadd.f32 0.0, %v2878
      %2880 = vmatprep.mubr.bf16.mxu0 0
      %2881 = vmatmul.mubr.bf16.gmra.mxu0 %v2836
      %v2882 = vpop.f32.mrf.mxu0
      %v2883 = vadd.f32 0.0, %v2882
      %v2884 = vpop.f32.mrf.mxu0
      %v2885 = vadd.f32 0.0, %v2884
      %v2886 = vpop.f32.mrf.mxu0
      %v2887 = vadd.f32 0.0, %v2886
      %v2888 = vpop.f32.mrf.mxu0
      %v2889 = vadd.f32 0.0, %v2888
      %2890 = vdwg.mxu0
      %v2891 = vadd.f32 %v2548, %v2873
      %v2892 = vadd.f32 %v2550, %v2875
      %v2893 = vadd.f32 %v2552, %v2877
      %v2894 = vadd.f32 %v2554, %v2879
      %v2895 = vadd.f32 %v2558, %v2883
      %v2896 = vadd.f32 %v2560, %v2885
      %v2897 = vadd.f32 %v2562, %v2887
      %v2898 = vadd.f32 %v2564, %v2889
      %2900 = vset.pattern.permute.xlu0 0
      %2901 = vperm.xlu0 %2900, %v1960
      %v2902 = vpop.permute.xlu0 %2901
      %2905 = vset.pattern.permute.xlu0 0
      %2906 = vperm.xlu0 %2905, %v1961
      %v2907 = vpop.permute.xlu0 %2906
      %2910 = vset.pattern.permute.xlu0 0
      %2911 = vperm.xlu0 %2910, %v1962
      %v2912 = vpop.permute.xlu0 %2911
      %2915 = vset.pattern.permute.xlu0 0
      %2916 = vperm.xlu0 %2915, %v1963
      %v2917 = vpop.permute.xlu0 %2916
      %v2919 = vadd.f32 %v2891, %v2902
      %v2920 = vadd.f32 %v2892, %v2902
      %v2921 = vadd.f32 %v2893, %v2907
      %v2922 = vadd.f32 %v2894, %v2907
      %v2923 = vadd.f32 %v2895, %v2912
      %v2924 = vadd.f32 %v2896, %v2912
      %v2925 = vadd.f32 %v2897, %v2917
      %v2926 = vadd.f32 %v2898, %v2917
      %v2927 = vmax.f32 %v2919, 0.0
      %v2928 = vmax.f32 %v2920, 0.0
      %v2929 = vmax.f32 %v2921, 0.0
      %v2930 = vmax.f32 %v2922, 0.0
      %v2931 = vmax.f32 %v2923, 0.0
      %v2932 = vmax.f32 %v2924, 0.0
      %v2933 = vmax.f32 %v2925, 0.0
      %v2934 = vmax.f32 %v2926, 0.0
      %v2935 = vpack.c.bf16 %v2929, %v2927
      %v2936 = vpack.c.bf16 %v2930, %v2928
      %v2937 = vpack.c.bf16 %v2933, %v2931
      %v2938 = vpack.c.bf16 %v2934, %v2932
      %v2943 = vunpack.c.l.b16 %v2935
      %v2944 = vunpack.c.l.b16 %v2936
      %v2945 = vunpack.c.h.b16 %v2935
      %v2946 = vunpack.c.h.b16 %v2936
      %v2947 = vunpack.c.l.b16 %v2937
      %v2948 = vunpack.c.l.b16 %v2938
      %v2949 = vunpack.c.h.b16 %v2937
      %v2950 = vunpack.c.h.b16 %v2938
      %v2951 = vpack.c.b16 %v2944, %v2943
      %v2952 = vpack.c.b16 %v2946, %v2945
      %v2953 = vpack.c.b16 %v2948, %v2947
      %v2954 = vpack.c.b16 %v2950, %v2949
      %2959 = vst [vmem:[#allocation2 + $0x4] sm:$0xff] %v2951
      %2960 = vst [vmem:[#allocation2 + $0x14] sm:$0xff] %v2952
      %2961 = vst [vmem:[#allocation2 + $0x24] sm:$0xff] %v2953
      %2962 = vst [vmem:[#allocation2 + $0x34] sm:$0xff] %v2954
      %s2963 = scalar_lea.vmem %s3, 96
      %v2964 = vld [vmem:[%s2963] sm:$0xf]
      %v2965 = vld [vmem:[%s2963 + $0x4] sm:$0xf]
      %v2966 = vld [vmem:[%s2963 + $0x8] sm:$0xf]
      %v2967 = vld [vmem:[%s2963 + $0xc] sm:$0xf]
      %v2968 = vld [vmem:[%s2963 + $0x10] sm:$0xf]
      %v2969 = vld [vmem:[%s2963 + $0x14] sm:$0xf]
      %v2970 = vld [vmem:[%s2963 + $0x18] sm:$0xf]
      %v2971 = vld [vmem:[%s2963 + $0x1c] sm:$0xf]
      %v2972 = vld [vmem:[%s2963 + $0x20] sm:$0xf]
      %v2973 = vld [vmem:[%s2963 + $0x24] sm:$0xf]
      %v2974 = vld [vmem:[%s2963 + $0x28] sm:$0xf]
      %v2975 = vld [vmem:[%s2963 + $0x2c] sm:$0xf]
      %s2976 = scalar_lea.vmem %s4, 64
      %v2977 = vld [vmem:[%s2976] sm:$0xff]
      %v2978 = vld [vmem:[%s2976 + $0x8] sm:$0xff]
      %v2979 = vld [vmem:[%s2976 + $0x10] sm:$0xff]
      %v2980 = vld [vmem:[%s2976 + $0x18] sm:$0xff]
      %v2981 = vld [vmem:[#allocation2] sm:$0xff]
      %v2982 = vld [vmem:[#allocation2 + $0x8] sm:$0xf]
      %v2983 = vld [vmem:[#allocation2 + $0x10] sm:$0xff]
      %v2984 = vld [vmem:[#allocation2 + $0x18] sm:$0xf]
      %v2985 = vld [vmem:[#allocation2 + $0x20] sm:$0xff]
      %v2986 = vld [vmem:[#allocation2 + $0x28] sm:$0xf]
      %v2987 = vld [vmem:[#allocation2 + $0x30] sm:$0xff]
      %v2988 = vld [vmem:[#allocation2 + $0x38] sm:$0xf]
      %v2989 = vsel %vm376, %v2981, 0
      %v2990 = vsel %vm377, %v2982, 0
      %v2991 = vsel %vm376, %v2983, 0
      %v2992 = vsel %vm377, %v2984, 0
      %v2993 = vsel %vm376, %v2985, 0
      %v2994 = vsel %vm377, %v2986, 0
      %v2995 = vsel %vm376, %v2987, 0
      %v2996 = vsel %vm377, %v2988, 0
      %3005 = vrot.lane.b32.xlu0 %v2989, 17
      %v3006 = vpop.permute.xlu0 %3005
      %3007 = vrot.lane.b32.xlu0 %v2990, 17
      %v3008 = vpop.permute.xlu0 %3007
      %3009 = vrot.lane.b32.xlu0 %v2991, 17
      %v3010 = vpop.permute.xlu0 %3009
      %3011 = vrot.lane.b32.xlu0 %v2992, 17
      %v3012 = vpop.permute.xlu0 %3011
      %3013 = vrot.lane.b32.xlu0 %v2993, 17
      %v3014 = vpop.permute.xlu0 %3013
      %3015 = vrot.lane.b32.xlu0 %v2994, 17
      %v3016 = vpop.permute.xlu0 %3015
      %3017 = vrot.lane.b32.xlu0 %v2995, 17
      %v3018 = vpop.permute.xlu0 %3017
      %3019 = vrot.lane.b32.xlu0 %v2996, 17
      %v3020 = vpop.permute.xlu0 %3019
      %v3021 = vrot.slane %v3006, 4
      %v3022 = vrot.slane %v3008, 4
      %v3023 = vrot.slane %v3010, 4
      %v3024 = vrot.slane %v3012, 4
      %v3025 = vrot.slane %v3014, 4
      %v3026 = vrot.slane %v3016, 4
      %v3027 = vrot.slane %v3018, 4
      %v3028 = vrot.slane %v3020, 4
      %v3029 = vsel %vm991, %v3021, %v3022
      %v3030 = vsel %vm636, %v3006, %v3029
      %v3031 = vsel %vm991, %v3023, %v3024
      %v3032 = vsel %vm636, %v3010, %v3031
      %v3033 = vsel %vm991, %v3025, %v3026
      %v3034 = vsel %vm636, %v3014, %v3033
      %v3035 = vsel %vm991, %v3027, %v3028
      %v3036 = vsel %vm636, %v3018, %v3035
      %3041 = vst [vmem:[#allocation3] sm:$0xff] %v3030
      %3042 = vst [vmem:[#allocation3 + $0x8] sm:$0xff] %v3032
      %3043 = vst [vmem:[#allocation3 + $0x10] sm:$0xff] %v3034
      %3044 = vst [vmem:[#allocation3 + $0x18] sm:$0xff] %v3036
      %v3045 = vld [vmem:[#allocation2] sm:$0xff]
      %v3046 = vld [vmem:[#allocation2 + $0x8] sm:$0xf]
      %v3047 = vld [vmem:[#allocation2 + $0x10] sm:$0xff]
      %v3048 = vld [vmem:[#allocation2 + $0x18] sm:$0xf]
      %v3049 = vld [vmem:[#allocation2 + $0x20] sm:$0xff]
      %v3050 = vld [vmem:[#allocation2 + $0x28] sm:$0xf]
      %v3051 = vld [vmem:[#allocation2 + $0x30] sm:$0xff]
      %v3052 = vld [vmem:[#allocation2 + $0x38] sm:$0xf]
      %3061 = vrot.lane.b32.xlu0 %v3045, 16
      %v3062 = vpop.permute.xlu0 %3061
      %3063 = vrot.lane.b32.xlu0 %v3046, 16
      %v3064 = vpop.permute.xlu0 %3063
      %3065 = vrot.lane.b32.xlu0 %v3047, 16
      %v3066 = vpop.permute.xlu0 %3065
      %3067 = vrot.lane.b32.xlu0 %v3048, 16
      %v3068 = vpop.permute.xlu0 %3067
      %3069 = vrot.lane.b32.xlu0 %v3049, 16
      %v3070 = vpop.permute.xlu0 %3069
      %3071 = vrot.lane.b32.xlu0 %v3050, 16
      %v3072 = vpop.permute.xlu0 %3071
      %3073 = vrot.lane.b32.xlu0 %v3051, 16
      %v3074 = vpop.permute.xlu0 %3073
      %3075 = vrot.lane.b32.xlu0 %v3052, 16
      %v3076 = vpop.permute.xlu0 %3075
      %v3077 = vrot.slane %v3062, 4
      %v3078 = vrot.slane %v3064, 4
      %v3079 = vrot.slane %v3066, 4
      %v3080 = vrot.slane %v3068, 4
      %v3081 = vrot.slane %v3070, 4
      %v3082 = vrot.slane %v3072, 4
      %v3083 = vrot.slane %v3074, 4
      %v3084 = vrot.slane %v3076, 4
      %v3085 = vsel %vm991, %v3077, %v3078
      %v3086 = vsel %vm1049, %v3062, %v3085
      %v3087 = vsel %vm991, %v3079, %v3080
      %v3088 = vsel %vm1049, %v3066, %v3087
      %v3089 = vsel %vm991, %v3081, %v3082
      %v3090 = vsel %vm1049, %v3070, %v3089
      %v3091 = vsel %vm991, %v3083, %v3084
      %v3092 = vsel %vm1049, %v3074, %v3091
      %3097 = vst [vmem:[#allocation3 + $0x20] sm:$0xff] %v3086
      %3098 = vst [vmem:[#allocation3 + $0x28] sm:$0xff] %v3088
      %3099 = vst [vmem:[#allocation3 + $0x30] sm:$0xff] %v3090
      %3100 = vst [vmem:[#allocation3 + $0x38] sm:$0xff] %v3092
      %v3101 = vld [vmem:[#allocation2] sm:$0xff]
      %v3102 = vld [vmem:[#allocation2 + $0x8] sm:$0xf]
      %v3103 = vld [vmem:[#allocation2 + $0x10] sm:$0xff]
      %v3104 = vld [vmem:[#allocation2 + $0x18] sm:$0xf]
      %v3105 = vld [vmem:[#allocation2 + $0x20] sm:$0xff]
      %v3106 = vld [vmem:[#allocation2 + $0x28] sm:$0xf]
      %v3107 = vld [vmem:[#allocation2 + $0x30] sm:$0xff]
      %v3108 = vld [vmem:[#allocation2 + $0x38] sm:$0xf]
      %v3109 = vsel %vm387, %v3101, 0
      %v3110 = vsel %vm388, %v3102, 0
      %v3111 = vsel %vm387, %v3103, 0
      %v3112 = vsel %vm388, %v3104, 0
      %v3113 = vsel %vm387, %v3105, 0
      %v3114 = vsel %vm388, %v3106, 0
      %v3115 = vsel %vm387, %v3107, 0
      %v3116 = vsel %vm388, %v3108, 0
      %3125 = vrot.lane.b32.xlu0 %v3109, 15
      %v3126 = vpop.permute.xlu0 %3125
      %3127 = vrot.lane.b32.xlu0 %v3110, 15
      %v3128 = vpop.permute.xlu0 %3127
      %3129 = vrot.lane.b32.xlu0 %v3111, 15
      %v3130 = vpop.permute.xlu0 %3129
      %3131 = vrot.lane.b32.xlu0 %v3112, 15
      %v3132 = vpop.permute.xlu0 %3131
      %3133 = vrot.lane.b32.xlu0 %v3113, 15
      %v3134 = vpop.permute.xlu0 %3133
      %3135 = vrot.lane.b32.xlu0 %v3114, 15
      %v3136 = vpop.permute.xlu0 %3135
      %3137 = vrot.lane.b32.xlu0 %v3115, 15
      %v3138 = vpop.permute.xlu0 %3137
      %3139 = vrot.lane.b32.xlu0 %v3116, 15
      %v3140 = vpop.permute.xlu0 %3139
      %v3141 = vrot.slane %v3126, 4
      %v3142 = vrot.slane %v3128, 4
      %v3143 = vrot.slane %v3130, 4
      %v3144 = vrot.slane %v3132, 4
      %v3145 = vrot.slane %v3134, 4
      %v3146 = vrot.slane %v3136, 4
      %v3147 = vrot.slane %v3138, 4
      %v3148 = vrot.slane %v3140, 4
      %v3149 = vsel %vm991, %v3141, %v3142
      %v3150 = vsel %vm707, %v3126, %v3149
      %v3151 = vsel %vm991, %v3143, %v3144
      %v3152 = vsel %vm707, %v3130, %v3151
      %v3153 = vsel %vm991, %v3145, %v3146
      %v3154 = vsel %vm707, %v3134, %v3153
      %v3155 = vsel %vm991, %v3147, %v3148
      %v3156 = vsel %vm707, %v3138, %v3155
      %3161 = vst [vmem:[#allocation3 + $0x40] sm:$0xff] %v3150
      %3162 = vst [vmem:[#allocation3 + $0x48] sm:$0xff] %v3152
      %3163 = vst [vmem:[#allocation3 + $0x50] sm:$0xff] %v3154
      %3164 = vst [vmem:[#allocation3 + $0x58] sm:$0xff] %v3156
      %v3165 = vld [vmem:[#allocation3] sm:$0xff]
      %v3166 = vld [vmem:[#allocation3 + $0x8] sm:$0xff]
      %v3167 = vld [vmem:[#allocation3 + $0x10] sm:$0xff]
      %v3168 = vld [vmem:[#allocation3 + $0x18] sm:$0xff]
      %v3169 = vld [vmem:[#allocation3 + $0x20] sm:$0xff]
      %v3170 = vld [vmem:[#allocation3 + $0x28] sm:$0xff]
      %v3171 = vld [vmem:[#allocation3 + $0x30] sm:$0xff]
      %v3172 = vld [vmem:[#allocation3 + $0x38] sm:$0xff]
      %v3173 = vld [vmem:[#allocation3 + $0x40] sm:$0xff]
      %v3174 = vld [vmem:[#allocation3 + $0x48] sm:$0xff]
      %v3175 = vld [vmem:[#allocation3 + $0x50] sm:$0xff]
      %v3176 = vld [vmem:[#allocation3 + $0x58] sm:$0xff]
      %v3177 = vld [vmem:[#allocation2] sm:$0xff]
      %v3178 = vld [vmem:[#allocation2 + $0x8] sm:$0xf]
      %v3179 = vld [vmem:[#allocation2 + $0x10] sm:$0xff]
      %v3180 = vld [vmem:[#allocation2 + $0x18] sm:$0xf]
      %v3181 = vld [vmem:[#allocation2 + $0x20] sm:$0xff]
      %v3182 = vld [vmem:[#allocation2 + $0x28] sm:$0xf]
      %v3183 = vld [vmem:[#allocation2 + $0x30] sm:$0xff]
      %v3184 = vld [vmem:[#allocation2 + $0x38] sm:$0xf]
      %v3185 = vsel %vm460, %v3177, 0
      %v3186 = vsel %vm461, %v3178, 0
      %v3187 = vsel %vm460, %v3179, 0
      %v3188 = vsel %vm461, %v3180, 0
      %v3189 = vsel %vm460, %v3181, 0
      %v3190 = vsel %vm461, %v3182, 0
      %v3191 = vsel %vm460, %v3183, 0
      %v3192 = vsel %vm461, %v3184, 0
      %3201 = vrot.lane.b32.xlu0 %v3185, 1
      %v3202 = vpop.permute.xlu0 %3201
      %3203 = vrot.lane.b32.xlu0 %v3186, 1
      %v3204 = vpop.permute.xlu0 %3203
      %3205 = vrot.lane.b32.xlu0 %v3187, 1
      %v3206 = vpop.permute.xlu0 %3205
      %3207 = vrot.lane.b32.xlu0 %v3188, 1
      %v3208 = vpop.permute.xlu0 %3207
      %3209 = vrot.lane.b32.xlu0 %v3189, 1
      %v3210 = vpop.permute.xlu0 %3209
      %3211 = vrot.lane.b32.xlu0 %v3190, 1
      %v3212 = vpop.permute.xlu0 %3211
      %3213 = vrot.lane.b32.xlu0 %v3191, 1
      %v3214 = vpop.permute.xlu0 %3213
      %3215 = vrot.lane.b32.xlu0 %v3192, 1
      %v3216 = vpop.permute.xlu0 %3215
      %v3217 = vrot.slane %v3202, 4
      %v3218 = vrot.slane %v3204, 4
      %v3219 = vrot.slane %v3206, 4
      %v3220 = vrot.slane %v3208, 4
      %v3221 = vrot.slane %v3210, 4
      %v3222 = vrot.slane %v3212, 4
      %v3223 = vrot.slane %v3214, 4
      %v3224 = vrot.slane %v3216, 4
      %v3225 = vsel %vm991, %v3217, %v3218
      %v3226 = vsel %vm469, %v3202, %v3225
      %v3227 = vsel %vm991, %v3219, %v3220
      %v3228 = vsel %vm469, %v3206, %v3227
      %v3229 = vsel %vm991, %v3221, %v3222
      %v3230 = vsel %vm469, %v3210, %v3229
      %v3231 = vsel %vm991, %v3223, %v3224
      %v3232 = vsel %vm469, %v3214, %v3231
      %3237 = vst [vmem:[#allocation3] sm:$0xff] %v3226
      %3238 = vst [vmem:[#allocation3 + $0x8] sm:$0xff] %v3228
      %3239 = vst [vmem:[#allocation3 + $0x10] sm:$0xff] %v3230
      %3240 = vst [vmem:[#allocation3 + $0x18] sm:$0xff] %v3232
      %v3241 = vld [vmem:[#allocation2 + $0x4] sm:$0xff]
      %v3242 = vld [vmem:[#allocation2 + $0x14] sm:$0xff]
      %v3243 = vld [vmem:[#allocation2 + $0x24] sm:$0xff]
      %v3244 = vld [vmem:[#allocation2 + $0x34] sm:$0xff]
      %3245 = vst [vmem:[#allocation3 + $0x20] sm:$0xff] %v3241
      %3246 = vst [vmem:[#allocation3 + $0x28] sm:$0xff] %v3242
      %3247 = vst [vmem:[#allocation3 + $0x30] sm:$0xff] %v3243
      %3248 = vst [vmem:[#allocation3 + $0x38] sm:$0xff] %v3244
      %v3249 = vld [vmem:[#allocation2 + $0x4] sm:$0xff]
      %v3250 = vld [vmem:[#allocation2 + $0xc] sm:$0xf]
      %v3251 = vld [vmem:[#allocation2 + $0x14] sm:$0xff]
      %v3252 = vld [vmem:[#allocation2 + $0x1c] sm:$0xf]
      %v3253 = vld [vmem:[#allocation2 + $0x24] sm:$0xff]
      %v3254 = vld [vmem:[#allocation2 + $0x2c] sm:$0xf]
      %v3255 = vld [vmem:[#allocation2 + $0x34] sm:$0xff]
      %v3256 = vld [vmem:[#allocation2 + $0x3c] sm:$0xf]
      %v3257 = vsel %vm471, %v3249, 0
      %v3258 = vsel %vm472, %v3250, 0
      %v3259 = vsel %vm471, %v3251, 0
      %v3260 = vsel %vm472, %v3252, 0
      %v3261 = vsel %vm471, %v3253, 0
      %v3262 = vsel %vm472, %v3254, 0
      %v3263 = vsel %vm471, %v3255, 0
      %v3264 = vsel %vm472, %v3256, 0
      %3273 = vrot.lane.b32.xlu0 %v3257, 127
      %v3274 = vpop.permute.xlu0 %3273
      %3275 = vrot.lane.b32.xlu0 %v3258, 127
      %v3276 = vpop.permute.xlu0 %3275
      %3277 = vrot.lane.b32.xlu0 %v3259, 127
      %v3278 = vpop.permute.xlu0 %3277
      %3279 = vrot.lane.b32.xlu0 %v3260, 127
      %v3280 = vpop.permute.xlu0 %3279
      %3281 = vrot.lane.b32.xlu0 %v3261, 127
      %v3282 = vpop.permute.xlu0 %3281
      %3283 = vrot.lane.b32.xlu0 %v3262, 127
      %v3284 = vpop.permute.xlu0 %3283
      %3285 = vrot.lane.b32.xlu0 %v3263, 127
      %v3286 = vpop.permute.xlu0 %3285
      %3287 = vrot.lane.b32.xlu0 %v3264, 127
      %v3288 = vpop.permute.xlu0 %3287
      %v3289 = vrot.slane %v3274, 4
      %v3290 = vrot.slane %v3276, 4
      %v3291 = vrot.slane %v3278, 4
      %v3292 = vrot.slane %v3280, 4
      %v3293 = vrot.slane %v3282, 4
      %v3294 = vrot.slane %v3284, 4
      %v3295 = vrot.slane %v3286, 4
      %v3296 = vrot.slane %v3288, 4
      %v3297 = vsel %vm991, %v3289, %v3290
      %v3298 = vsel %vm416, %v3274, %v3297
      %v3299 = vsel %vm991, %v3291, %v3292
      %v3300 = vsel %vm416, %v3278, %v3299
      %v3301 = vsel %vm991, %v3293, %v3294
      %v3302 = vsel %vm416, %v3282, %v3301
      %v3303 = vsel %vm991, %v3295, %v3296
      %v3304 = vsel %vm416, %v3286, %v3303
      %3309 = vst [vmem:[#allocation3 + $0x40] sm:$0xff] %v3298
      %3310 = vst [vmem:[#allocation3 + $0x48] sm:$0xff] %v3300
      %3311 = vst [vmem:[#allocation3 + $0x50] sm:$0xff] %v3302
      %3312 = vst [vmem:[#allocation3 + $0x58] sm:$0xff] %v3304
      %v3313 = vld [vmem:[#allocation3] sm:$0xff]
      %v3314 = vld [vmem:[#allocation3 + $0x8] sm:$0xff]
      %v3315 = vld [vmem:[#allocation3 + $0x10] sm:$0xff]
      %v3316 = vld [vmem:[#allocation3 + $0x18] sm:$0xff]
      %v3317 = vld [vmem:[#allocation3 + $0x20] sm:$0xff]
      %v3318 = vld [vmem:[#allocation3 + $0x28] sm:$0xff]
      %v3319 = vld [vmem:[#allocation3 + $0x30] sm:$0xff]
      %v3320 = vld [vmem:[#allocation3 + $0x38] sm:$0xff]
      %v3321 = vld [vmem:[#allocation3 + $0x40] sm:$0xff]
      %v3322 = vld [vmem:[#allocation3 + $0x48] sm:$0xff]
      %v3323 = vld [vmem:[#allocation3 + $0x50] sm:$0xff]
      %v3324 = vld [vmem:[#allocation3 + $0x58] sm:$0xff]
      %v3329 = vunpack.c.l.b16 %v2968
      %v3330 = vunpack.c.l.b16 %v2969
      %v3331 = vunpack.c.l.b16 %v2970
      %v3332 = vunpack.c.l.b16 %v2971
      %v3333 = vpack.c.b16 %v3330, %v3329
      %v3334 = vpack.c.b16 %v3332, %v3331
      %v3347 = vunpack.c.l.b16 %v3313
      %v3348 = vunpack.c.h.b16 %v3313
      %v3349 = vunpack.c.l.b16 %v3314
      %v3350 = vunpack.c.h.b16 %v3314
      %v3351 = vunpack.c.l.b16 %v3315
      %v3352 = vunpack.c.h.b16 %v3315
      %v3353 = vunpack.c.l.b16 %v3316
      %v3354 = vunpack.c.h.b16 %v3316
      %v3355 = vunpack.c.l.b16 %v3317
      %v3356 = vunpack.c.h.b16 %v3317
      %v3357 = vunpack.c.l.b16 %v3318
      %v3358 = vunpack.c.h.b16 %v3318
      %v3359 = vunpack.c.l.b16 %v3319
      %v3360 = vunpack.c.h.b16 %v3319
      %v3361 = vunpack.c.l.b16 %v3320
      %v3362 = vunpack.c.h.b16 %v3320
      %v3363 = vunpack.c.l.b16 %v3321
      %v3364 = vunpack.c.h.b16 %v3321
      %v3365 = vunpack.c.l.b16 %v3322
      %v3366 = vunpack.c.h.b16 %v3322
      %v3367 = vunpack.c.l.b16 %v3323
      %v3368 = vunpack.c.h.b16 %v3323
      %v3369 = vunpack.c.l.b16 %v3324
      %v3370 = vunpack.c.h.b16 %v3324
      %v3371 = vpack.c.b16 %v3349, %v3347
      %v3372 = vpack.c.b16 %v3350, %v3348
      %v3373 = vpack.c.b16 %v3353, %v3351
      %v3374 = vpack.c.b16 %v3354, %v3352
      %v3375 = vpack.c.b16 %v3357, %v3355
      %v3376 = vpack.c.b16 %v3358, %v3356
      %v3377 = vpack.c.b16 %v3361, %v3359
      %v3378 = vpack.c.b16 %v3362, %v3360
      %v3379 = vpack.c.b16 %v3365, %v3363
      %v3380 = vpack.c.b16 %v3366, %v3364
      %v3381 = vpack.c.b16 %v3369, %v3367
      %v3382 = vpack.c.b16 %v3370, %v3368
      %v3396 = vsel %vm1359, %v3333, 0
      %v3399 = vsel %vm1359, %v3334, 0
      %3401 = vmatprep.subr.bf16.mxu0 0
      %3402 = vmatpush1.bf16.msra.mxu0 0
      %3403 = vmatprep.subr.bf16.mxu0 0
      %3404 = vmatpush1.bf16.msra.mxu0 0
      %3405 = vmatprep.subr.bf16.mxu0 %v3382
      %3406 = vmatpush1.bf16.msra.mxu0 %v3381
      %3407 = vmatprep.subr.bf16.mxu0 %v3380
      %3408 = vmatpush1.bf16.msra.mxu0 %v3379
      %3409 = vmatprep.subr.bf16.mxu0 %v3378
      %3410 = vmatpush1.bf16.msra.mxu0 %v3377
      %3411 = vmatprep.subr.bf16.mxu0 %v3376
      %3412 = vmatpush1.bf16.msra.mxu0 %v3375
      %3413 = vmatprep.subr.bf16.mxu0 %v3374
      %3414 = vmatpush1.bf16.msra.mxu0 %v3373
      %3415 = vmatprep.subr.bf16.mxu0 %v3372
      %3416 = vmatpush1.bf16.msra.mxu0 %v3371
      %3417 = vmatprep.subr.bf16.mxu0 0
      %3418 = vmatpush2.bf16.msra.mxu0 0
      %3419 = vmatprep.subr.bf16.mxu0 0
      %3420 = vmatpush2.bf16.msra.mxu0 0
      %3421 = vmatprep.subr.bf16.mxu0 0
      %3422 = vmatpush2.bf16.msra.mxu0 0
      %3423 = vmatprep.subr.bf16.mxu0 0
      %3424 = vmatpush2.bf16.msra.mxu0 0
      %3425 = vmatprep.subr.bf16.mxu0 0
      %3426 = vmatpush2.bf16.msra.mxu0 0
      %3427 = vmatprep.subr.bf16.mxu0 0
      %3428 = vmatpush2.bf16.msra.mxu0 0
      %3429 = vmatprep.subr.bf16.mxu0 0
      %3430 = vmatpush2.bf16.msra.mxu0 0
      %3431 = vmatprep.subr.bf16.mxu0 0
      %3432 = vmatpush2.bf16.msra.mxu0 0
      %3433 = vmatprep.mubr.bf16.mxu0 0
      %3434 = vmatmul.mubr.bf16.gmra.mxu0 %v3396
      %v3435 = vpop.f32.mrf.mxu0
      %v3436 = vadd.f32 0.0, %v3435
      %v3437 = vpop.f32.mrf.mxu0
      %v3438 = vadd.f32 0.0, %v3437
      %v3439 = vpop.f32.mrf.mxu0
      %v3440 = vadd.f32 0.0, %v3439
      %v3441 = vpop.f32.mrf.mxu0
      %v3442 = vadd.f32 0.0, %v3441
      %3443 = vmatprep.mubr.bf16.mxu0 0
      %3444 = vmatmul.mubr.bf16.gmra.mxu0 %v3399
      %v3445 = vpop.f32.mrf.mxu0
      %v3446 = vadd.f32 0.0, %v3445
      %v3447 = vpop.f32.mrf.mxu0
      %v3448 = vadd.f32 0.0, %v3447
      %v3449 = vpop.f32.mrf.mxu0
      %v3450 = vadd.f32 0.0, %v3449
      %v3451 = vpop.f32.mrf.mxu0
      %v3452 = vadd.f32 0.0, %v3451
      %3453 = vdwg.mxu0
      %v3458 = vunpack.c.l.b16 %v2964
      %v3459 = vunpack.c.l.b16 %v2965
      %v3460 = vunpack.c.l.b16 %v2966
      %v3461 = vunpack.c.l.b16 %v2967
      %v3462 = vpack.c.b16 %v3459, %v3458
      %v3463 = vpack.c.b16 %v3461, %v3460
      %v3476 = vunpack.c.l.b16 %v3165
      %v3477 = vunpack.c.h.b16 %v3165
      %v3478 = vunpack.c.l.b16 %v3166
      %v3479 = vunpack.c.h.b16 %v3166
      %v3480 = vunpack.c.l.b16 %v3167
      %v3481 = vunpack.c.h.b16 %v3167
      %v3482 = vunpack.c.l.b16 %v3168
      %v3483 = vunpack.c.h.b16 %v3168
      %v3484 = vunpack.c.l.b16 %v3169
      %v3485 = vunpack.c.h.b16 %v3169
      %v3486 = vunpack.c.l.b16 %v3170
      %v3487 = vunpack.c.h.b16 %v3170
      %v3488 = vunpack.c.l.b16 %v3171
      %v3489 = vunpack.c.h.b16 %v3171
      %v3490 = vunpack.c.l.b16 %v3172
      %v3491 = vunpack.c.h.b16 %v3172
      %v3492 = vunpack.c.l.b16 %v3173
      %v3493 = vunpack.c.h.b16 %v3173
      %v3494 = vunpack.c.l.b16 %v3174
      %v3495 = vunpack.c.h.b16 %v3174
      %v3496 = vunpack.c.l.b16 %v3175
      %v3497 = vunpack.c.h.b16 %v3175
      %v3498 = vunpack.c.l.b16 %v3176
      %v3499 = vunpack.c.h.b16 %v3176
      %v3500 = vpack.c.b16 %v3478, %v3476
      %v3501 = vpack.c.b16 %v3479, %v3477
      %v3502 = vpack.c.b16 %v3482, %v3480
      %v3503 = vpack.c.b16 %v3483, %v3481
      %v3504 = vpack.c.b16 %v3486, %v3484
      %v3505 = vpack.c.b16 %v3487, %v3485
      %v3506 = vpack.c.b16 %v3490, %v3488
      %v3507 = vpack.c.b16 %v3491, %v3489
      %v3508 = vpack.c.b16 %v3494, %v3492
      %v3509 = vpack.c.b16 %v3495, %v3493
      %v3510 = vpack.c.b16 %v3498, %v3496
      %v3511 = vpack.c.b16 %v3499, %v3497
      %v3525 = vsel %vm1359, %v3462, 0
      %v3528 = vsel %vm1359, %v3463, 0
      %3530 = vmatprep.subr.bf16.mxu0 0
      %3531 = vmatpush1.bf16.msra.mxu0 0
      %3532 = vmatprep.subr.bf16.mxu0 0
      %3533 = vmatpush1.bf16.msra.mxu0 0
      %3534 = vmatprep.subr.bf16.mxu0 %v3511
      %3535 = vmatpush1.bf16.msra.mxu0 %v3510
      %3536 = vmatprep.subr.bf16.mxu0 %v3509
      %3537 = vmatpush1.bf16.msra.mxu0 %v3508
      %3538 = vmatprep.subr.bf16.mxu0 %v3507
      %3539 = vmatpush1.bf16.msra.mxu0 %v3506
      %3540 = vmatprep.subr.bf16.mxu0 %v3505
      %3541 = vmatpush1.bf16.msra.mxu0 %v3504
      %3542 = vmatprep.subr.bf16.mxu0 %v3503
      %3543 = vmatpush1.bf16.msra.mxu0 %v3502
      %3544 = vmatprep.subr.bf16.mxu0 %v3501
      %3545 = vmatpush1.bf16.msra.mxu0 %v3500
      %3546 = vmatprep.subr.bf16.mxu0 0
      %3547 = vmatpush2.bf16.msra.mxu0 0
      %3548 = vmatprep.subr.bf16.mxu0 0
      %3549 = vmatpush2.bf16.msra.mxu0 0
      %3550 = vmatprep.subr.bf16.mxu0 0
      %3551 = vmatpush2.bf16.msra.mxu0 0
      %3552 = vmatprep.subr.bf16.mxu0 0
      %3553 = vmatpush2.bf16.msra.mxu0 0
      %3554 = vmatprep.subr.bf16.mxu0 0
      %3555 = vmatpush2.bf16.msra.mxu0 0
      %3556 = vmatprep.subr.bf16.mxu0 0
      %3557 = vmatpush2.bf16.msra.mxu0 0
      %3558 = vmatprep.subr.bf16.mxu0 0
      %3559 = vmatpush2.bf16.msra.mxu0 0
      %3560 = vmatprep.subr.bf16.mxu0 0
      %3561 = vmatpush2.bf16.msra.mxu0 0
      %3562 = vmatprep.mubr.bf16.mxu0 0
      %3563 = vmatmul.mubr.bf16.gmra.mxu0 %v3525
      %v3564 = vpop.f32.mrf.mxu0
      %v3565 = vadd.f32 %v3436, %v3564
      %v3566 = vpop.f32.mrf.mxu0
      %v3567 = vadd.f32 %v3438, %v3566
      %v3568 = vpop.f32.mrf.mxu0
      %v3569 = vadd.f32 %v3440, %v3568
      %v3570 = vpop.f32.mrf.mxu0
      %v3571 = vadd.f32 %v3442, %v3570
      %3572 = vmatprep.mubr.bf16.mxu0 0
      %3573 = vmatmul.mubr.bf16.gmra.mxu0 %v3528
      %v3574 = vpop.f32.mrf.mxu0
      %v3575 = vadd.f32 %v3446, %v3574
      %v3576 = vpop.f32.mrf.mxu0
      %v3577 = vadd.f32 %v3448, %v3576
      %v3578 = vpop.f32.mrf.mxu0
      %v3579 = vadd.f32 %v3450, %v3578
      %v3580 = vpop.f32.mrf.mxu0
      %v3581 = vadd.f32 %v3452, %v3580
      %3582 = vdwg.mxu0
      %v3583 = vld [vmem:[#allocation2 + $0x4] sm:$0xff]
      %v3584 = vld [vmem:[#allocation2 + $0xc] sm:$0xf]
      %v3585 = vld [vmem:[#allocation2 + $0x14] sm:$0xff]
      %v3586 = vld [vmem:[#allocation2 + $0x1c] sm:$0xf]
      %v3587 = vld [vmem:[#allocation2 + $0x24] sm:$0xff]
      %v3588 = vld [vmem:[#allocation2 + $0x2c] sm:$0xf]
      %v3589 = vld [vmem:[#allocation2 + $0x34] sm:$0xff]
      %v3590 = vld [vmem:[#allocation2 + $0x3c] sm:$0xf]
      %v3591 = vsel %vm709, %v3583, 0
      %v3592 = vsel %vm710, %v3584, 0
      %v3593 = vsel %vm709, %v3585, 0
      %v3594 = vsel %vm710, %v3586, 0
      %v3595 = vsel %vm709, %v3587, 0
      %v3596 = vsel %vm710, %v3588, 0
      %v3597 = vsel %vm709, %v3589, 0
      %v3598 = vsel %vm710, %v3590, 0
      %3607 = vrot.lane.b32.xlu0 %v3591, 113
      %v3608 = vpop.permute.xlu0 %3607
      %3609 = vrot.lane.b32.xlu0 %v3592, 113
      %v3610 = vpop.permute.xlu0 %3609
      %3611 = vrot.lane.b32.xlu0 %v3593, 113
      %v3612 = vpop.permute.xlu0 %3611
      %3613 = vrot.lane.b32.xlu0 %v3594, 113
      %v3614 = vpop.permute.xlu0 %3613
      %3615 = vrot.lane.b32.xlu0 %v3595, 113
      %v3616 = vpop.permute.xlu0 %3615
      %3617 = vrot.lane.b32.xlu0 %v3596, 113
      %v3618 = vpop.permute.xlu0 %3617
      %3619 = vrot.lane.b32.xlu0 %v3597, 113
      %v3620 = vpop.permute.xlu0 %3619
      %3621 = vrot.lane.b32.xlu0 %v3598, 113
      %v3622 = vpop.permute.xlu0 %3621
      %v3623 = vrot.slane %v3608, 4
      %v3624 = vrot.slane %v3610, 4
      %v3625 = vrot.slane %v3612, 4
      %v3626 = vrot.slane %v3614, 4
      %v3627 = vrot.slane %v3616, 4
      %v3628 = vrot.slane %v3618, 4
      %v3629 = vrot.slane %v3620, 4
      %v3630 = vrot.slane %v3622, 4
      %v3631 = vsel %vm991, %v3623, %v3624
      %v3632 = vsel %vm385, %v3608, %v3631
      %v3633 = vsel %vm991, %v3625, %v3626
      %v3634 = vsel %vm385, %v3612, %v3633
      %v3635 = vsel %vm991, %v3627, %v3628
      %v3636 = vsel %vm385, %v3616, %v3635
      %v3637 = vsel %vm991, %v3629, %v3630
      %v3638 = vsel %vm385, %v3620, %v3637
      %3643 = vst [vmem:[#allocation3] sm:$0xff] %v3632
      %3644 = vst [vmem:[#allocation3 + $0x8] sm:$0xff] %v3634
      %3645 = vst [vmem:[#allocation3 + $0x10] sm:$0xff] %v3636
      %3646 = vst [vmem:[#allocation3 + $0x18] sm:$0xff] %v3638
      %v3647 = vld [vmem:[#allocation2 + $0x4] sm:$0xff]
      %v3648 = vld [vmem:[#allocation2 + $0xc] sm:$0xf]
      %v3649 = vld [vmem:[#allocation2 + $0x14] sm:$0xff]
      %v3650 = vld [vmem:[#allocation2 + $0x1c] sm:$0xf]
      %v3651 = vld [vmem:[#allocation2 + $0x24] sm:$0xff]
      %v3652 = vld [vmem:[#allocation2 + $0x2c] sm:$0xf]
      %v3653 = vld [vmem:[#allocation2 + $0x34] sm:$0xff]
      %v3654 = vld [vmem:[#allocation2 + $0x3c] sm:$0xf]
      %3663 = vrot.lane.b32.xlu0 %v3647, 112
      %v3664 = vpop.permute.xlu0 %3663
      %3665 = vrot.lane.b32.xlu0 %v3648, 112
      %v3666 = vpop.permute.xlu0 %3665
      %3667 = vrot.lane.b32.xlu0 %v3649, 112
      %v3668 = vpop.permute.xlu0 %3667
      %3669 = vrot.lane.b32.xlu0 %v3650, 112
      %v3670 = vpop.permute.xlu0 %3669
      %3671 = vrot.lane.b32.xlu0 %v3651, 112
      %v3672 = vpop.permute.xlu0 %3671
      %3673 = vrot.lane.b32.xlu0 %v3652, 112
      %v3674 = vpop.permute.xlu0 %3673
      %3675 = vrot.lane.b32.xlu0 %v3653, 112
      %v3676 = vpop.permute.xlu0 %3675
      %3677 = vrot.lane.b32.xlu0 %v3654, 112
      %v3678 = vpop.permute.xlu0 %3677
      %v3679 = vrot.slane %v3664, 4
      %v3680 = vrot.slane %v3666, 4
      %v3681 = vrot.slane %v3668, 4
      %v3682 = vrot.slane %v3670, 4
      %v3683 = vrot.slane %v3672, 4
      %v3684 = vrot.slane %v3674, 4
      %v3685 = vrot.slane %v3676, 4
      %v3686 = vrot.slane %v3678, 4
      %v3687 = vsel %vm991, %v3679, %v3680
      %v3688 = vsel %vm1653, %v3664, %v3687
      %v3689 = vsel %vm991, %v3681, %v3682
      %v3690 = vsel %vm1653, %v3668, %v3689
      %v3691 = vsel %vm991, %v3683, %v3684
      %v3692 = vsel %vm1653, %v3672, %v3691
      %v3693 = vsel %vm991, %v3685, %v3686
      %v3694 = vsel %vm1653, %v3676, %v3693
      %3699 = vst [vmem:[#allocation3 + $0x20] sm:$0xff] %v3688
      %3700 = vst [vmem:[#allocation3 + $0x28] sm:$0xff] %v3690
      %3701 = vst [vmem:[#allocation3 + $0x30] sm:$0xff] %v3692
      %3702 = vst [vmem:[#allocation3 + $0x38] sm:$0xff] %v3694
      %v3703 = vld [vmem:[#allocation2 + $0x4] sm:$0xff]
      %v3704 = vld [vmem:[#allocation2 + $0xc] sm:$0xf]
      %v3705 = vld [vmem:[#allocation2 + $0x14] sm:$0xff]
      %v3706 = vld [vmem:[#allocation2 + $0x1c] sm:$0xf]
      %v3707 = vld [vmem:[#allocation2 + $0x24] sm:$0xff]
      %v3708 = vld [vmem:[#allocation2 + $0x2c] sm:$0xf]
      %v3709 = vld [vmem:[#allocation2 + $0x34] sm:$0xff]
      %v3710 = vld [vmem:[#allocation2 + $0x3c] sm:$0xf]
      %v3711 = vsel %vm717, %v3703, 0
      %v3712 = vsel %vm718, %v3704, 0
      %v3713 = vsel %vm717, %v3705, 0
      %v3714 = vsel %vm718, %v3706, 0
      %v3715 = vsel %vm717, %v3707, 0
      %v3716 = vsel %vm718, %v3708, 0
      %v3717 = vsel %vm717, %v3709, 0
      %v3718 = vsel %vm718, %v3710, 0
      %3727 = vrot.lane.b32.xlu0 %v3711, 111
      %v3728 = vpop.permute.xlu0 %3727
      %3729 = vrot.lane.b32.xlu0 %v3712, 111
      %v3730 = vpop.permute.xlu0 %3729
      %3731 = vrot.lane.b32.xlu0 %v3713, 111
      %v3732 = vpop.permute.xlu0 %3731
      %3733 = vrot.lane.b32.xlu0 %v3714, 111
      %v3734 = vpop.permute.xlu0 %3733
      %3735 = vrot.lane.b32.xlu0 %v3715, 111
      %v3736 = vpop.permute.xlu0 %3735
      %3737 = vrot.lane.b32.xlu0 %v3716, 111
      %v3738 = vpop.permute.xlu0 %3737
      %3739 = vrot.lane.b32.xlu0 %v3717, 111
      %v3740 = vpop.permute.xlu0 %3739
      %3741 = vrot.lane.b32.xlu0 %v3718, 111
      %v3742 = vpop.permute.xlu0 %3741
      %v3743 = vrot.slane %v3728, 4
      %v3744 = vrot.slane %v3730, 4
      %v3745 = vrot.slane %v3732, 4
      %v3746 = vrot.slane %v3734, 4
      %v3747 = vrot.slane %v3736, 4
      %v3748 = vrot.slane %v3738, 4
      %v3749 = vrot.slane %v3740, 4
      %v3750 = vrot.slane %v3742, 4
      %v3751 = vsel %vm991, %v3743, %v3744
      %v3752 = vsel %vm374, %v3728, %v3751
      %v3753 = vsel %vm991, %v3745, %v3746
      %v3754 = vsel %vm374, %v3732, %v3753
      %v3755 = vsel %vm991, %v3747, %v3748
      %v3756 = vsel %vm374, %v3736, %v3755
      %v3757 = vsel %vm991, %v3749, %v3750
      %v3758 = vsel %vm374, %v3740, %v3757
      %3763 = vst [vmem:[#allocation3 + $0x40] sm:$0xff] %v3752
      %3764 = vst [vmem:[#allocation3 + $0x48] sm:$0xff] %v3754
      %3765 = vst [vmem:[#allocation3 + $0x50] sm:$0xff] %v3756
      %3766 = vst [vmem:[#allocation3 + $0x58] sm:$0xff] %v3758
      %v3767 = vld [vmem:[#allocation3] sm:$0xff]
      %v3768 = vld [vmem:[#allocation3 + $0x8] sm:$0xff]
      %v3769 = vld [vmem:[#allocation3 + $0x10] sm:$0xff]
      %v3770 = vld [vmem:[#allocation3 + $0x18] sm:$0xff]
      %v3771 = vld [vmem:[#allocation3 + $0x20] sm:$0xff]
      %v3772 = vld [vmem:[#allocation3 + $0x28] sm:$0xff]
      %v3773 = vld [vmem:[#allocation3 + $0x30] sm:$0xff]
      %v3774 = vld [vmem:[#allocation3 + $0x38] sm:$0xff]
      %v3775 = vld [vmem:[#allocation3 + $0x40] sm:$0xff]
      %v3776 = vld [vmem:[#allocation3 + $0x48] sm:$0xff]
      %v3777 = vld [vmem:[#allocation3 + $0x50] sm:$0xff]
      %v3778 = vld [vmem:[#allocation3 + $0x58] sm:$0xff]
      %v3783 = vunpack.c.l.b16 %v2972
      %v3784 = vunpack.c.l.b16 %v2973
      %v3785 = vunpack.c.l.b16 %v2974
      %v3786 = vunpack.c.l.b16 %v2975
      %v3787 = vpack.c.b16 %v3784, %v3783
      %v3788 = vpack.c.b16 %v3786, %v3785
      %v3801 = vunpack.c.l.b16 %v3767
      %v3802 = vunpack.c.h.b16 %v3767
      %v3803 = vunpack.c.l.b16 %v3768
      %v3804 = vunpack.c.h.b16 %v3768
      %v3805 = vunpack.c.l.b16 %v3769
      %v3806 = vunpack.c.h.b16 %v3769
      %v3807 = vunpack.c.l.b16 %v3770
      %v3808 = vunpack.c.h.b16 %v3770
      %v3809 = vunpack.c.l.b16 %v3771
      %v3810 = vunpack.c.h.b16 %v3771
      %v3811 = vunpack.c.l.b16 %v3772
      %v3812 = vunpack.c.h.b16 %v3772
      %v3813 = vunpack.c.l.b16 %v3773
      %v3814 = vunpack.c.h.b16 %v3773
      %v3815 = vunpack.c.l.b16 %v3774
      %v3816 = vunpack.c.h.b16 %v3774
      %v3817 = vunpack.c.l.b16 %v3775
      %v3818 = vunpack.c.h.b16 %v3775
      %v3819 = vunpack.c.l.b16 %v3776
      %v3820 = vunpack.c.h.b16 %v3776
      %v3821 = vunpack.c.l.b16 %v3777
      %v3822 = vunpack.c.h.b16 %v3777
      %v3823 = vunpack.c.l.b16 %v3778
      %v3824 = vunpack.c.h.b16 %v3778
      %v3825 = vpack.c.b16 %v3803, %v3801
      %v3826 = vpack.c.b16 %v3804, %v3802
      %v3827 = vpack.c.b16 %v3807, %v3805
      %v3828 = vpack.c.b16 %v3808, %v3806
      %v3829 = vpack.c.b16 %v3811, %v3809
      %v3830 = vpack.c.b16 %v3812, %v3810
      %v3831 = vpack.c.b16 %v3815, %v3813
      %v3832 = vpack.c.b16 %v3816, %v3814
      %v3833 = vpack.c.b16 %v3819, %v3817
      %v3834 = vpack.c.b16 %v3820, %v3818
      %v3835 = vpack.c.b16 %v3823, %v3821
      %v3836 = vpack.c.b16 %v3824, %v3822
      %v3850 = vsel %vm1359, %v3787, 0
      %v3853 = vsel %vm1359, %v3788, 0
      %3855 = vmatprep.subr.bf16.mxu0 0
      %3856 = vmatpush1.bf16.msra.mxu0 0
      %3857 = vmatprep.subr.bf16.mxu0 0
      %3858 = vmatpush1.bf16.msra.mxu0 0
      %3859 = vmatprep.subr.bf16.mxu0 %v3836
      %3860 = vmatpush1.bf16.msra.mxu0 %v3835
      %3861 = vmatprep.subr.bf16.mxu0 %v3834
      %3862 = vmatpush1.bf16.msra.mxu0 %v3833
      %3863 = vmatprep.subr.bf16.mxu0 %v3832
      %3864 = vmatpush1.bf16.msra.mxu0 %v3831
      %3865 = vmatprep.subr.bf16.mxu0 %v3830
      %3866 = vmatpush1.bf16.msra.mxu0 %v3829
      %3867 = vmatprep.subr.bf16.mxu0 %v3828
      %3868 = vmatpush1.bf16.msra.mxu0 %v3827
      %3869 = vmatprep.subr.bf16.mxu0 %v3826
      %3870 = vmatpush1.bf16.msra.mxu0 %v3825
      %3871 = vmatprep.subr.bf16.mxu0 0
      %3872 = vmatpush2.bf16.msra.mxu0 0
      %3873 = vmatprep.subr.bf16.mxu0 0
      %3874 = vmatpush2.bf16.msra.mxu0 0
      %3875 = vmatprep.subr.bf16.mxu0 0
      %3876 = vmatpush2.bf16.msra.mxu0 0
      %3877 = vmatprep.subr.bf16.mxu0 0
      %3878 = vmatpush2.bf16.msra.mxu0 0
      %3879 = vmatprep.subr.bf16.mxu0 0
      %3880 = vmatpush2.bf16.msra.mxu0 0
      %3881 = vmatprep.subr.bf16.mxu0 0
      %3882 = vmatpush2.bf16.msra.mxu0 0
      %3883 = vmatprep.subr.bf16.mxu0 0
      %3884 = vmatpush2.bf16.msra.mxu0 0
      %3885 = vmatprep.subr.bf16.mxu0 0
      %3886 = vmatpush2.bf16.msra.mxu0 0
      %3887 = vmatprep.mubr.bf16.mxu0 0
      %3888 = vmatmul.mubr.bf16.gmra.mxu0 %v3850
      %v3889 = vpop.f32.mrf.mxu0
      %v3890 = vadd.f32 0.0, %v3889
      %v3891 = vpop.f32.mrf.mxu0
      %v3892 = vadd.f32 0.0, %v3891
      %v3893 = vpop.f32.mrf.mxu0
      %v3894 = vadd.f32 0.0, %v3893
      %v3895 = vpop.f32.mrf.mxu0
      %v3896 = vadd.f32 0.0, %v3895
      %3897 = vmatprep.mubr.bf16.mxu0 0
      %3898 = vmatmul.mubr.bf16.gmra.mxu0 %v3853
      %v3899 = vpop.f32.mrf.mxu0
      %v3900 = vadd.f32 0.0, %v3899
      %v3901 = vpop.f32.mrf.mxu0
      %v3902 = vadd.f32 0.0, %v3901
      %v3903 = vpop.f32.mrf.mxu0
      %v3904 = vadd.f32 0.0, %v3903
      %v3905 = vpop.f32.mrf.mxu0
      %v3906 = vadd.f32 0.0, %v3905
      %3907 = vdwg.mxu0
      %v3908 = vadd.f32 %v3565, %v3890
      %v3909 = vadd.f32 %v3567, %v3892
      %v3910 = vadd.f32 %v3569, %v3894
      %v3911 = vadd.f32 %v3571, %v3896
      %v3912 = vadd.f32 %v3575, %v3900
      %v3913 = vadd.f32 %v3577, %v3902
      %v3914 = vadd.f32 %v3579, %v3904
      %v3915 = vadd.f32 %v3581, %v3906
      %3917 = vset.pattern.permute.xlu0 0
      %3918 = vperm.xlu0 %3917, %v2977
      %v3919 = vpop.permute.xlu0 %3918
      %3922 = vset.pattern.permute.xlu0 0
      %3923 = vperm.xlu0 %3922, %v2978
      %v3924 = vpop.permute.xlu0 %3923
      %3927 = vset.pattern.permute.xlu0 0
      %3928 = vperm.xlu0 %3927, %v2979
      %v3929 = vpop.permute.xlu0 %3928
      %3932 = vset.pattern.permute.xlu0 0
      %3933 = vperm.xlu0 %3932, %v2980
      %v3934 = vpop.permute.xlu0 %3933
      %v3936 = vadd.f32 %v3908, %v3919
      %v3937 = vadd.f32 %v3909, %v3919
      %v3938 = vadd.f32 %v3910, %v3924
      %v3939 = vadd.f32 %v3911, %v3924
      %v3940 = vadd.f32 %v3912, %v3929
      %v3941 = vadd.f32 %v3913, %v3929
      %v3942 = vadd.f32 %v3914, %v3934
      %v3943 = vadd.f32 %v3915, %v3934
      %v3944 = vmax.f32 %v3936, 0.0
      %v3945 = vmax.f32 %v3937, 0.0
      %v3946 = vmax.f32 %v3938, 0.0
      %v3947 = vmax.f32 %v3939, 0.0
      %v3948 = vmax.f32 %v3940, 0.0
      %v3949 = vmax.f32 %v3941, 0.0
      %v3950 = vmax.f32 %v3942, 0.0
      %v3951 = vmax.f32 %v3943, 0.0
      %v3952 = vpack.c.bf16 %v3946, %v3944
      %v3953 = vpack.c.bf16 %v3947, %v3945
      %v3954 = vpack.c.bf16 %v3950, %v3948
      %v3955 = vpack.c.bf16 %v3951, %v3949
      %v3960 = vunpack.c.l.b16 %v3952
      %v3961 = vunpack.c.l.b16 %v3953
      %v3962 = vunpack.c.h.b16 %v3952
      %v3963 = vunpack.c.h.b16 %v3953
      %v3964 = vunpack.c.l.b16 %v3954
      %v3965 = vunpack.c.l.b16 %v3955
      %v3966 = vunpack.c.h.b16 %v3954
      %v3967 = vunpack.c.h.b16 %v3955
      %v3968 = vpack.c.b16 %v3961, %v3960
      %v3969 = vpack.c.b16 %v3963, %v3962
      %v3970 = vpack.c.b16 %v3965, %v3964
      %v3971 = vpack.c.b16 %v3967, %v3966
      %3976 = vst [vmem:[#allocation2 + $0x4] sm:$0xff] %v3968
      %3977 = vst [vmem:[#allocation2 + $0x14] sm:$0xff] %v3969
      %3978 = vst [vmem:[#allocation2 + $0x24] sm:$0xff] %v3970
      %3979 = vst [vmem:[#allocation2 + $0x34] sm:$0xff] %v3971
      %v3980 = vld [vmem:[%s5] sm:$0x1]
      %v3981 = vld [vmem:[%s5 + $0x1] sm:$0x1]
      %v3982 = vld [vmem:[%s5 + $0x2] sm:$0x1]
      %v3983 = vld [vmem:[%s6] sm:$0x3]
      %v3984 = vld [vmem:[#allocation2] sm:$0xff]
      %v3985 = vld [vmem:[#allocation2 + $0x8] sm:$0xf]
      %v3986 = vld [vmem:[#allocation2 + $0x10] sm:$0xff]
      %v3987 = vld [vmem:[#allocation2 + $0x18] sm:$0xf]
      %v3988 = vld [vmem:[#allocation2 + $0x20] sm:$0xff]
      %v3989 = vld [vmem:[#allocation2 + $0x28] sm:$0xf]
      %v3990 = vld [vmem:[#allocation2 + $0x30] sm:$0xff]
      %v3991 = vld [vmem:[#allocation2 + $0x38] sm:$0xf]
      %v3992 = vsel %vm376, %v3984, 0
      %v3993 = vsel %vm377, %v3985, 0
      %v3994 = vsel %vm376, %v3986, 0
      %v3995 = vsel %vm377, %v3987, 0
      %v3996 = vsel %vm376, %v3988, 0
      %v3997 = vsel %vm377, %v3989, 0
      %v3998 = vsel %vm376, %v3990, 0
      %v3999 = vsel %vm377, %v3991, 0
      %4008 = vrot.lane.b32.xlu0 %v3992, 17
      %v4009 = vpop.permute.xlu0 %4008
      %4010 = vrot.lane.b32.xlu0 %v3993, 17
      %v4011 = vpop.permute.xlu0 %4010
      %4012 = vrot.lane.b32.xlu0 %v3994, 17
      %v4013 = vpop.permute.xlu0 %4012
      %4014 = vrot.lane.b32.xlu0 %v3995, 17
      %v4015 = vpop.permute.xlu0 %4014
      %4016 = vrot.lane.b32.xlu0 %v3996, 17
      %v4017 = vpop.permute.xlu0 %4016
      %4018 = vrot.lane.b32.xlu0 %v3997, 17
      %v4019 = vpop.permute.xlu0 %4018
      %4020 = vrot.lane.b32.xlu0 %v3998, 17
      %v4021 = vpop.permute.xlu0 %4020
      %4022 = vrot.lane.b32.xlu0 %v3999, 17
      %v4023 = vpop.permute.xlu0 %4022
      %v4024 = vrot.slane %v4009, 4
      %v4025 = vrot.slane %v4011, 4
      %v4026 = vrot.slane %v4013, 4
      %v4027 = vrot.slane %v4015, 4
      %v4028 = vrot.slane %v4017, 4
      %v4029 = vrot.slane %v4019, 4
      %v4030 = vrot.slane %v4021, 4
      %v4031 = vrot.slane %v4023, 4
      %v4032 = vsel %vm991, %v4024, %v4025
      %v4033 = vsel %vm636, %v4009, %v4032
      %v4034 = vsel %vm991, %v4026, %v4027
      %v4035 = vsel %vm636, %v4013, %v4034
      %v4036 = vsel %vm991, %v4028, %v4029
      %v4037 = vsel %vm636, %v4017, %v4036
      %v4038 = vsel %vm991, %v4030, %v4031
      %v4039 = vsel %vm636, %v4021, %v4038
      %4044 = vst [vmem:[#allocation3] sm:$0xff] %v4033
      %4045 = vst [vmem:[#allocation3 + $0x8] sm:$0xff] %v4035
      %4046 = vst [vmem:[#allocation3 + $0x10] sm:$0xff] %v4037
      %4047 = vst [vmem:[#allocation3 + $0x18] sm:$0xff] %v4039
      %v4048 = vld [vmem:[#allocation2] sm:$0xff]
      %v4049 = vld [vmem:[#allocation2 + $0x8] sm:$0xf]
      %v4050 = vld [vmem:[#allocation2 + $0x10] sm:$0xff]
      %v4051 = vld [vmem:[#allocation2 + $0x18] sm:$0xf]
      %v4052 = vld [vmem:[#allocation2 + $0x20] sm:$0xff]
      %v4053 = vld [vmem:[#allocation2 + $0x28] sm:$0xf]
      %v4054 = vld [vmem:[#allocation2 + $0x30] sm:$0xff]
      %v4055 = vld [vmem:[#allocation2 + $0x38] sm:$0xf]
      %4064 = vrot.lane.b32.xlu0 %v4048, 16
      %v4065 = vpop.permute.xlu0 %4064
      %4066 = vrot.lane.b32.xlu0 %v4049, 16
      %v4067 = vpop.permute.xlu0 %4066
      %4068 = vrot.lane.b32.xlu0 %v4050, 16
      %v4069 = vpop.permute.xlu0 %4068
      %4070 = vrot.lane.b32.xlu0 %v4051, 16
      %v4071 = vpop.permute.xlu0 %4070
      %4072 = vrot.lane.b32.xlu0 %v4052, 16
      %v4073 = vpop.permute.xlu0 %4072
      %4074 = vrot.lane.b32.xlu0 %v4053, 16
      %v4075 = vpop.permute.xlu0 %4074
      %4076 = vrot.lane.b32.xlu0 %v4054, 16
      %v4077 = vpop.permute.xlu0 %4076
      %4078 = vrot.lane.b32.xlu0 %v4055, 16
      %v4079 = vpop.permute.xlu0 %4078
      %v4080 = vrot.slane %v4065, 4
      %v4081 = vrot.slane %v4067, 4
      %v4082 = vrot.slane %v4069, 4
      %v4083 = vrot.slane %v4071, 4
      %v4084 = vrot.slane %v4073, 4
      %v4085 = vrot.slane %v4075, 4
      %v4086 = vrot.slane %v4077, 4
      %v4087 = vrot.slane %v4079, 4
      %v4088 = vsel %vm991, %v4080, %v4081
      %v4089 = vsel %vm1049, %v4065, %v4088
      %v4090 = vsel %vm991, %v4082, %v4083
      %v4091 = vsel %vm1049, %v4069, %v4090
      %v4092 = vsel %vm991, %v4084, %v4085
      %v4093 = vsel %vm1049, %v4073, %v4092
      %v4094 = vsel %vm991, %v4086, %v4087
      %v4095 = vsel %vm1049, %v4077, %v4094
      %4100 = vst [vmem:[#allocation3 + $0x20] sm:$0xff] %v4089
      %4101 = vst [vmem:[#allocation3 + $0x28] sm:$0xff] %v4091
      %4102 = vst [vmem:[#allocation3 + $0x30] sm:$0xff] %v4093
      %4103 = vst [vmem:[#allocation3 + $0x38] sm:$0xff] %v4095
      %v4104 = vld [vmem:[#allocation2] sm:$0xff]
      %v4105 = vld [vmem:[#allocation2 + $0x8] sm:$0xf]
      %v4106 = vld [vmem:[#allocation2 + $0x10] sm:$0xff]
      %v4107 = vld [vmem:[#allocation2 + $0x18] sm:$0xf]
      %v4108 = vld [vmem:[#allocation2 + $0x20] sm:$0xff]
      %v4109 = vld [vmem:[#allocation2 + $0x28] sm:$0xf]
      %v4110 = vld [vmem:[#allocation2 + $0x30] sm:$0xff]
      %v4111 = vld [vmem:[#allocation2 + $0x38] sm:$0xf]
      %v4112 = vsel %vm387, %v4104, 0
      %v4113 = vsel %vm388, %v4105, 0
      %v4114 = vsel %vm387, %v4106, 0
      %v4115 = vsel %vm388, %v4107, 0
      %v4116 = vsel %vm387, %v4108, 0
      %v4117 = vsel %vm388, %v4109, 0
      %v4118 = vsel %vm387, %v4110, 0
      %v4119 = vsel %vm388, %v4111, 0
      %4128 = vrot.lane.b32.xlu0 %v4112, 15
      %v4129 = vpop.permute.xlu0 %4128
      %4130 = vrot.lane.b32.xlu0 %v4113, 15
      %v4131 = vpop.permute.xlu0 %4130
      %4132 = vrot.lane.b32.xlu0 %v4114, 15
      %v4133 = vpop.permute.xlu0 %4132
      %4134 = vrot.lane.b32.xlu0 %v4115, 15
      %v4135 = vpop.permute.xlu0 %4134
      %4136 = vrot.lane.b32.xlu0 %v4116, 15
      %v4137 = vpop.permute.xlu0 %4136
      %4138 = vrot.lane.b32.xlu0 %v4117, 15
      %v4139 = vpop.permute.xlu0 %4138
      %4140 = vrot.lane.b32.xlu0 %v4118, 15
      %v4141 = vpop.permute.xlu0 %4140
      %4142 = vrot.lane.b32.xlu0 %v4119, 15
      %v4143 = vpop.permute.xlu0 %4142
      %v4144 = vrot.slane %v4129, 4
      %v4145 = vrot.slane %v4131, 4
      %v4146 = vrot.slane %v4133, 4
      %v4147 = vrot.slane %v4135, 4
      %v4148 = vrot.slane %v4137, 4
      %v4149 = vrot.slane %v4139, 4
      %v4150 = vrot.slane %v4141, 4
      %v4151 = vrot.slane %v4143, 4
      %v4152 = vsel %vm991, %v4144, %v4145
      %v4153 = vsel %vm707, %v4129, %v4152
      %v4154 = vsel %vm991, %v4146, %v4147
      %v4155 = vsel %vm707, %v4133, %v4154
      %v4156 = vsel %vm991, %v4148, %v4149
      %v4157 = vsel %vm707, %v4137, %v4156
      %v4158 = vsel %vm991, %v4150, %v4151
      %v4159 = vsel %vm707, %v4141, %v4158
      %4164 = vst [vmem:[#allocation3 + $0x40] sm:$0xff] %v4153
      %4165 = vst [vmem:[#allocation3 + $0x48] sm:$0xff] %v4155
      %4166 = vst [vmem:[#allocation3 + $0x50] sm:$0xff] %v4157
      %4167 = vst [vmem:[#allocation3 + $0x58] sm:$0xff] %v4159
      %v4168 = vld [vmem:[#allocation3] sm:$0xff]
      %v4169 = vld [vmem:[#allocation3 + $0x8] sm:$0xff]
      %v4170 = vld [vmem:[#allocation3 + $0x10] sm:$0xff]
      %v4171 = vld [vmem:[#allocation3 + $0x18] sm:$0xff]
      %v4172 = vld [vmem:[#allocation3 + $0x20] sm:$0xff]
      %v4173 = vld [vmem:[#allocation3 + $0x28] sm:$0xff]
      %v4174 = vld [vmem:[#allocation3 + $0x30] sm:$0xff]
      %v4175 = vld [vmem:[#allocation3 + $0x38] sm:$0xff]
      %v4176 = vld [vmem:[#allocation3 + $0x40] sm:$0xff]
      %v4177 = vld [vmem:[#allocation3 + $0x48] sm:$0xff]
      %v4178 = vld [vmem:[#allocation3 + $0x50] sm:$0xff]
      %v4179 = vld [vmem:[#allocation3 + $0x58] sm:$0xff]
      %v4180 = vld [vmem:[#allocation2] sm:$0xff]
      %v4181 = vld [vmem:[#allocation2 + $0x8] sm:$0xf]
      %v4182 = vld [vmem:[#allocation2 + $0x10] sm:$0xff]
      %v4183 = vld [vmem:[#allocation2 + $0x18] sm:$0xf]
      %v4184 = vld [vmem:[#allocation2 + $0x20] sm:$0xff]
      %v4185 = vld [vmem:[#allocation2 + $0x28] sm:$0xf]
      %v4186 = vld [vmem:[#allocation2 + $0x30] sm:$0xff]
      %v4187 = vld [vmem:[#allocation2 + $0x38] sm:$0xf]
      %v4188 = vsel %vm460, %v4180, 0
      %v4189 = vsel %vm461, %v4181, 0
      %v4190 = vsel %vm460, %v4182, 0
      %v4191 = vsel %vm461, %v4183, 0
      %v4192 = vsel %vm460, %v4184, 0
      %v4193 = vsel %vm461, %v4185, 0
      %v4194 = vsel %vm460, %v4186, 0
      %v4195 = vsel %vm461, %v4187, 0
      %4204 = vrot.lane.b32.xlu0 %v4188, 1
      %v4205 = vpop.permute.xlu0 %4204
      %4206 = vrot.lane.b32.xlu0 %v4189, 1
      %v4207 = vpop.permute.xlu0 %4206
      %4208 = vrot.lane.b32.xlu0 %v4190, 1
      %v4209 = vpop.permute.xlu0 %4208
      %4210 = vrot.lane.b32.xlu0 %v4191, 1
      %v4211 = vpop.permute.xlu0 %4210
      %4212 = vrot.lane.b32.xlu0 %v4192, 1
      %v4213 = vpop.permute.xlu0 %4212
      %4214 = vrot.lane.b32.xlu0 %v4193, 1
      %v4215 = vpop.permute.xlu0 %4214
      %4216 = vrot.lane.b32.xlu0 %v4194, 1
      %v4217 = vpop.permute.xlu0 %4216
      %4218 = vrot.lane.b32.xlu0 %v4195, 1
      %v4219 = vpop.permute.xlu0 %4218
      %v4220 = vrot.slane %v4205, 4
      %v4221 = vrot.slane %v4207, 4
      %v4222 = vrot.slane %v4209, 4
      %v4223 = vrot.slane %v4211, 4
      %v4224 = vrot.slane %v4213, 4
      %v4225 = vrot.slane %v4215, 4
      %v4226 = vrot.slane %v4217, 4
      %v4227 = vrot.slane %v4219, 4
      %v4228 = vsel %vm991, %v4220, %v4221
      %v4229 = vsel %vm469, %v4205, %v4228
      %v4230 = vsel %vm991, %v4222, %v4223
      %v4231 = vsel %vm469, %v4209, %v4230
      %v4232 = vsel %vm991, %v4224, %v4225
      %v4233 = vsel %vm469, %v4213, %v4232
      %v4234 = vsel %vm991, %v4226, %v4227
      %v4235 = vsel %vm469, %v4217, %v4234
      %4240 = vst [vmem:[#allocation3] sm:$0xff] %v4229
      %4241 = vst [vmem:[#allocation3 + $0x8] sm:$0xff] %v4231
      %4242 = vst [vmem:[#allocation3 + $0x10] sm:$0xff] %v4233
      %4243 = vst [vmem:[#allocation3 + $0x18] sm:$0xff] %v4235
      %v4244 = vld [vmem:[#allocation2 + $0x4] sm:$0xff]
      %v4245 = vld [vmem:[#allocation2 + $0x14] sm:$0xff]
      %v4246 = vld [vmem:[#allocation2 + $0x24] sm:$0xff]
      %v4247 = vld [vmem:[#allocation2 + $0x34] sm:$0xff]
      %4248 = vst [vmem:[#allocation3 + $0x20] sm:$0xff] %v4244
      %4249 = vst [vmem:[#allocation3 + $0x28] sm:$0xff] %v4245
      %4250 = vst [vmem:[#allocation3 + $0x30] sm:$0xff] %v4246
      %4251 = vst [vmem:[#allocation3 + $0x38] sm:$0xff] %v4247
      %v4252 = vld [vmem:[#allocation2 + $0x4] sm:$0xff]
      %v4253 = vld [vmem:[#allocation2 + $0xc] sm:$0xf]
      %v4254 = vld [vmem:[#allocation2 + $0x14] sm:$0xff]
      %v4255 = vld [vmem:[#allocation2 + $0x1c] sm:$0xf]
      %v4256 = vld [vmem:[#allocation2 + $0x24] sm:$0xff]
      %v4257 = vld [vmem:[#allocation2 + $0x2c] sm:$0xf]
      %v4258 = vld [vmem:[#allocation2 + $0x34] sm:$0xff]
      %v4259 = vld [vmem:[#allocation2 + $0x3c] sm:$0xf]
      %v4260 = vsel %vm471, %v4252, 0
      %v4261 = vsel %vm472, %v4253, 0
      %v4262 = vsel %vm471, %v4254, 0
      %v4263 = vsel %vm472, %v4255, 0
      %v4264 = vsel %vm471, %v4256, 0
      %v4265 = vsel %vm472, %v4257, 0
      %v4266 = vsel %vm471, %v4258, 0
      %v4267 = vsel %vm472, %v4259, 0
      %4276 = vrot.lane.b32.xlu0 %v4260, 127
      %v4277 = vpop.permute.xlu0 %4276
      %4278 = vrot.lane.b32.xlu0 %v4261, 127
      %v4279 = vpop.permute.xlu0 %4278
      %4280 = vrot.lane.b32.xlu0 %v4262, 127
      %v4281 = vpop.permute.xlu0 %4280
      %4282 = vrot.lane.b32.xlu0 %v4263, 127
      %v4283 = vpop.permute.xlu0 %4282
      %4284 = vrot.lane.b32.xlu0 %v4264, 127
      %v4285 = vpop.permute.xlu0 %4284
      %4286 = vrot.lane.b32.xlu0 %v4265, 127
      %v4287 = vpop.permute.xlu0 %4286
      %4288 = vrot.lane.b32.xlu0 %v4266, 127
      %v4289 = vpop.permute.xlu0 %4288
      %4290 = vrot.lane.b32.xlu0 %v4267, 127
      %v4291 = vpop.permute.xlu0 %4290
      %v4292 = vrot.slane %v4277, 4
      %v4293 = vrot.slane %v4279, 4
      %v4294 = vrot.slane %v4281, 4
      %v4295 = vrot.slane %v4283, 4
      %v4296 = vrot.slane %v4285, 4
      %v4297 = vrot.slane %v4287, 4
      %v4298 = vrot.slane %v4289, 4
      %v4299 = vrot.slane %v4291, 4
      %v4300 = vsel %vm991, %v4292, %v4293
      %v4301 = vsel %vm416, %v4277, %v4300
      %v4302 = vsel %vm991, %v4294, %v4295
      %v4303 = vsel %vm416, %v4281, %v4302
      %v4304 = vsel %vm991, %v4296, %v4297
      %v4305 = vsel %vm416, %v4285, %v4304
      %v4306 = vsel %vm991, %v4298, %v4299
      %v4307 = vsel %vm416, %v4289, %v4306
      %4312 = vst [vmem:[#allocation3 + $0x40] sm:$0xff] %v4301
      %4313 = vst [vmem:[#allocation3 + $0x48] sm:$0xff] %v4303
      %4314 = vst [vmem:[#allocation3 + $0x50] sm:$0xff] %v4305
      %4315 = vst [vmem:[#allocation3 + $0x58] sm:$0xff] %v4307
      %v4316 = vld [vmem:[#allocation3] sm:$0xff]
      %v4317 = vld [vmem:[#allocation3 + $0x8] sm:$0xff]
      %v4318 = vld [vmem:[#allocation3 + $0x10] sm:$0xff]
      %v4319 = vld [vmem:[#allocation3 + $0x18] sm:$0xff]
      %v4320 = vld [vmem:[#allocation3 + $0x20] sm:$0xff]
      %v4321 = vld [vmem:[#allocation3 + $0x28] sm:$0xff]
      %v4322 = vld [vmem:[#allocation3 + $0x30] sm:$0xff]
      %v4323 = vld [vmem:[#allocation3 + $0x38] sm:$0xff]
      %v4324 = vld [vmem:[#allocation3 + $0x40] sm:$0xff]
      %v4325 = vld [vmem:[#allocation3 + $0x48] sm:$0xff]
      %v4326 = vld [vmem:[#allocation3 + $0x50] sm:$0xff]
      %v4327 = vld [vmem:[#allocation3 + $0x58] sm:$0xff]
      %v4340 = vunpack.c.l.b16 %v4316
      %v4341 = vunpack.c.h.b16 %v4316
      %v4342 = vunpack.c.l.b16 %v4317
      %v4343 = vunpack.c.h.b16 %v4317
      %v4344 = vunpack.c.l.b16 %v4318
      %v4345 = vunpack.c.h.b16 %v4318
      %v4346 = vunpack.c.l.b16 %v4319
      %v4347 = vunpack.c.h.b16 %v4319
      %v4348 = vunpack.c.l.b16 %v4320
      %v4349 = vunpack.c.h.b16 %v4320
      %v4350 = vunpack.c.l.b16 %v4321
      %v4351 = vunpack.c.h.b16 %v4321
      %v4352 = vunpack.c.l.b16 %v4322
      %v4353 = vunpack.c.h.b16 %v4322
      %v4354 = vunpack.c.l.b16 %v4323
      %v4355 = vunpack.c.h.b16 %v4323
      %v4356 = vunpack.c.l.b16 %v4324
      %v4357 = vunpack.c.h.b16 %v4324
      %v4358 = vunpack.c.l.b16 %v4325
      %v4359 = vunpack.c.h.b16 %v4325
      %v4360 = vunpack.c.l.b16 %v4326
      %v4361 = vunpack.c.h.b16 %v4326
      %v4362 = vunpack.c.l.b16 %v4327
      %v4363 = vunpack.c.h.b16 %v4327
      %v4364 = vpack.c.b16 %v4342, %v4340
      %v4365 = vpack.c.b16 %v4343, %v4341
      %v4366 = vpack.c.b16 %v4346, %v4344
      %v4367 = vpack.c.b16 %v4347, %v4345
      %v4368 = vpack.c.b16 %v4350, %v4348
      %v4369 = vpack.c.b16 %v4351, %v4349
      %v4370 = vpack.c.b16 %v4354, %v4352
      %v4371 = vpack.c.b16 %v4355, %v4353
      %v4372 = vpack.c.b16 %v4358, %v4356
      %v4373 = vpack.c.b16 %v4359, %v4357
      %v4374 = vpack.c.b16 %v4362, %v4360
      %v4375 = vpack.c.b16 %v4363, %v4361
      %v4389 = vsel %vm1359, %v3981, 0
      %4391 = vmatprep.subr.bf16.mxu0 0
      %4392 = vmatpush1.bf16.msra.mxu0 0
      %4393 = vmatprep.subr.bf16.mxu0 0
      %4394 = vmatpush1.bf16.msra.mxu0 0
      %4395 = vmatprep.subr.bf16.mxu0 %v4375
      %4396 = vmatpush1.bf16.msra.mxu0 %v4374
      %4397 = vmatprep.subr.bf16.mxu0 %v4373
      %4398 = vmatpush1.bf16.msra.mxu0 %v4372
      %4399 = vmatprep.subr.bf16.mxu0 %v4371
      %4400 = vmatpush1.bf16.msra.mxu0 %v4370
      %4401 = vmatprep.subr.bf16.mxu0 %v4369
      %4402 = vmatpush1.bf16.msra.mxu0 %v4368
      %4403 = vmatprep.subr.bf16.mxu0 %v4367
      %4404 = vmatpush1.bf16.msra.mxu0 %v4366
      %4405 = vmatprep.subr.bf16.mxu0 %v4365
      %4406 = vmatpush1.bf16.msra.mxu0 %v4364
      %4407 = vmatprep.subr.bf16.mxu0 0
      %4408 = vmatpush2.bf16.msra.mxu0 0
      %4409 = vmatprep.subr.bf16.mxu0 0
      %4410 = vmatpush2.bf16.msra.mxu0 0
      %4411 = vmatprep.subr.bf16.mxu0 0
      %4412 = vmatpush2.bf16.msra.mxu0 0
      %4413 = vmatprep.subr.bf16.mxu0 0
      %4414 = vmatpush2.bf16.msra.mxu0 0
      %4415 = vmatprep.subr.bf16.mxu0 0
      %4416 = vmatpush2.bf16.msra.mxu0 0
      %4417 = vmatprep.subr.bf16.mxu0 0
      %4418 = vmatpush2.bf16.msra.mxu0 0
      %4419 = vmatprep.subr.bf16.mxu0 0
      %4420 = vmatpush2.bf16.msra.mxu0 0
      %4421 = vmatprep.subr.bf16.mxu0 0
      %4422 = vmatpush2.bf16.msra.mxu0 0
      %4423 = vmatprep.mubr.bf16.mxu0 0
      %4424 = vmatmul.mubr.bf16.gmra.mxu0 %v4389
      %v4425 = vpop.f32.mrf.mxu0
      %v4426 = vadd.f32 0.0, %v4425
      %v4427 = vpop.f32.mrf.mxu0
      %v4428 = vadd.f32 0.0, %v4427
      %v4429 = vpop.f32.mrf.mxu0
      %v4430 = vpop.f32.mrf.mxu0
      %4431 = vdwg.mxu0
      %v4444 = vunpack.c.l.b16 %v4168
      %v4445 = vunpack.c.h.b16 %v4168
      %v4446 = vunpack.c.l.b16 %v4169
      %v4447 = vunpack.c.h.b16 %v4169
      %v4448 = vunpack.c.l.b16 %v4170
      %v4449 = vunpack.c.h.b16 %v4170
      %v4450 = vunpack.c.l.b16 %v4171
      %v4451 = vunpack.c.h.b16 %v4171
      %v4452 = vunpack.c.l.b16 %v4172
      %v4453 = vunpack.c.h.b16 %v4172
      %v4454 = vunpack.c.l.b16 %v4173
      %v4455 = vunpack.c.h.b16 %v4173
      %v4456 = vunpack.c.l.b16 %v4174
      %v4457 = vunpack.c.h.b16 %v4174
      %v4458 = vunpack.c.l.b16 %v4175
      %v4459 = vunpack.c.h.b16 %v4175
      %v4460 = vunpack.c.l.b16 %v4176
      %v4461 = vunpack.c.h.b16 %v4176
      %v4462 = vunpack.c.l.b16 %v4177
      %v4463 = vunpack.c.h.b16 %v4177
      %v4464 = vunpack.c.l.b16 %v4178
      %v4465 = vunpack.c.h.b16 %v4178
      %v4466 = vunpack.c.l.b16 %v4179
      %v4467 = vunpack.c.h.b16 %v4179
      %v4468 = vpack.c.b16 %v4446, %v4444
      %v4469 = vpack.c.b16 %v4447, %v4445
      %v4470 = vpack.c.b16 %v4450, %v4448
      %v4471 = vpack.c.b16 %v4451, %v4449
      %v4472 = vpack.c.b16 %v4454, %v4452
      %v4473 = vpack.c.b16 %v4455, %v4453
      %v4474 = vpack.c.b16 %v4458, %v4456
      %v4475 = vpack.c.b16 %v4459, %v4457
      %v4476 = vpack.c.b16 %v4462, %v4460
      %v4477 = vpack.c.b16 %v4463, %v4461
      %v4478 = vpack.c.b16 %v4466, %v4464
      %v4479 = vpack.c.b16 %v4467, %v4465
      %v4493 = vsel %vm1359, %v3980, 0
      %4495 = vmatprep.subr.bf16.mxu0 0
      %4496 = vmatpush1.bf16.msra.mxu0 0
      %4497 = vmatprep.subr.bf16.mxu0 0
      %4498 = vmatpush1.bf16.msra.mxu0 0
      %4499 = vmatprep.subr.bf16.mxu0 %v4479
      %4500 = vmatpush1.bf16.msra.mxu0 %v4478
      %4501 = vmatprep.subr.bf16.mxu0 %v4477
      %4502 = vmatpush1.bf16.msra.mxu0 %v4476
      %4503 = vmatprep.subr.bf16.mxu0 %v4475
      %4504 = vmatpush1.bf16.msra.mxu0 %v4474
      %4505 = vmatprep.subr.bf16.mxu0 %v4473
      %4506 = vmatpush1.bf16.msra.mxu0 %v4472
      %4507 = vmatprep.subr.bf16.mxu0 %v4471
      %4508 = vmatpush1.bf16.msra.mxu0 %v4470
      %4509 = vmatprep.subr.bf16.mxu0 %v4469
      %4510 = vmatpush1.bf16.msra.mxu0 %v4468
      %4511 = vmatprep.subr.bf16.mxu0 0
      %4512 = vmatpush2.bf16.msra.mxu0 0
      %4513 = vmatprep.subr.bf16.mxu0 0
      %4514 = vmatpush2.bf16.msra.mxu0 0
      %4515 = vmatprep.subr.bf16.mxu0 0
      %4516 = vmatpush2.bf16.msra.mxu0 0
      %4517 = vmatprep.subr.bf16.mxu0 0
      %4518 = vmatpush2.bf16.msra.mxu0 0
      %4519 = vmatprep.subr.bf16.mxu0 0
      %4520 = vmatpush2.bf16.msra.mxu0 0
      %4521 = vmatprep.subr.bf16.mxu0 0
      %4522 = vmatpush2.bf16.msra.mxu0 0
      %4523 = vmatprep.subr.bf16.mxu0 0
      %4524 = vmatpush2.bf16.msra.mxu0 0
      %4525 = vmatprep.subr.bf16.mxu0 0
      %4526 = vmatpush2.bf16.msra.mxu0 0
      %4527 = vmatprep.mubr.bf16.mxu0 0
      %4528 = vmatmul.mubr.bf16.gmra.mxu0 %v4493
      %v4529 = vpop.f32.mrf.mxu0
      %v4530 = vadd.f32 %v4426, %v4529
      %v4531 = vpop.f32.mrf.mxu0
      %v4532 = vadd.f32 %v4428, %v4531
      %v4533 = vpop.f32.mrf.mxu0
      %v4534 = vpop.f32.mrf.mxu0
      %4535 = vdwg.mxu0
      %v4536 = vld [vmem:[#allocation2 + $0x4] sm:$0xff]
      %v4537 = vld [vmem:[#allocation2 + $0xc] sm:$0xf]
      %v4538 = vld [vmem:[#allocation2 + $0x14] sm:$0xff]
      %v4539 = vld [vmem:[#allocation2 + $0x1c] sm:$0xf]
      %v4540 = vld [vmem:[#allocation2 + $0x24] sm:$0xff]
      %v4541 = vld [vmem:[#allocation2 + $0x2c] sm:$0xf]
      %v4542 = vld [vmem:[#allocation2 + $0x34] sm:$0xff]
      %v4543 = vld [vmem:[#allocation2 + $0x3c] sm:$0xf]
      %v4544 = vsel %vm709, %v4536, 0
      %v4545 = vsel %vm710, %v4537, 0
      %v4546 = vsel %vm709, %v4538, 0
      %v4547 = vsel %vm710, %v4539, 0
      %v4548 = vsel %vm709, %v4540, 0
      %v4549 = vsel %vm710, %v4541, 0
      %v4550 = vsel %vm709, %v4542, 0
      %v4551 = vsel %vm710, %v4543, 0
      %4560 = vrot.lane.b32.xlu0 %v4544, 113
      %v4561 = vpop.permute.xlu0 %4560
      %4562 = vrot.lane.b32.xlu0 %v4545, 113
      %v4563 = vpop.permute.xlu0 %4562
      %4564 = vrot.lane.b32.xlu0 %v4546, 113
      %v4565 = vpop.permute.xlu0 %4564
      %4566 = vrot.lane.b32.xlu0 %v4547, 113
      %v4567 = vpop.permute.xlu0 %4566
      %4568 = vrot.lane.b32.xlu0 %v4548, 113
      %v4569 = vpop.permute.xlu0 %4568
      %4570 = vrot.lane.b32.xlu0 %v4549, 113
      %v4571 = vpop.permute.xlu0 %4570
      %4572 = vrot.lane.b32.xlu0 %v4550, 113
      %v4573 = vpop.permute.xlu0 %4572
      %4574 = vrot.lane.b32.xlu0 %v4551, 113
      %v4575 = vpop.permute.xlu0 %4574
      %v4576 = vrot.slane %v4561, 4
      %v4577 = vrot.slane %v4563, 4
      %v4578 = vrot.slane %v4565, 4
      %v4579 = vrot.slane %v4567, 4
      %v4580 = vrot.slane %v4569, 4
      %v4581 = vrot.slane %v4571, 4
      %v4582 = vrot.slane %v4573, 4
      %v4583 = vrot.slane %v4575, 4
      %v4584 = vsel %vm991, %v4576, %v4577
      %v4585 = vsel %vm385, %v4561, %v4584
      %v4586 = vsel %vm991, %v4578, %v4579
      %v4587 = vsel %vm385, %v4565, %v4586
      %v4588 = vsel %vm991, %v4580, %v4581
      %v4589 = vsel %vm385, %v4569, %v4588
      %v4590 = vsel %vm991, %v4582, %v4583
      %v4591 = vsel %vm385, %v4573, %v4590
      %4596 = vst [vmem:[#allocation3] sm:$0xff] %v4585
      %4597 = vst [vmem:[#allocation3 + $0x8] sm:$0xff] %v4587
      %4598 = vst [vmem:[#allocation3 + $0x10] sm:$0xff] %v4589
      %4599 = vst [vmem:[#allocation3 + $0x18] sm:$0xff] %v4591
      %v4600 = vld [vmem:[#allocation2 + $0x4] sm:$0xff]
      %v4601 = vld [vmem:[#allocation2 + $0xc] sm:$0xf]
      %v4602 = vld [vmem:[#allocation2 + $0x14] sm:$0xff]
      %v4603 = vld [vmem:[#allocation2 + $0x1c] sm:$0xf]
      %v4604 = vld [vmem:[#allocation2 + $0x24] sm:$0xff]
      %v4605 = vld [vmem:[#allocation2 + $0x2c] sm:$0xf]
      %v4606 = vld [vmem:[#allocation2 + $0x34] sm:$0xff]
      %v4607 = vld [vmem:[#allocation2 + $0x3c] sm:$0xf]
      %4616 = vrot.lane.b32.xlu0 %v4600, 112
      %v4617 = vpop.permute.xlu0 %4616
      %4618 = vrot.lane.b32.xlu0 %v4601, 112
      %v4619 = vpop.permute.xlu0 %4618
      %4620 = vrot.lane.b32.xlu0 %v4602, 112
      %v4621 = vpop.permute.xlu0 %4620
      %4622 = vrot.lane.b32.xlu0 %v4603, 112
      %v4623 = vpop.permute.xlu0 %4622
      %4624 = vrot.lane.b32.xlu0 %v4604, 112
      %v4625 = vpop.permute.xlu0 %4624
      %4626 = vrot.lane.b32.xlu0 %v4605, 112
      %v4627 = vpop.permute.xlu0 %4626
      %4628 = vrot.lane.b32.xlu0 %v4606, 112
      %v4629 = vpop.permute.xlu0 %4628
      %4630 = vrot.lane.b32.xlu0 %v4607, 112
      %v4631 = vpop.permute.xlu0 %4630
      %v4632 = vrot.slane %v4617, 4
      %v4633 = vrot.slane %v4619, 4
      %v4634 = vrot.slane %v4621, 4
      %v4635 = vrot.slane %v4623, 4
      %v4636 = vrot.slane %v4625, 4
      %v4637 = vrot.slane %v4627, 4
      %v4638 = vrot.slane %v4629, 4
      %v4639 = vrot.slane %v4631, 4
      %v4640 = vsel %vm991, %v4632, %v4633
      %v4641 = vsel %vm1653, %v4617, %v4640
      %v4642 = vsel %vm991, %v4634, %v4635
      %v4643 = vsel %vm1653, %v4621, %v4642
      %v4644 = vsel %vm991, %v4636, %v4637
      %v4645 = vsel %vm1653, %v4625, %v4644
      %v4646 = vsel %vm991, %v4638, %v4639
      %v4647 = vsel %vm1653, %v4629, %v4646
      %4652 = vst [vmem:[#allocation3 + $0x20] sm:$0xff] %v4641
      %4653 = vst [vmem:[#allocation3 + $0x28] sm:$0xff] %v4643
      %4654 = vst [vmem:[#allocation3 + $0x30] sm:$0xff] %v4645
      %4655 = vst [vmem:[#allocation3 + $0x38] sm:$0xff] %v4647
      %v4656 = vld [vmem:[#allocation2 + $0x4] sm:$0xff]
      %v4657 = vld [vmem:[#allocation2 + $0xc] sm:$0xf]
      %v4658 = vld [vmem:[#allocation2 + $0x14] sm:$0xff]
      %v4659 = vld [vmem:[#allocation2 + $0x1c] sm:$0xf]
      %v4660 = vld [vmem:[#allocation2 + $0x24] sm:$0xff]
      %v4661 = vld [vmem:[#allocation2 + $0x2c] sm:$0xf]
      %v4662 = vld [vmem:[#allocation2 + $0x34] sm:$0xff]
      %v4663 = vld [vmem:[#allocation2 + $0x3c] sm:$0xf]
      %v4664 = vsel %vm717, %v4656, 0
      %v4665 = vsel %vm718, %v4657, 0
      %v4666 = vsel %vm717, %v4658, 0
      %v4667 = vsel %vm718, %v4659, 0
      %v4668 = vsel %vm717, %v4660, 0
      %v4669 = vsel %vm718, %v4661, 0
      %v4670 = vsel %vm717, %v4662, 0
      %v4671 = vsel %vm718, %v4663, 0
      %4680 = vrot.lane.b32.xlu0 %v4664, 111
      %v4681 = vpop.permute.xlu0 %4680
      %4682 = vrot.lane.b32.xlu0 %v4665, 111
      %v4683 = vpop.permute.xlu0 %4682
      %4684 = vrot.lane.b32.xlu0 %v4666, 111
      %v4685 = vpop.permute.xlu0 %4684
      %4686 = vrot.lane.b32.xlu0 %v4667, 111
      %v4687 = vpop.permute.xlu0 %4686
      %4688 = vrot.lane.b32.xlu0 %v4668, 111
      %v4689 = vpop.permute.xlu0 %4688
      %4690 = vrot.lane.b32.xlu0 %v4669, 111
      %v4691 = vpop.permute.xlu0 %4690
      %4692 = vrot.lane.b32.xlu0 %v4670, 111
      %v4693 = vpop.permute.xlu0 %4692
      %4694 = vrot.lane.b32.xlu0 %v4671, 111
      %v4695 = vpop.permute.xlu0 %4694
      %v4696 = vrot.slane %v4681, 4
      %v4697 = vrot.slane %v4683, 4
      %v4698 = vrot.slane %v4685, 4
      %v4699 = vrot.slane %v4687, 4
      %v4700 = vrot.slane %v4689, 4
      %v4701 = vrot.slane %v4691, 4
      %v4702 = vrot.slane %v4693, 4
      %v4703 = vrot.slane %v4695, 4
      %v4704 = vsel %vm991, %v4696, %v4697
      %v4705 = vsel %vm374, %v4681, %v4704
      %v4706 = vsel %vm991, %v4698, %v4699
      %v4707 = vsel %vm374, %v4685, %v4706
      %v4708 = vsel %vm991, %v4700, %v4701
      %v4709 = vsel %vm374, %v4689, %v4708
      %v4710 = vsel %vm991, %v4702, %v4703
      %v4711 = vsel %vm374, %v4693, %v4710
      %4716 = vst [vmem:[#allocation3 + $0x40] sm:$0xff] %v4705
      %4717 = vst [vmem:[#allocation3 + $0x48] sm:$0xff] %v4707
      %4718 = vst [vmem:[#allocation3 + $0x50] sm:$0xff] %v4709
      %4719 = vst [vmem:[#allocation3 + $0x58] sm:$0xff] %v4711
      %v4720 = vld [vmem:[#allocation3] sm:$0xff]
      %v4721 = vld [vmem:[#allocation3 + $0x8] sm:$0xff]
      %v4722 = vld [vmem:[#allocation3 + $0x10] sm:$0xff]
      %v4723 = vld [vmem:[#allocation3 + $0x18] sm:$0xff]
      %v4724 = vld [vmem:[#allocation3 + $0x20] sm:$0xff]
      %v4725 = vld [vmem:[#allocation3 + $0x28] sm:$0xff]
      %v4726 = vld [vmem:[#allocation3 + $0x30] sm:$0xff]
      %v4727 = vld [vmem:[#allocation3 + $0x38] sm:$0xff]
      %v4728 = vld [vmem:[#allocation3 + $0x40] sm:$0xff]
      %v4729 = vld [vmem:[#allocation3 + $0x48] sm:$0xff]
      %v4730 = vld [vmem:[#allocation3 + $0x50] sm:$0xff]
      %v4731 = vld [vmem:[#allocation3 + $0x58] sm:$0xff]
      %v4744 = vunpack.c.l.b16 %v4720
      %v4745 = vunpack.c.h.b16 %v4720
      %v4746 = vunpack.c.l.b16 %v4721
      %v4747 = vunpack.c.h.b16 %v4721
      %v4748 = vunpack.c.l.b16 %v4722
      %v4749 = vunpack.c.h.b16 %v4722
      %v4750 = vunpack.c.l.b16 %v4723
      %v4751 = vunpack.c.h.b16 %v4723
      %v4752 = vunpack.c.l.b16 %v4724
      %v4753 = vunpack.c.h.b16 %v4724
      %v4754 = vunpack.c.l.b16 %v4725
      %v4755 = vunpack.c.h.b16 %v4725
      %v4756 = vunpack.c.l.b16 %v4726
      %v4757 = vunpack.c.h.b16 %v4726
      %v4758 = vunpack.c.l.b16 %v4727
      %v4759 = vunpack.c.h.b16 %v4727
      %v4760 = vunpack.c.l.b16 %v4728
      %v4761 = vunpack.c.h.b16 %v4728
      %v4762 = vunpack.c.l.b16 %v4729
      %v4763 = vunpack.c.h.b16 %v4729
      %v4764 = vunpack.c.l.b16 %v4730
      %v4765 = vunpack.c.h.b16 %v4730
      %v4766 = vunpack.c.l.b16 %v4731
      %v4767 = vunpack.c.h.b16 %v4731
      %v4768 = vpack.c.b16 %v4746, %v4744
      %v4769 = vpack.c.b16 %v4747, %v4745
      %v4770 = vpack.c.b16 %v4750, %v4748
      %v4771 = vpack.c.b16 %v4751, %v4749
      %v4772 = vpack.c.b16 %v4754, %v4752
      %v4773 = vpack.c.b16 %v4755, %v4753
      %v4774 = vpack.c.b16 %v4758, %v4756
      %v4775 = vpack.c.b16 %v4759, %v4757
      %v4776 = vpack.c.b16 %v4762, %v4760
      %v4777 = vpack.c.b16 %v4763, %v4761
      %v4778 = vpack.c.b16 %v4766, %v4764
      %v4779 = vpack.c.b16 %v4767, %v4765
      %v4793 = vsel %vm1359, %v3982, 0
      %4795 = vmatprep.subr.bf16.mxu0 0
      %4796 = vmatpush1.bf16.msra.mxu0 0
      %4797 = vmatprep.subr.bf16.mxu0 0
      %4798 = vmatpush1.bf16.msra.mxu0 0
      %4799 = vmatprep.subr.bf16.mxu0 %v4779
      %4800 = vmatpush1.bf16.msra.mxu0 %v4778
      %4801 = vmatprep.subr.bf16.mxu0 %v4777
      %4802 = vmatpush1.bf16.msra.mxu0 %v4776
      %4803 = vmatprep.subr.bf16.mxu0 %v4775
      %4804 = vmatpush1.bf16.msra.mxu0 %v4774
      %4805 = vmatprep.subr.bf16.mxu0 %v4773
      %4806 = vmatpush1.bf16.msra.mxu0 %v4772
      %4807 = vmatprep.subr.bf16.mxu0 %v4771
      %4808 = vmatpush1.bf16.msra.mxu0 %v4770
      %4809 = vmatprep.subr.bf16.mxu0 %v4769
      %4810 = vmatpush1.bf16.msra.mxu0 %v4768
      %4811 = vmatprep.subr.bf16.mxu0 0
      %4812 = vmatpush2.bf16.msra.mxu0 0
      %4813 = vmatprep.subr.bf16.mxu0 0
      %4814 = vmatpush2.bf16.msra.mxu0 0
      %4815 = vmatprep.subr.bf16.mxu0 0
      %4816 = vmatpush2.bf16.msra.mxu0 0
      %4817 = vmatprep.subr.bf16.mxu0 0
      %4818 = vmatpush2.bf16.msra.mxu0 0
      %4819 = vmatprep.subr.bf16.mxu0 0
      %4820 = vmatpush2.bf16.msra.mxu0 0
      %4821 = vmatprep.subr.bf16.mxu0 0
      %4822 = vmatpush2.bf16.msra.mxu0 0
      %4823 = vmatprep.subr.bf16.mxu0 0
      %4824 = vmatpush2.bf16.msra.mxu0 0
      %4825 = vmatprep.subr.bf16.mxu0 0
      %4826 = vmatpush2.bf16.msra.mxu0 0
      %4827 = vmatprep.mubr.bf16.mxu0 0
      %4828 = vmatmul.mubr.bf16.gmra.mxu0 %v4793
      %v4829 = vpop.f32.mrf.mxu0
      %v4830 = vadd.f32 0.0, %v4829
      %v4831 = vpop.f32.mrf.mxu0
      %v4832 = vadd.f32 0.0, %v4831
      %v4833 = vpop.f32.mrf.mxu0
      %v4834 = vpop.f32.mrf.mxu0
      %4835 = vdwg.mxu0
      %v4836 = vadd.f32 %v4530, %v4830
      %v4837 = vadd.f32 %v4532, %v4832
      %4839 = vset.pattern.permute.xlu0 0
      %4840 = vperm.xlu0 %4839, %v3983
      %v4841 = vpop.permute.xlu0 %4840
      %v4843 = vadd.f32 %v4836, %v4841
      %v4844 = vadd.f32 %v4837, %v4841
      %v4845 = vadd.f32 %v4843, %v338
      %v4846 = vadd.f32 %v4844, %v339
      %v4849 = vcombine.low %v4845, %v4846
      %v4851 = vunpack.c.l.s4 1983009808
      %v4852 = vunpack.c.0.s8 %v4851
      %v4853 = vlaneseq
      %v4854 = vshrl.u32 %v4853, 7
      %v4855 = vsub.s32 %v4852, %v4854
      %v4856 = vrot.slane %v4849, %v4855
      %4858 = vst [vmem:[%s278] sm:$0xf] %v4856
      %p4859 = scmp.lt.s32.totalorder %s18, 1
      %s4860 = scalar_select %p4859, %s18, 1
      %s4861 = smul.addr %s4860, 2
      %s4862 = smul.addr %s4861, 2
      %s4863 = scalar_lea.vmem %s7, %s4862
      // Predicated region
      $region49: #{dc_cnn_forward.10} parent=47 // pred_check
        %p4864 = pneg %p188
      $region50: #{dc_cnn_forward.10} parent=47 // pred_check_branch
        %4866 = sbr.rel (%p4864) target = $region52
      $region51: #{dc_cnn_forward.10} parent=47 // pred_region
        _
      $region52: #{dc_cnn_forward.10} parent=47 // pred_fallthru
        _
    $region48: #{dc_cnn_forward.10} parent=5 // pred_fallthru
      _
    %p4867 = scmp.le.s32.totalorder 2, %s13
    // Predicated region
    $region53: #{dc_cnn_forward.10} parent=5 // pred_check
      %p4868 = pneg %p4867
    $region54: #{dc_cnn_forward.10} parent=5 // pred_check_branch
      %4870 = sbr.rel (%p4868) target = $region56
    $region55: #{dc_cnn_forward.10} parent=5 // pred_region
      %s4871 = ssub.s32 %s13, 2
      // Predicated region
      $region57: #{dc_cnn_forward.10} parent=55 // pred_check
        %p4872 = pneg %p194
      $region58: #{dc_cnn_forward.10} parent=55 // pred_check_branch
        %4874 = sbr.rel (%p4872) target = $region60
      $region59: #{dc_cnn_forward.10} parent=55 // pred_region
        %p4875 = scmp.lt.s32.totalorder %s19, 1
        %s4876 = scalar_select %p4875, %s19, 1
        %s4877 = smul.addr %s4876, 2
        %s4878 = smul.addr %s4877, 2
        %s4879 = scalar_lea.vmem %s7, %s4878
      $region60: #{dc_cnn_forward.10} parent=55 // pred_fallthru
        _
    $region56: #{dc_cnn_forward.10} parent=5 // pred_fallthru
      _
  $region6: #{dc_cnn_forward.10} parent=0 // loop_footer
    %s17 = sadd.s32 1, %s13
  $region7: #{dc_cnn_forward.10} parent=0 // loop_footer_branch
    %12 = sbr.rel target = $region3
  $region8: #{dc_cnn_forward.10} parent=0 // loop_exit
    _

</llo_original>
